<compile_context>
chip_gen: v7x
topology: tpu7x:2x2x1
jax: 0.10.0
libtpu: 0.0.40
codegen_flags: <defaults>
</compile_context>

<pallas_src>
import functools
import math

import jax
import jax.numpy as jnp
import numpy as np
from jax.experimental import pallas as pl
from jax.experimental.pallas import tpu as pltpu

EPS = 1e-5  # PyTorch BatchNorm default eps


def _one_pass_channel_stats(t, n_inv):
    """Per-leading-channel mean / biased variance in ONE pass over the data.

    Uses sum + sum-of-squares (var = E[x^2] - mean^2); reduces one axis at a
    time, innermost first, so every reduction is a plain lane/sublane reduce.
    The two reduction chains (s1, s2) are independent -> good ILP.
    """
    s1 = t
    s2 = t * t
    for ax in range(t.ndim - 1, 0, -1):
        s1 = jnp.sum(s1, axis=ax, keepdims=True)
        s2 = jnp.sum(s2, axis=ax, keepdims=True)
    m = s1 * n_inv
    v = s2 * n_inv - m * m
    return m, v


def _bn_train(x, axes):
    """Reference-side training-mode BatchNorm (gamma=1, beta=0)."""
    m = jnp.mean(x, axis=axes, keepdims=True)
    v = jnp.mean((x - m) ** 2, axis=axes, keepdims=True)
    return (x - m) / jnp.sqrt(v + EPS)


# --------------------------------------------------------------------------
# Pallas kernel: one attention group per grid step.
#   x_ref     : (C, L*B)         f32   (shared across groups)
#   w_ref     : (1, 2*gp, C)     f32   this group's 1x1-conv rows
#   qemb_ref  : (cq, L, L, 1)    f32   pre-shaped for lane-splat broadcast
#   kembT_ref : (cq, L, L, 1)    f32   k_embedding with (i, j) pre-swapped
#   vemb_ref  : (gp, L, L, 1)    f32
#   o_ref     : (1, gp, L, B)    f32
# --------------------------------------------------------------------------
def axial_attention_kernel(x_ref, w_ref, qemb_ref, kembT_ref, vemb_ref, o_ref,
                           *, compute_dtype):
    C, LB = x_ref.shape
    two_gp = w_ref.shape[1]
    cq, L = qemb_ref.shape[0], qemb_ref.shape[1]
    gp = vemb_ref.shape[0]
    B = LB // L

    # ---- qkv_transform: single-pass bf16-input MXU matmul, f32 accumulate ---
    w = w_ref[0].astype(jnp.bfloat16)                         # (2*gp, C)
    qkv = jnp.dot(w, x_ref[...].astype(jnp.bfloat16),
                  preferred_element_type=jnp.float32)         # (2*gp, L*B) f32

    # ---- bn_qkv: one-pass per-channel stats over all L*B positions ----------
    mu, var = _one_pass_channel_stats(qkv, 1.0 / LB)
    qkv = (qkv - mu) * jax.lax.rsqrt(var + EPS)

    # Split into q / k / v with B on the lane axis.
    qkv = qkv.reshape(two_gp, L, B)
    q = qkv[:cq].astype(compute_dtype)         # (cq, L_i, B)
    k = qkv[cq:2 * cq].astype(compute_dtype)   # (cq, L_j, B)
    v = qkv[2 * cq:]                           # (gp, L_j, B)  f32

    qemb = qemb_ref[...].astype(compute_dtype)    # (cq, L_i, L_j, 1)
    kembT = kembT_ref[...].astype(compute_dtype)  # (cq, L_i, L_j, 1) == k_emb[c, j, i]
    vemb = vemb_ref[...]                          # (gp, L_i, L_j, 1)

    # ---- similarity terms: broadcast-multiply + reduce over tiny cq dim -----
    # (B stays on lanes -> full-occupancy VPU work; the (c, i, j, 1) embedding
    #  layout makes the broadcast a pure lane splat.)
    qk = jnp.sum(q[:, :, None, :] * k[:, None, :, :], axis=0, dtype=jnp.float32)
    qr = jnp.sum(q[:, :, None, :] * qemb, axis=0, dtype=jnp.float32)
    kr = jnp.sum(k[:, None, :, :] * kembT, axis=0, dtype=jnp.float32)

    # ---- bn_similarity: ONE batched per-map BN (one-pass stats), then sum ---
    sims = jnp.stack([qk, qr, kr], axis=0)                        # (3, L, L, B)
    mu_s, var_s = _one_pass_channel_stats(sims, 1.0 / (L * L * B))
    sims = (sims - mu_s) * jax.lax.rsqrt(var_s + EPS)
    logits = sims[0] + sims[1] + sims[2]                          # (L_i, L_j, B)

    # ---- softmax over j (axis 1); EUP reciprocal + one Newton step ----------
    m_max = jnp.max(logits, axis=1, keepdims=True)
    e = jnp.exp(logits - m_max)
    s = jnp.sum(e, axis=1, keepdims=True)                         # (L, 1, B)
    r = pl.reciprocal(s, approx=True)
    r = r * (2.0 - s * r)                                         # refine to ~f32
    sim = e * r                                                   # (L_i, L_j, B)

    # ---- sv / sve: reduce over j for all gp channels at once ----------------
    sim_c = sim.astype(compute_dtype)
    sv = jnp.sum(sim_c[None] * v.astype(compute_dtype)[:, None, :, :],
                 axis=2, dtype=jnp.float32)                       # (gp, L_i, B)
    sve = jnp.sum(sim_c[None] * vemb.astype(compute_dtype),
                  axis=2, dtype=jnp.float32)                      # (gp, L_i, B)

    # ---- bn_output: ONE batched per-channel BN over concatenated sv|sve -----
    so = jnp.concatenate([sv, sve], axis=0)                       # (2*gp, L_i, B)
    mu_o, var_o = _one_pass_channel_stats(so, 1.0 / (L * B))
    so = (so - mu_o) * jax.lax.rsqrt(var_o + EPS)
    out = so[:gp] + so[gp:]                                       # (gp, L_i, B)

    # Single lane-dense slab store for the whole group.
    o_ref[0] = out.astype(o_ref.dtype)


# --------------------------------------------------------------------------
# Glue: parameter construction, relative-embedding gather, layout plumbing.
# --------------------------------------------------------------------------
def make_params(key, in_planes, out_planes, groups, kernel_size):
    gp = out_planes // groups
    k1, k2 = jax.random.split(key)
    w_qkv = jax.random.normal(k1, (out_planes * 2, in_planes), jnp.float32) * math.sqrt(
        1.0 / in_planes)
    relative = jax.random.normal(k2, (gp * 2, kernel_size * 2 - 1), jnp.float32) * math.sqrt(
        1.0 / gp)
    return w_qkv, relative


def _relative_embeddings(relative, kernel_size, gp):
    q_idx = jnp.arange(kernel_size)[None, :]
    k_idx = jnp.arange(kernel_size)[:, None]
    flat = (k_idx - q_idx + kernel_size - 1).reshape(-1)
    all_emb = relative[:, flat].reshape(gp * 2, kernel_size, kernel_size)
    cq = gp // 2
    return all_emb[:cq], all_emb[cq:2 * cq], all_emb[2 * cq:]


def axial_attention_forward(x, w_qkv, relative, *, groups, kernel_size, width=False,
                            compute_dtype=jnp.float32):
    """compute_dtype=jnp.bfloat16 runs the VPU broadcast-multiply stages in
    bf16 (f32 accumulation) — ~2x VALU throughput on v6e/v7x; keep f32 on v5e
    or when tight numerical agreement with an f32 reference is required."""
    N, C, Hdim, Wdim = x.shape
    out_planes = w_qkv.shape[0] // 2
    gp = out_planes // groups
    cq = gp // 2

    if width:
        xp = jnp.transpose(x, (0, 2, 1, 3))   # (N, H, C, W): attend along W
    else:
        xp = jnp.transpose(x, (0, 3, 1, 2))   # (N, W, C, H): attend along H
    Nn, Wn, Cn, Ln = xp.shape
    assert Ln == kernel_size, "attended axis length must equal kernel_size"
    B = Nn * Wn

    # (C, L, B) position-major so the kernel's unflatten keeps B on lanes.
    x_clb = jnp.transpose(xp.reshape(B, Cn, Ln), (1, 2, 0))     # (C, L, B)
    x2d = x_clb.reshape(Cn, Ln * B)

    q_emb, k_emb, v_emb = _relative_embeddings(relative, kernel_size, gp)
    k_embT = jnp.swapaxes(k_emb, 1, 2)        # fold the kr transpose into the weights
    # Pre-shape as (c, L_i, L_j, 1): in-kernel broadcast is a pure lane splat.
    q_emb4 = q_emb[..., None]
    k_embT4 = k_embT[..., None]
    v_emb4 = v_emb[..., None]
    w3 = w_qkv.reshape(groups, 2 * gp, Cn)    # per-group conv rows

    # Advisory cost estimate so XLA schedules around the custom call.
    flops = int(2 * (2 * out_planes) * Cn * Ln * B                     # qkv matmul
                + groups * (3 * 2 * cq + 2 * 2 * gp) * Ln * Ln * B)    # qk/qr/kr + sv/sve
    transcendentals = int(groups * Ln * Ln * B + groups * Ln * B)      # exp + recip
    bytes_accessed = int(4 * (x2d.size + w3.size + q_emb4.size + k_embT4.size
                              + v_emb4.size + groups * gp * Ln * B))

    out = pl.pallas_call(
        functools.partial(axial_attention_kernel, compute_dtype=compute_dtype),
        out_shape=jax.ShapeDtypeStruct((groups, gp, Ln, B), jnp.float32),
        grid=(groups,),
        in_specs=[
            pl.BlockSpec((Cn, Ln * B), lambda g: (0, 0)),          # shared input
            pl.BlockSpec((1, 2 * gp, Cn), lambda g: (g, 0, 0)),    # this group's conv rows
            pl.BlockSpec((cq, Ln, Ln, 1), lambda g: (0, 0, 0, 0)),  # q_embedding (shared)
            pl.BlockSpec((cq, Ln, Ln, 1), lambda g: (0, 0, 0, 0)),  # k_embedding^T (shared)
            pl.BlockSpec((gp, Ln, Ln, 1), lambda g: (0, 0, 0, 0)),  # v_embedding (shared)
        ],
        out_specs=pl.BlockSpec((1, gp, Ln, B), lambda g: (g, 0, 0, 0)),
        compiler_params=pltpu.CompilerParams(
            dimension_semantics=("parallel",),           # groups are independent
            vmem_limit_bytes=32 * 1024 * 1024),          # fits v7x's smaller VMEM
        cost_estimate=pl.CostEstimate(flops=flops,
                                      transcendentals=transcendentals,
                                      bytes_accessed=bytes_accessed),
    )(x2d, w3, q_emb4, k_embT4, v_emb4)

    # (groups, gp, L, B) -> (B, out_planes, L) -> NCHW-style result
    out = jnp.transpose(out, (3, 0, 1, 2)).reshape(B, out_planes, Ln)
    out = out.reshape(Nn, Wn, out_planes, Ln)
    if width:
        out = jnp.transpose(out, (0, 2, 1, 3))   # (N, OC, H, W)
    else:
        out = jnp.transpose(out, (0, 2, 3, 1))   # (N, OC, H, W)
    return out


# --------------------------------------------------------------------------
# Pure-JAX reference (same math, einsum formulation) for verification.
# The qkv matmul uses the same deliberate bf16-input / f32-accumulate choice
# as the kernel; everything downstream is (effectively exact) f32.
# --------------------------------------------------------------------------
def reference_forward(x, w_qkv, relative, *, groups, kernel_size, width=False):
    HI = jax.lax.Precision.HIGHEST
    N, C, Hdim, Wdim = x.shape
    out_planes = w_qkv.shape[0] // 2
    gp = out_planes // groups
    cq = gp // 2
    if width:
        xp = jnp.transpose(x, (0, 2, 1, 3))
    else:
        xp = jnp.transpose(x, (0, 3, 1, 2))
    Nn, Wn, Cn, Ln = xp.shape
    B = Nn * Wn
    xf = xp.reshape(B, Cn, Ln)

    qkv = jnp.einsum('oc,bch->boh', w_qkv.astype(jnp.bfloat16),
                     xf.astype(jnp.bfloat16),
                     preferred_element_type=jnp.float32)
    qkv = _bn_train(qkv, (0, 2)).reshape(B, groups, 2 * gp, Ln)
    q, k, v = qkv[:, :, :cq], qkv[:, :, cq:2 * cq], qkv[:, :, 2 * cq:]

    q_emb, k_emb, v_emb = _relative_embeddings(relative, kernel_size, gp)
    qr = jnp.einsum('bgci,cij->bgij', q, q_emb, precision=HI)
    kr = jnp.swapaxes(jnp.einsum('bgci,cij->bgij', k, k_emb, precision=HI), 2, 3)
    qk = jnp.einsum('bgci,bgcj->bgij', q, k, precision=HI)

    stacked = jnp.concatenate([qk, qr, kr], axis=1)                 # (B, 3*groups, L, L)
    stacked = _bn_train(stacked, (0, 2, 3)).reshape(B, 3, groups, Ln, Ln).sum(axis=1)
    sim = jax.nn.softmax(stacked, axis=3)

    sv = jnp.einsum('bgij,bgcj->bgci', sim, v, precision=HI)
    sve = jnp.einsum('bgij,cij->bgci', sim, v_emb, precision=HI)
    stacked_out = jnp.concatenate([sv, sve], axis=-1).reshape(B, out_planes * 2, Ln)
    out = _bn_train(stacked_out, (0, 2)).reshape(Nn, Wn, out_planes, 2, Ln).sum(axis=-2)
    if width:
        out = jnp.transpose(out, (0, 2, 1, 3))
    else:
        out = jnp.transpose(out, (0, 2, 3, 1))
    return out


if __name__ == "__main__":
    # Small shapes consistent with the module: groups=3, group_planes even;
    # N=16, H=W=kernel_size=8 gives B = N*W = 128 (lane-dense batch axis).
    N, in_planes, out_planes, groups, ks = 16, 12, 12, 3, 8
    H = W = ks

    key = jax.random.PRNGKey(0)
    kx, kp = jax.random.split(key)
    x = jax.random.normal(kx, (N, in_planes, H, W), jnp.float32)
    w_qkv, relative = make_params(kp, in_planes, out_planes, groups, ks)

    out = axial_attention_forward(x, w_qkv, relative, groups=groups, kernel_size=ks,
                                  compute_dtype=jnp.float32)
    out = jax.block_until_ready(out)
    assert out.shape == (N, out_planes, H, W), out.shape

    ref = jax.block_until_ready(
        reference_forward(x, w_qkv, relative, groups=groups, kernel_size=ks))
    np.testing.assert_allclose(np.asarray(out), np.asarray(ref), atol=2e-3, rtol=2e-3)

    print("KERNEL_OK")
</pallas_src>

<mosaic_0001>
module attributes {stable_mosaic.version = 11 : i64} {
  func.func @axial_attention_kernel(%arg0: i32, %arg1: memref<12x1024xf32, #tpu.memory_space<vmem>>, %arg2: memref<1x8x12xf32, #tpu.memory_space<vmem>>, %arg3: memref<2x8x8x1xf32, #tpu.memory_space<vmem>>, %arg4: memref<2x8x8x1xf32, #tpu.memory_space<vmem>>, %arg5: memref<4x8x8x1xf32, #tpu.memory_space<vmem>>, %arg6: memref<1x4x8x128xf32, #tpu.memory_space<vmem>>) attributes {dimension_semantics = [#tpu.dimension_semantics<parallel>], iteration_bounds = array<i64: 3>, scalar_prefetch = 0 : i64, scratch_operands = 0 : i64, tpu.core_type = #tpu.core_type<tc>, window_params = [{pipeline_mode = #tpu.pipeline_mode<synchronous>, transform_indices = @transform_0, window_bounds = array<i64: 12, 1024>}, {transform_indices = @transform_1, window_bounds = array<i64: 1, 8, 12>}, {pipeline_mode = #tpu.pipeline_mode<synchronous>, transform_indices = @transform_2, window_bounds = array<i64: 2, 8, 8, 1>}, {pipeline_mode = #tpu.pipeline_mode<synchronous>, transform_indices = @transform_3, window_bounds = array<i64: 2, 8, 8, 1>}, {pipeline_mode = #tpu.pipeline_mode<synchronous>, transform_indices = @transform_4, window_bounds = array<i64: 4, 8, 8, 1>}, {transform_indices = @transform_5, window_bounds = array<i64: 1, 4, 8, 128>}]} {
    %c0 = arith.constant 0 : index
    %c0_0 = arith.constant 0 : index
    %c0_1 = arith.constant 0 : index
    %0 = vector.load %arg2[%c0, %c0_0, %c0_1] : memref<1x8x12xf32, #tpu.memory_space<vmem>>, vector<1x8x12xf32>
    %1 = vector.shape_cast %0 : vector<1x8x12xf32> to vector<8x12xf32>
    %2 = arith.truncf %1 : vector<8x12xf32> to vector<8x12xbf16>
    %c0_2 = arith.constant 0 : index
    %c0_3 = arith.constant 0 : index
    %3 = vector.load %arg1[%c0_2, %c0_3] : memref<12x1024xf32, #tpu.memory_space<vmem>>, vector<12x1024xf32>
    %4 = arith.truncf %3 : vector<12x1024xf32> to vector<12x1024xbf16>
    %cst = arith.constant dense<0.000000e+00> : vector<8x1024xf32>
    %5 = tpu.matmul %2, %4, %cst {dimension_numbers = #tpu.dot_dimension_numbers<[1], [0], [0], [1], [0, 0, 1, 1], [], []>} : vector<8x12xbf16>, vector<12x1024xbf16>, vector<8x1024xf32> -> vector<8x1024xf32>
    %6 = arith.mulf %5, %5 : vector<8x1024xf32>
    %cst_4 = arith.constant dense<0.000000e+00> : vector<8xf32>
    %7 = vector.multi_reduction <add>, %5, %cst_4 [1] : vector<8x1024xf32> to vector<8xf32>
    %8 = vector.shape_cast %7 : vector<8xf32> to vector<8x1xf32>
    %cst_5 = arith.constant dense<0.000000e+00> : vector<8xf32>
    %9 = vector.multi_reduction <add>, %6, %cst_5 [1] : vector<8x1024xf32> to vector<8xf32>
    %10 = vector.shape_cast %9 : vector<8xf32> to vector<8x1xf32>
    %cst_6 = arith.constant 9.765625E-4 : f32
    %11 = vector.broadcast %cst_6 : f32 to vector<8x1xf32>
    %12 = arith.mulf %8, %11 : vector<8x1xf32>
    %cst_7 = arith.constant 9.765625E-4 : f32
    %13 = vector.broadcast %cst_7 : f32 to vector<8x1xf32>
    %14 = arith.mulf %10, %13 : vector<8x1xf32>
    %15 = arith.mulf %12, %12 : vector<8x1xf32>
    %16 = arith.subf %14, %15 : vector<8x1xf32>
    %17 = vector.broadcast %12 : vector<8x1xf32> to vector<8x1024xf32>
    %18 = arith.subf %5, %17 : vector<8x1024xf32>
    %cst_8 = arith.constant 9.99999974E-6 : f32
    %19 = vector.broadcast %cst_8 : f32 to vector<8x1xf32>
    %20 = arith.addf %16, %19 : vector<8x1xf32>
    %21 = math.rsqrt %20 : vector<8x1xf32>
    %22 = vector.broadcast %21 : vector<8x1xf32> to vector<8x1024xf32>
    %23 = arith.mulf %18, %22 : vector<8x1024xf32>
    %24 = vector.shape_cast %23 : vector<8x1024xf32> to vector<8x8x128xf32>
    %25 = vector.extract_strided_slice %24 {offsets = [0, 0, 0], sizes = [2, 8, 128], strides = [1, 1, 1]} : vector<8x8x128xf32> to vector<2x8x128xf32>
    %26 = vector.extract_strided_slice %24 {offsets = [2, 0, 0], sizes = [2, 8, 128], strides = [1, 1, 1]} : vector<8x8x128xf32> to vector<2x8x128xf32>
    %27 = vector.extract_strided_slice %24 {offsets = [4, 0, 0], sizes = [4, 8, 128], strides = [1, 1, 1]} : vector<8x8x128xf32> to vector<4x8x128xf32>
    %c0_9 = arith.constant 0 : index
    %c0_10 = arith.constant 0 : index
    %c0_11 = arith.constant 0 : index
    %c0_12 = arith.constant 0 : index
    %28 = vector.load %arg3[%c0_9, %c0_10, %c0_11, %c0_12] : memref<2x8x8x1xf32, #tpu.memory_space<vmem>>, vector<2x8x8x1xf32>
    %c0_13 = arith.constant 0 : index
    %c0_14 = arith.constant 0 : index
    %c0_15 = arith.constant 0 : index
    %c0_16 = arith.constant 0 : index
    %29 = vector.load %arg4[%c0_13, %c0_14, %c0_15, %c0_16] : memref<2x8x8x1xf32, #tpu.memory_space<vmem>>, vector<2x8x8x1xf32>
    %c0_17 = arith.constant 0 : index
    %c0_18 = arith.constant 0 : index
    %c0_19 = arith.constant 0 : index
    %c0_20 = arith.constant 0 : index
    %30 = vector.load %arg5[%c0_17, %c0_18, %c0_19, %c0_20] : memref<4x8x8x1xf32, #tpu.memory_space<vmem>>, vector<4x8x8x1xf32>
    %31 = vector.shape_cast %25 : vector<2x8x128xf32> to vector<2x8x1x128xf32>
    %32 = vector.shape_cast %26 : vector<2x8x128xf32> to vector<2x1x8x128xf32>
    %33 = vector.broadcast %31 : vector<2x8x1x128xf32> to vector<2x8x8x128xf32>
    %34 = vector.broadcast %32 : vector<2x1x8x128xf32> to vector<2x8x8x128xf32>
    %35 = arith.mulf %33, %34 : vector<2x8x8x128xf32>
    %cst_21 = arith.constant dense<0.000000e+00> : vector<8x8x128xf32>
    %36 = vector.multi_reduction <add>, %35, %cst_21 [0] : vector<2x8x8x128xf32> to vector<8x8x128xf32>
    %37 = vector.shape_cast %25 : vector<2x8x128xf32> to vector<2x8x1x128xf32>
    %38 = vector.broadcast %37 : vector<2x8x1x128xf32> to vector<2x8x8x128xf32>
    %39 = vector.broadcast %28 : vector<2x8x8x1xf32> to vector<2x8x8x128xf32>
    %40 = arith.mulf %38, %39 : vector<2x8x8x128xf32>
    %cst_22 = arith.constant dense<0.000000e+00> : vector<8x8x128xf32>
    %41 = vector.multi_reduction <add>, %40, %cst_22 [0] : vector<2x8x8x128xf32> to vector<8x8x128xf32>
    %42 = vector.shape_cast %26 : vector<2x8x128xf32> to vector<2x1x8x128xf32>
    %43 = vector.broadcast %42 : vector<2x1x8x128xf32> to vector<2x8x8x128xf32>
    %44 = vector.broadcast %29 : vector<2x8x8x1xf32> to vector<2x8x8x128xf32>
    %45 = arith.mulf %43, %44 : vector<2x8x8x128xf32>
    %cst_23 = arith.constant dense<0.000000e+00> : vector<8x8x128xf32>
    %46 = vector.multi_reduction <add>, %45, %cst_23 [0] : vector<2x8x8x128xf32> to vector<8x8x128xf32>
    %47 = vector.shape_cast %36 : vector<8x8x128xf32> to vector<1x8x8x128xf32>
    %48 = vector.shape_cast %41 : vector<8x8x128xf32> to vector<1x8x8x128xf32>
    %49 = vector.shape_cast %46 : vector<8x8x128xf32> to vector<1x8x8x128xf32>
    %50 = tpu.concatenate %47, %48, %49 in 0 : vector<1x8x8x128xf32>, vector<1x8x8x128xf32>, vector<1x8x8x128xf32> -> vector<3x8x8x128xf32>
    %51 = arith.mulf %50, %50 : vector<3x8x8x128xf32>
    %cst_24 = arith.constant dense<0.000000e+00> : vector<3x8x8xf32>
    %52 = vector.multi_reduction <add>, %50, %cst_24 [3] : vector<3x8x8x128xf32> to vector<3x8x8xf32>
    %53 = vector.shape_cast %52 : vector<3x8x8xf32> to vector<3x8x8x1xf32>
    %cst_25 = arith.constant dense<0.000000e+00> : vector<3x8x8xf32>
    %54 = vector.multi_reduction <add>, %51, %cst_25 [3] : vector<3x8x8x128xf32> to vector<3x8x8xf32>
    %55 = vector.shape_cast %54 : vector<3x8x8xf32> to vector<3x8x8x1xf32>
    %cst_26 = arith.constant dense<0.000000e+00> : vector<3x8x1xf32>
    %56 = vector.multi_reduction <add>, %53, %cst_26 [2] : vector<3x8x8x1xf32> to vector<3x8x1xf32>
    %57 = vector.shape_cast %56 : vector<3x8x1xf32> to vector<3x8x1x1xf32>
    %cst_27 = arith.constant dense<0.000000e+00> : vector<3x8x1xf32>
    %58 = vector.multi_reduction <add>, %55, %cst_27 [2] : vector<3x8x8x1xf32> to vector<3x8x1xf32>
    %59 = vector.shape_cast %58 : vector<3x8x1xf32> to vector<3x8x1x1xf32>
    %cst_28 = arith.constant dense<0.000000e+00> : vector<3x1x1xf32>
    %60 = vector.multi_reduction <add>, %57, %cst_28 [1] : vector<3x8x1x1xf32> to vector<3x1x1xf32>
    %61 = vector.shape_cast %60 : vector<3x1x1xf32> to vector<3x1x1x1xf32>
    %cst_29 = arith.constant dense<0.000000e+00> : vector<3x1x1xf32>
    %62 = vector.multi_reduction <add>, %59, %cst_29 [1] : vector<3x8x1x1xf32> to vector<3x1x1xf32>
    %63 = vector.shape_cast %62 : vector<3x1x1xf32> to vector<3x1x1x1xf32>
    %cst_30 = arith.constant 1.22070313E-4 : f32
    %64 = vector.broadcast %cst_30 : f32 to vector<3x1x1x1xf32>
    %65 = arith.mulf %61, %64 : vector<3x1x1x1xf32>
    %cst_31 = arith.constant 1.22070313E-4 : f32
    %66 = vector.broadcast %cst_31 : f32 to vector<3x1x1x1xf32>
    %67 = arith.mulf %63, %66 : vector<3x1x1x1xf32>
    %68 = arith.mulf %65, %65 : vector<3x1x1x1xf32>
    %69 = arith.subf %67, %68 : vector<3x1x1x1xf32>
    %70 = vector.broadcast %65 : vector<3x1x1x1xf32> to vector<3x8x8x128xf32>
    %71 = arith.subf %50, %70 : vector<3x8x8x128xf32>
    %cst_32 = arith.constant 9.99999974E-6 : f32
    %72 = vector.broadcast %cst_32 : f32 to vector<3x1x1x1xf32>
    %73 = arith.addf %69, %72 : vector<3x1x1x1xf32>
    %74 = math.rsqrt %73 : vector<3x1x1x1xf32>
    %75 = vector.broadcast %74 : vector<3x1x1x1xf32> to vector<3x8x8x128xf32>
    %76 = arith.mulf %71, %75 : vector<3x8x8x128xf32>
    %77 = vector.extract_strided_slice %76 {offsets = [0, 0, 0, 0], sizes = [1, 8, 8, 128], strides = [1, 1, 1, 1]} : vector<3x8x8x128xf32> to vector<1x8x8x128xf32>
    %78 = vector.shape_cast %77 : vector<1x8x8x128xf32> to vector<8x8x128xf32>
    %79 = vector.extract_strided_slice %76 {offsets = [1, 0, 0, 0], sizes = [1, 8, 8, 128], strides = [1, 1, 1, 1]} : vector<3x8x8x128xf32> to vector<1x8x8x128xf32>
    %80 = vector.shape_cast %79 : vector<1x8x8x128xf32> to vector<8x8x128xf32>
    %81 = arith.addf %78, %80 : vector<8x8x128xf32>
    %82 = vector.extract_strided_slice %76 {offsets = [2, 0, 0, 0], sizes = [1, 8, 8, 128], strides = [1, 1, 1, 1]} : vector<3x8x8x128xf32> to vector<1x8x8x128xf32>
    %83 = vector.shape_cast %82 : vector<1x8x8x128xf32> to vector<8x8x128xf32>
    %84 = arith.addf %81, %83 : vector<8x8x128xf32>
    %cst_33 = arith.constant dense<0xFF800000> : vector<8x128xf32>
    %85 = vector.multi_reduction <maximumf>, %84, %cst_33 [1] : vector<8x8x128xf32> to vector<8x128xf32>
    %86 = vector.shape_cast %85 : vector<8x128xf32> to vector<8x1x128xf32>
    %87 = vector.broadcast %86 : vector<8x1x128xf32> to vector<8x8x128xf32>
    %88 = arith.subf %84, %87 : vector<8x8x128xf32>
    %89 = math.exp %88 : vector<8x8x128xf32>
    %cst_34 = arith.constant dense<0.000000e+00> : vector<8x128xf32>
    %90 = vector.multi_reduction <add>, %89, %cst_34 [1] : vector<8x8x128xf32> to vector<8x128xf32>
    %91 = vector.shape_cast %90 : vector<8x128xf32> to vector<8x1x128xf32>
    %92 = tpu.reciprocal %91 {approx = true} : vector<8x1x128xf32> -> vector<8x1x128xf32>
    %93 = arith.mulf %91, %92 : vector<8x1x128xf32>
    %cst_35 = arith.constant 2.000000e+00 : f32
    %94 = vector.broadcast %cst_35 : f32 to vector<8x1x128xf32>
    %95 = arith.subf %94, %93 : vector<8x1x128xf32>
    %96 = arith.mulf %92, %95 : vector<8x1x128xf32>
    %97 = vector.broadcast %96 : vector<8x1x128xf32> to vector<8x8x128xf32>
    %98 = arith.mulf %89, %97 : vector<8x8x128xf32>
    %99 = vector.shape_cast %98 : vector<8x8x128xf32> to vector<1x8x8x128xf32>
    %100 = vector.shape_cast %27 : vector<4x8x128xf32> to vector<4x1x8x128xf32>
    %101 = vector.broadcast %99 : vector<1x8x8x128xf32> to vector<4x8x8x128xf32>
    %102 = vector.broadcast %100 : vector<4x1x8x128xf32> to vector<4x8x8x128xf32>
    %103 = arith.mulf %101, %102 : vector<4x8x8x128xf32>
    %cst_36 = arith.constant dense<0.000000e+00> : vector<4x8x128xf32>
    %104 = vector.multi_reduction <add>, %103, %cst_36 [2] : vector<4x8x8x128xf32> to vector<4x8x128xf32>
    %105 = vector.shape_cast %98 : vector<8x8x128xf32> to vector<1x8x8x128xf32>
    %106 = vector.broadcast %105 : vector<1x8x8x128xf32> to vector<4x8x8x128xf32>
    %107 = vector.broadcast %30 : vector<4x8x8x1xf32> to vector<4x8x8x128xf32>
    %108 = arith.mulf %106, %107 : vector<4x8x8x128xf32>
    %cst_37 = arith.constant dense<0.000000e+00> : vector<4x8x128xf32>
    %109 = vector.multi_reduction <add>, %108, %cst_37 [2] : vector<4x8x8x128xf32> to vector<4x8x128xf32>
    %110 = tpu.concatenate %104, %109 in 0 : vector<4x8x128xf32>, vector<4x8x128xf32> -> vector<8x8x128xf32>
    %111 = arith.mulf %110, %110 : vector<8x8x128xf32>
    %cst_38 = arith.constant dense<0.000000e+00> : vector<8x8xf32>
    %112 = vector.multi_reduction <add>, %110, %cst_38 [2] : vector<8x8x128xf32> to vector<8x8xf32>
    %113 = vector.shape_cast %112 : vector<8x8xf32> to vector<8x8x1xf32>
    %cst_39 = arith.constant dense<0.000000e+00> : vector<8x8xf32>
    %114 = vector.multi_reduction <add>, %111, %cst_39 [2] : vector<8x8x128xf32> to vector<8x8xf32>
    %115 = vector.shape_cast %114 : vector<8x8xf32> to vector<8x8x1xf32>
    %cst_40 = arith.constant dense<0.000000e+00> : vector<8x1xf32>
    %116 = vector.multi_reduction <add>, %113, %cst_40 [1] : vector<8x8x1xf32> to vector<8x1xf32>
    %117 = vector.shape_cast %116 : vector<8x1xf32> to vector<8x1x1xf32>
    %cst_41 = arith.constant dense<0.000000e+00> : vector<8x1xf32>
    %118 = vector.multi_reduction <add>, %115, %cst_41 [1] : vector<8x8x1xf32> to vector<8x1xf32>
    %119 = vector.shape_cast %118 : vector<8x1xf32> to vector<8x1x1xf32>
    %cst_42 = arith.constant 9.765625E-4 : f32
    %120 = vector.broadcast %cst_42 : f32 to vector<8x1x1xf32>
    %121 = arith.mulf %117, %120 : vector<8x1x1xf32>
    %cst_43 = arith.constant 9.765625E-4 : f32
    %122 = vector.broadcast %cst_43 : f32 to vector<8x1x1xf32>
    %123 = arith.mulf %119, %122 : vector<8x1x1xf32>
    %124 = arith.mulf %121, %121 : vector<8x1x1xf32>
    %125 = arith.subf %123, %124 : vector<8x1x1xf32>
    %126 = vector.broadcast %121 : vector<8x1x1xf32> to vector<8x8x128xf32>
    %127 = arith.subf %110, %126 : vector<8x8x128xf32>
    %cst_44 = arith.constant 9.99999974E-6 : f32
    %128 = vector.broadcast %cst_44 : f32 to vector<8x1x1xf32>
    %129 = arith.addf %125, %128 : vector<8x1x1xf32>
    %130 = math.rsqrt %129 : vector<8x1x1xf32>
    %131 = vector.broadcast %130 : vector<8x1x1xf32> to vector<8x8x128xf32>
    %132 = arith.mulf %127, %131 : vector<8x8x128xf32>
    %133 = vector.extract_strided_slice %132 {offsets = [0, 0, 0], sizes = [4, 8, 128], strides = [1, 1, 1]} : vector<8x8x128xf32> to vector<4x8x128xf32>
    %134 = vector.extract_strided_slice %132 {offsets = [4, 0, 0], sizes = [4, 8, 128], strides = [1, 1, 1]} : vector<8x8x128xf32> to vector<4x8x128xf32>
    %135 = arith.addf %133, %134 : vector<4x8x128xf32>
    %c0_45 = arith.constant 0 : index
    %c0_46 = arith.constant 0 : index
    %c0_47 = arith.constant 0 : index
    %c0_48 = arith.constant 0 : index
    %136 = vector.load %arg6[%c0_45, %c0_46, %c0_47, %c0_48] : memref<1x4x8x128xf32, #tpu.memory_space<vmem>>, vector<1x4x8x128xf32>
    %137 = vector.shape_cast %136 : vector<1x4x8x128xf32> to vector<4x8x128xf32>
    %138 = vector.shape_cast %135 : vector<4x8x128xf32> to vector<1x4x8x128xf32>
    tpu.vector_store %arg6[%c0_45, %c0_46, %c0_47, %c0_48], %138 {strides = array<i32>} : memref<1x4x8x128xf32, #tpu.memory_space<vmem>>, vector<1x4x8x128xf32>,
    return
  }
  func.func @transform_0(%arg0: i32) -> (i32, i32) {
    %c0_i32 = arith.constant 0 : i32
    %c0_i32_0 = arith.constant 0 : i32
    %c0_i32_1 = arith.constant 0 : i32
    return %c0_i32, %c0_i32_0 : i32, i32
  }
  func.func @transform_1(%arg0: i32) -> (i32, i32, i32) {
    %c0_i32 = arith.constant 0 : i32
    %c0_i32_0 = arith.constant 0 : i32
    %c0_i32_1 = arith.constant 0 : i32
    return %arg0, %c0_i32, %c0_i32_0 : i32, i32, i32
  }
  func.func @transform_2(%arg0: i32) -> (i32, i32, i32, i32) {
    %c0_i32 = arith.constant 0 : i32
    %c0_i32_0 = arith.constant 0 : i32
    %c0_i32_1 = arith.constant 0 : i32
    %c0_i32_2 = arith.constant 0 : i32
    %c0_i32_3 = arith.constant 0 : i32
    return %c0_i32, %c0_i32_0, %c0_i32_1, %c0_i32_2 : i32, i32, i32, i32
  }
  func.func @transform_3(%arg0: i32) -> (i32, i32, i32, i32) {
    %c0_i32 = arith.constant 0 : i32
    %c0_i32_0 = arith.constant 0 : i32
    %c0_i32_1 = arith.constant 0 : i32
    %c0_i32_2 = arith.constant 0 : i32
    %c0_i32_3 = arith.constant 0 : i32
    return %c0_i32, %c0_i32_0, %c0_i32_1, %c0_i32_2 : i32, i32, i32, i32
  }
  func.func @transform_4(%arg0: i32) -> (i32, i32, i32, i32) {
    %c0_i32 = arith.constant 0 : i32
    %c0_i32_0 = arith.constant 0 : i32
    %c0_i32_1 = arith.constant 0 : i32
    %c0_i32_2 = arith.constant 0 : i32
    %c0_i32_3 = arith.constant 0 : i32
    return %c0_i32, %c0_i32_0, %c0_i32_1, %c0_i32_2 : i32, i32, i32, i32
  }
  func.func @transform_5(%arg0: i32) -> (i32, i32, i32, i32) {
    %c0_i32 = arith.constant 0 : i32
    %c0_i32_0 = arith.constant 0 : i32
    %c0_i32_1 = arith.constant 0 : i32
    %c0_i32_2 = arith.constant 0 : i32
    return %arg0, %c0_i32, %c0_i32_0, %c0_i32_1 : i32, i32, i32, i32
  }
}

</mosaic_0001>

<llo_original>
// kernel: tpu_custom_call.1
$region0: #{tpu_custom_call.1}
  #allocation0 [shape = 'u32[]', space=smem, size = 0x4, offset = 0x4, fixed_abs, tag = 'smem constant byte address 0x4 - core index']
  #allocation1 [shape = 'u32[144,128]{1,0:T(1,128)}', space=vmem, size = 0x12000, scoped, tag = 'internal scratch']
  %s0 = inlined_call_operand.vmem [shape: f32[12,1024], index: 0, kind: input, shape index: {}]
  %s1 = inlined_call_operand.vmem [shape: f32[3,8,12], index: 1, kind: input, shape index: {}]
  %s2 = inlined_call_operand.vmem [shape: f32[2,8,8,1], index: 2, kind: input, shape index: {}]
  %s3 = inlined_call_operand.vmem [shape: f32[2,8,8,1], index: 3, kind: input, shape index: {}]
  %s4 = inlined_call_operand.vmem [shape: f32[4,8,8,1], index: 4, kind: input, shape index: {}]
  %s5 = inlined_call_operand.hbm [shape: f32[3,4,8,128], index: 5, kind: output, shape index: {}]
  %s6 = sld [smem:[#allocation0]]
  $region53: #{tpu_custom_call.1} parent=0
    _
  %s8 = ssub.s32 1, %s6
  %s9 = scalar_select 0, %s8, %s6
  $region1: #{tpu_custom_call.1} parent=0
    #allocation2 [shape = 'u8[32768]{0}', space=vmem, size = 0x8000, scoped, tag = 'output window, operand 0']
    #allocation3 [shape = 's32[2]{0}', space=sflag, size = 0x8, scoped, tag = 'scoped memory for tpu_custom_call.1']
    %10 = vsyncpa [#allocation3], 0
    %s11 = scalar_lea.sflag [#allocation3], 1
    %12 = vsyncpa %s11, 0
    loop: start=0, step=1, limit=5
    $region2: #{tpu_custom_call.1} parent=1 // loop_pre_header
      _
    $region3: #{tpu_custom_call.1} parent=1 // loop_header
      %s14 = sphi 0, %s18
      %p15 = scmp.ge.s32.totalorder %s14, 5
      %s22 = sphi 0, %s22
      %s24 = sphi 0, %s22
      %s25 = sphi 0, %s24
      %s39 = sphi 0, %s25
      %s45 = sphi 0, %s47
      %s48 = sphi 0, %s45
      %s49 = sphi 0, %s48
      %s65 = sphi 0, %s49
      %s69 = sphi 0, %s69
      %s71 = sphi 0, %s69
      %s72 = sphi 0, %s71
      %s86 = sphi 0, %s72
      %s90 = sphi 0, %s90
      %s92 = sphi 0, %s90
      %s93 = sphi 0, %s92
      %s107 = sphi 0, %s93
      %s111 = sphi 0, %s111
      %s113 = sphi 0, %s111
      %s114 = sphi 0, %s113
      %s128 = sphi 0, %s114
      %s134 = sphi 0, %s136
      %s137 = sphi 0, %s134
      %s138 = sphi 0, %s137
      %s154 = sphi 0, %s138
    $region4: #{tpu_custom_call.1} parent=1 // loop_header_branch
      %17 = sbr.rel (%p15) target = $region8
    $region5: #{tpu_custom_call.1} parent=1 // loop_body
      %s19 = ssub.s32 %s14, 1
      %s20 = ssub.s32 %s14, 2
      %s21 = sadd.s32 %s14, 1
      %s23 = sadd.s32 %s22, 1
      %p26 = scmp.eq.s32.totalorder %s14, 2
      %p27 = scmp.ne.s32.totalorder %s22, %s24
      %p28 = scmp.eq.s32.totalorder %s14, 0
      %p29 = por %p27, %p28
      %p30 = scmp.ne.s32.totalorder %s22, %s24
      %p31 = scmp.eq.s32.totalorder %s19, 2
      %p32 = por %p30, %p31
      %p33 = scmp.ne.s32.totalorder %s24, %s25
      %p34 = scmp.eq.s32.totalorder %s19, 0
      %p35 = por %p33, %p34
      %p36 = scmp.ne.s32.totalorder %s24, %s25
      %p37 = scmp.eq.s32.totalorder %s20, 2
      %p38 = por %p36, %p37
      %p40 = scmp.ne.s32.totalorder %s25, %s39
      %p41 = scmp.eq.s32.totalorder %s20, 0
      %p42 = por %p40, %p41
      %s43 = ssub.s32 %s14, %s21
      %p44 = scmp.eq.s32.totalorder %s43, 0
      %s46 = sadd.s32 %s45, 1
      %s47 = scalar_select %p44, %s45, %s46
      %p50 = pneg %p44
      %p51 = scmp.eq.s32.totalorder %s14, 2
      %p52 = por %p50, %p51
      %p53 = scmp.ne.s32.totalorder %s45, %s48
      %p54 = scmp.eq.s32.totalorder %s14, 0
      %p55 = por %p53, %p54
      %p56 = scmp.ne.s32.totalorder %s45, %s48
      %p57 = scmp.eq.s32.totalorder %s19, 2
      %p58 = por %p56, %p57
      %p59 = scmp.ne.s32.totalorder %s48, %s49
      %p60 = scmp.eq.s32.totalorder %s19, 0
      %p61 = por %p59, %p60
      %p62 = scmp.ne.s32.totalorder %s48, %s49
      %p63 = scmp.eq.s32.totalorder %s20, 2
      %p64 = por %p62, %p63
      %p66 = scmp.ne.s32.totalorder %s49, %s65
      %p67 = scmp.eq.s32.totalorder %s20, 0
      %p68 = por %p66, %p67
      %s70 = sadd.s32 %s69, 1
      %p73 = scmp.eq.s32.totalorder %s14, 2
      %p74 = scmp.ne.s32.totalorder %s69, %s71
      %p75 = scmp.eq.s32.totalorder %s14, 0
      %p76 = por %p74, %p75
      %p77 = scmp.ne.s32.totalorder %s69, %s71
      %p78 = scmp.eq.s32.totalorder %s19, 2
      %p79 = por %p77, %p78
      %p80 = scmp.ne.s32.totalorder %s71, %s72
      %p81 = scmp.eq.s32.totalorder %s19, 0
      %p82 = por %p80, %p81
      %p83 = scmp.ne.s32.totalorder %s71, %s72
      %p84 = scmp.eq.s32.totalorder %s20, 2
      %p85 = por %p83, %p84
      %p87 = scmp.ne.s32.totalorder %s72, %s86
      %p88 = scmp.eq.s32.totalorder %s20, 0
      %p89 = por %p87, %p88
      %s91 = sadd.s32 %s90, 1
      %p94 = scmp.eq.s32.totalorder %s14, 2
      %p95 = scmp.ne.s32.totalorder %s90, %s92
      %p96 = scmp.eq.s32.totalorder %s14, 0
      %p97 = por %p95, %p96
      %p98 = scmp.ne.s32.totalorder %s90, %s92
      %p99 = scmp.eq.s32.totalorder %s19, 2
      %p100 = por %p98, %p99
      %p101 = scmp.ne.s32.totalorder %s92, %s93
      %p102 = scmp.eq.s32.totalorder %s19, 0
      %p103 = por %p101, %p102
      %p104 = scmp.ne.s32.totalorder %s92, %s93
      %p105 = scmp.eq.s32.totalorder %s20, 2
      %p106 = por %p104, %p105
      %p108 = scmp.ne.s32.totalorder %s93, %s107
      %p109 = scmp.eq.s32.totalorder %s20, 0
      %p110 = por %p108, %p109
      %s112 = sadd.s32 %s111, 1
      %p115 = scmp.eq.s32.totalorder %s14, 2
      %p116 = scmp.ne.s32.totalorder %s111, %s113
      %p117 = scmp.eq.s32.totalorder %s14, 0
      %p118 = por %p116, %p117
      %p119 = scmp.ne.s32.totalorder %s111, %s113
      %p120 = scmp.eq.s32.totalorder %s19, 2
      %p121 = por %p119, %p120
      %p122 = scmp.ne.s32.totalorder %s113, %s114
      %p123 = scmp.eq.s32.totalorder %s19, 0
      %p124 = por %p122, %p123
      %p125 = scmp.ne.s32.totalorder %s113, %s114
      %p126 = scmp.eq.s32.totalorder %s20, 2
      %p127 = por %p125, %p126
      %p129 = scmp.ne.s32.totalorder %s114, %s128
      %p130 = scmp.eq.s32.totalorder %s20, 0
      %p131 = por %p129, %p130
      %s132 = ssub.s32 %s14, %s21
      %p133 = scmp.eq.s32.totalorder %s132, 0
      %s135 = sadd.s32 %s134, 1
      %s136 = scalar_select %p133, %s134, %s135
      %p139 = pneg %p133
      %p140 = scmp.eq.s32.totalorder %s14, 2
      %p141 = por %p139, %p140
      %p142 = scmp.ne.s32.totalorder %s134, %s137
      %p143 = scmp.eq.s32.totalorder %s14, 0
      %p144 = por %p142, %p143
      %p145 = scmp.ne.s32.totalorder %s134, %s137
      %p146 = scmp.eq.s32.totalorder %s19, 2
      %p147 = por %p145, %p146
      %p148 = scmp.ne.s32.totalorder %s137, %s138
      %p149 = scmp.eq.s32.totalorder %s19, 0
      %p150 = por %p148, %p149
      %p151 = scmp.ne.s32.totalorder %s137, %s138
      %p152 = scmp.eq.s32.totalorder %s20, 2
      %p153 = por %p151, %p152
      %p155 = scmp.ne.s32.totalorder %s138, %s154
      %p156 = scmp.eq.s32.totalorder %s20, 0
      %p157 = por %p155, %p156
      %p158 = scmp.le.s32.totalorder 1, %s14
      %p159 = scmp.lt.s32.totalorder %s14, 4
      %p160 = pnand %p158, %p159
      %p161 = pneg %p160
      // Predicated region
      $region9: #{tpu_custom_call.1} parent=5 // pred_check
        _
      $region10: #{tpu_custom_call.1} parent=5 // pred_check_branch
        %163 = sbr.rel (%p160) target = $region12
      $region11: #{tpu_custom_call.1} parent=5 // pred_region
        %s164 = ssub.s32 %s14, 1
        // Predicated region
        $region13: #{tpu_custom_call.1} parent=11 // pred_check
          %p165 = pneg %p35
        $region14: #{tpu_custom_call.1} parent=11 // pred_check_branch
          %167 = sbr.rel (%p165) target = $region16
        $region15: #{tpu_custom_call.1} parent=11 // pred_region
          _
        $region16: #{tpu_custom_call.1} parent=11 // pred_fallthru
          _
        // Predicated region
        $region17: #{tpu_custom_call.1} parent=11 // pred_check
          %p168 = pneg %p82
        $region18: #{tpu_custom_call.1} parent=11 // pred_check_branch
          %170 = sbr.rel (%p168) target = $region20
        $region19: #{tpu_custom_call.1} parent=11 // pred_region
          _
        $region20: #{tpu_custom_call.1} parent=11 // pred_fallthru
          _
        // Predicated region
        $region21: #{tpu_custom_call.1} parent=11 // pred_check
          %p171 = pneg %p103
        $region22: #{tpu_custom_call.1} parent=11 // pred_check_branch
          %173 = sbr.rel (%p171) target = $region24
        $region23: #{tpu_custom_call.1} parent=11 // pred_region
          _
        $region24: #{tpu_custom_call.1} parent=11 // pred_fallthru
          _
        // Predicated region
        $region25: #{tpu_custom_call.1} parent=11 // pred_check
          %p174 = pneg %p124
        $region26: #{tpu_custom_call.1} parent=11 // pred_check_branch
          %176 = sbr.rel (%p174) target = $region28
        $region27: #{tpu_custom_call.1} parent=11 // pred_region
          _
        $region28: #{tpu_custom_call.1} parent=11 // pred_fallthru
          _
      $region12: #{tpu_custom_call.1} parent=5 // pred_fallthru
        _
      %p177 = scmp.lt.s32.totalorder %s14, 3
      // Predicated region
      $region29: #{tpu_custom_call.1} parent=5 // pred_check
        %p178 = pneg %p177
      $region30: #{tpu_custom_call.1} parent=5 // pred_check_branch
        %180 = sbr.rel (%p178) target = $region32
      $region31: #{tpu_custom_call.1} parent=5 // pred_region
        // Predicated region
        $region33: #{tpu_custom_call.1} parent=31 // pred_check
          %p181 = pneg %p55
        $region34: #{tpu_custom_call.1} parent=31 // pred_check_branch
          %183 = sbr.rel (%p181) target = $region36
        $region35: #{tpu_custom_call.1} parent=31 // pred_region
          %p184 = scmp.lt.s32.totalorder %s14, 2
          %s185 = scalar_select %p184, %s14, 2
          %s186 = smul.addr %s185, 8
          %s187 = scalar_lea.vmem %s1, %s186
        $region36: #{tpu_custom_call.1} parent=31 // pred_fallthru
          _
      $region32: #{tpu_custom_call.1} parent=5 // pred_fallthru
        _
      %p188 = scmp.le.s32.totalorder 1, %s14
      %p189 = scmp.lt.s32.totalorder %s14, 4
      %p190 = pnand %p188, %p189
      %p191 = pneg %p190
      // Predicated region
      $region37: #{tpu_custom_call.1} parent=5 // pred_check
        _
      $region38: #{tpu_custom_call.1} parent=5 // pred_check_branch
        %193 = sbr.rel (%p190) target = $region40
      $region39: #{tpu_custom_call.1} parent=5 // pred_region
        %s194 = ssub.s32 %s14, 1
        %p195 = pneg %p35
        %p196 = pneg %p32
        %p197 = scmp.lt.s32.totalorder %s19, 2
        %s198 = scalar_select %p197, %s19, 2
        %s199 = smul.addr %s198, 8
        %s200 = scalar_lea.vmem %s1, %s199
        %p201 = pneg %p61
        %p202 = pneg %p58
        %p203 = pneg %p82
        %p204 = pneg %p79
        %p205 = pneg %p103
        %p206 = pneg %p100
        %p207 = pneg %p124
        %p208 = pneg %p121
        %p209 = pneg %p150
        %p210 = pneg %p147
        %s211 = sand.u32 %s137, 1
        %s212 = scalar_lea.sflag [#allocation3], %s211
        %s213 = sand.u32 %s137, 1
        %s214 = smul.addr %s213, 32
        %s215 = scalar_lea.vmem [#allocation2], %s214
        %p216 = scmp.lt.s32.totalorder %s19, 2
        %s217 = scalar_select %p216, %s19, 2
        %s218 = smul.addr %s217, 8
        %s219 = scalar_lea.vmem %s1, %s218
        %v221 = vld [vmem:[%s219] sm:$0xff]
        %v222 = vpack.c.bf16 %v221, %v221
        %v223 = vld [vmem:[%s0] sm:$0xff]
        %v224 = vld [vmem:[%s0 + $0x8] sm:$0xff]
        %v225 = vld [vmem:[%s0 + $0x10] sm:$0xff]
        %v226 = vld [vmem:[%s0 + $0x18] sm:$0xff]
        %v227 = vld [vmem:[%s0 + $0x20] sm:$0xff]
        %v228 = vld [vmem:[%s0 + $0x28] sm:$0xff]
        %v229 = vld [vmem:[%s0 + $0x30] sm:$0xff]
        %v230 = vld [vmem:[%s0 + $0x38] sm:$0xff]
        %v231 = vld [vmem:[%s0 + $0x40] sm:$0xf]
        %v232 = vld [vmem:[%s0 + $0x48] sm:$0xf]
        %v233 = vld [vmem:[%s0 + $0x50] sm:$0xf]
        %v234 = vld [vmem:[%s0 + $0x58] sm:$0xf]
        %v235 = vld [vmem:[%s0 + $0x60] sm:$0xf]
        %v236 = vld [vmem:[%s0 + $0x68] sm:$0xf]
        %v237 = vld [vmem:[%s0 + $0x70] sm:$0xf]
        %v238 = vld [vmem:[%s0 + $0x78] sm:$0xf]
        %v239 = vpack.c.bf16 %v231, %v223
        %v240 = vpack.c.bf16 %v232, %v224
        %v241 = vpack.c.bf16 %v233, %v225
        %v242 = vpack.c.bf16 %v234, %v226
        %v243 = vpack.c.bf16 %v235, %v227
        %v244 = vpack.c.bf16 %v236, %v228
        %v245 = vpack.c.bf16 %v237, %v229
        %v246 = vpack.c.bf16 %v238, %v230
        %vm247 = vcmask 97280
        %v249 = vsel %vm247, %v222, 0
        %vm251 = vcmask 1045504
        %v253 = vsel %vm251, %v239, 0
        %v256 = vsel %vm251, %v240, 0
        %v259 = vsel %vm251, %v241, 0
        %v262 = vsel %vm251, %v242, 0
        %v265 = vsel %vm251, %v243, 0
        %v268 = vsel %vm251, %v244, 0
        %v271 = vsel %vm251, %v245, 0
        %v274 = vsel %vm251, %v246, 0
        %276 = vmatprep.subr.bf16.mxu0 %v256
        %277 = vmatpush1.bf16.msra.mxu0 %v253
        %278 = vmatprep.subr.bf16.mxu0 0
        %279 = vmatpush1.bf16.msra.mxu0 0
        %280 = vmatprep.subr.bf16.mxu0 0
        %281 = vmatpush1.bf16.msra.mxu0 0
        %282 = vmatprep.subr.bf16.mxu0 0
        %283 = vmatpush1.bf16.msra.mxu0 0
        %284 = vmatprep.subr.bf16.mxu0 0
        %285 = vmatpush1.bf16.msra.mxu0 0
        %286 = vmatprep.subr.bf16.mxu0 0
        %287 = vmatpush1.bf16.msra.mxu0 0
        %288 = vmatprep.subr.bf16.mxu0 0
        %289 = vmatpush1.bf16.msra.mxu0 0
        %290 = vmatprep.subr.bf16.mxu0 0
        %291 = vmatpush1.bf16.msra.mxu0 0
        %292 = vmatprep.subr.bf16.mxu0 0
        %293 = vmatpush1.bf16.msra.mxu0 0
        %294 = vmatprep.subr.bf16.mxu0 0
        %295 = vmatpush1.bf16.msra.mxu0 0
        %296 = vmatprep.subr.bf16.mxu0 0
        %297 = vmatpush1.bf16.msra.mxu0 0
        %298 = vmatprep.subr.bf16.mxu0 0
        %299 = vmatpush1.bf16.msra.mxu0 0
        %300 = vmatprep.subr.bf16.mxu0 0
        %301 = vmatpush1.bf16.msra.mxu0 0
        %302 = vmatprep.subr.bf16.mxu0 0
        %303 = vmatpush1.bf16.msra.mxu0 0
        %304 = vmatprep.subr.bf16.mxu0 0
        %305 = vmatpush1.bf16.msra.mxu0 0
        %306 = vmatprep.subr.bf16.mxu0 0
        %307 = vmatpush1.bf16.msra.mxu0 0
        %308 = vmatprep.mubr.bf16.mxu0 0
        %309 = vmatmul.mubr.bf16.gmra.mrb[0].mxu0 %v249
        %v310 = vpop.f32.mrb[0].mxu0
        %v311 = vadd.f32 0.0, %v310
        %v312 = vpop.f32.mrb[0].mxu0
        %v313 = vadd.f32 0.0, %v312
        %v314 = vpop.f32.mrb[0].mxu0
        %v315 = vpop.f32.mrb[0].mxu0
        %316 = vdwg.mxu0
        %317 = vmatprep.subr.bf16.mxu0 %v262
        %318 = vmatpush1.bf16.msra.mxu0 %v259
        %319 = vmatprep.subr.bf16.mxu0 0
        %320 = vmatpush1.bf16.msra.mxu0 0
        %321 = vmatprep.subr.bf16.mxu0 0
        %322 = vmatpush1.bf16.msra.mxu0 0
        %323 = vmatprep.subr.bf16.mxu0 0
        %324 = vmatpush1.bf16.msra.mxu0 0
        %325 = vmatprep.subr.bf16.mxu0 0
        %326 = vmatpush1.bf16.msra.mxu0 0
        %327 = vmatprep.subr.bf16.mxu0 0
        %328 = vmatpush1.bf16.msra.mxu0 0
        %329 = vmatprep.subr.bf16.mxu0 0
        %330 = vmatpush1.bf16.msra.mxu0 0
        %331 = vmatprep.subr.bf16.mxu0 0
        %332 = vmatpush1.bf16.msra.mxu0 0
        %333 = vmatprep.subr.bf16.mxu0 0
        %334 = vmatpush1.bf16.msra.mxu0 0
        %335 = vmatprep.subr.bf16.mxu0 0
        %336 = vmatpush1.bf16.msra.mxu0 0
        %337 = vmatprep.subr.bf16.mxu0 0
        %338 = vmatpush1.bf16.msra.mxu0 0
        %339 = vmatprep.subr.bf16.mxu0 0
        %340 = vmatpush1.bf16.msra.mxu0 0
        %341 = vmatprep.subr.bf16.mxu0 0
        %342 = vmatpush1.bf16.msra.mxu0 0
        %343 = vmatprep.subr.bf16.mxu0 0
        %344 = vmatpush1.bf16.msra.mxu0 0
        %345 = vmatprep.subr.bf16.mxu0 0
        %346 = vmatpush1.bf16.msra.mxu0 0
        %347 = vmatprep.subr.bf16.mxu0 0
        %348 = vmatpush1.bf16.msra.mxu0 0
        %349 = vmatprep.mubr.bf16.mxu0 0
        %350 = vmatmul.mubr.bf16.gmra.mrb[0].mxu0 %v249
        %v351 = vpop.f32.mrb[0].mxu0
        %v352 = vadd.f32 0.0, %v351
        %v353 = vpop.f32.mrb[0].mxu0
        %v354 = vadd.f32 0.0, %v353
        %v355 = vpop.f32.mrb[0].mxu0
        %v356 = vpop.f32.mrb[0].mxu0
        %357 = vdwg.mxu0
        %358 = vmatprep.subr.bf16.mxu0 %v268
        %359 = vmatpush1.bf16.msra.mxu0 %v265
        %360 = vmatprep.subr.bf16.mxu0 0
        %361 = vmatpush1.bf16.msra.mxu0 0
        %362 = vmatprep.subr.bf16.mxu0 0
        %363 = vmatpush1.bf16.msra.mxu0 0
        %364 = vmatprep.subr.bf16.mxu0 0
        %365 = vmatpush1.bf16.msra.mxu0 0
        %366 = vmatprep.subr.bf16.mxu0 0
        %367 = vmatpush1.bf16.msra.mxu0 0
        %368 = vmatprep.subr.bf16.mxu0 0
        %369 = vmatpush1.bf16.msra.mxu0 0
        %370 = vmatprep.subr.bf16.mxu0 0
        %371 = vmatpush1.bf16.msra.mxu0 0
        %372 = vmatprep.subr.bf16.mxu0 0
        %373 = vmatpush1.bf16.msra.mxu0 0
        %374 = vmatprep.subr.bf16.mxu0 0
        %375 = vmatpush1.bf16.msra.mxu0 0
        %376 = vmatprep.subr.bf16.mxu0 0
        %377 = vmatpush1.bf16.msra.mxu0 0
        %378 = vmatprep.subr.bf16.mxu0 0
        %379 = vmatpush1.bf16.msra.mxu0 0
        %380 = vmatprep.subr.bf16.mxu0 0
        %381 = vmatpush1.bf16.msra.mxu0 0
        %382 = vmatprep.subr.bf16.mxu0 0
        %383 = vmatpush1.bf16.msra.mxu0 0
        %384 = vmatprep.subr.bf16.mxu0 0
        %385 = vmatpush1.bf16.msra.mxu0 0
        %386 = vmatprep.subr.bf16.mxu0 0
        %387 = vmatpush1.bf16.msra.mxu0 0
        %388 = vmatprep.subr.bf16.mxu0 0
        %389 = vmatpush1.bf16.msra.mxu0 0
        %390 = vmatprep.mubr.bf16.mxu0 0
        %391 = vmatmul.mubr.bf16.gmra.mrb[0].mxu0 %v249
        %v392 = vpop.f32.mrb[0].mxu0
        %v393 = vadd.f32 0.0, %v392
        %v394 = vpop.f32.mrb[0].mxu0
        %v395 = vadd.f32 0.0, %v394
        %v396 = vpop.f32.mrb[0].mxu0
        %v397 = vpop.f32.mrb[0].mxu0
        %398 = vdwg.mxu0
        %399 = vmatprep.subr.bf16.mxu0 %v274
        %400 = vmatpush1.bf16.msra.mxu0 %v271
        %401 = vmatprep.subr.bf16.mxu0 0
        %402 = vmatpush1.bf16.msra.mxu0 0
        %403 = vmatprep.subr.bf16.mxu0 0
        %404 = vmatpush1.bf16.msra.mxu0 0
        %405 = vmatprep.subr.bf16.mxu0 0
        %406 = vmatpush1.bf16.msra.mxu0 0
        %407 = vmatprep.subr.bf16.mxu0 0
        %408 = vmatpush1.bf16.msra.mxu0 0
        %409 = vmatprep.subr.bf16.mxu0 0
        %410 = vmatpush1.bf16.msra.mxu0 0
        %411 = vmatprep.subr.bf16.mxu0 0
        %412 = vmatpush1.bf16.msra.mxu0 0
        %413 = vmatprep.subr.bf16.mxu0 0
        %414 = vmatpush1.bf16.msra.mxu0 0
        %415 = vmatprep.subr.bf16.mxu0 0
        %416 = vmatpush1.bf16.msra.mxu0 0
        %417 = vmatprep.subr.bf16.mxu0 0
        %418 = vmatpush1.bf16.msra.mxu0 0
        %419 = vmatprep.subr.bf16.mxu0 0
        %420 = vmatpush1.bf16.msra.mxu0 0
        %421 = vmatprep.subr.bf16.mxu0 0
        %422 = vmatpush1.bf16.msra.mxu0 0
        %423 = vmatprep.subr.bf16.mxu0 0
        %424 = vmatpush1.bf16.msra.mxu0 0
        %425 = vmatprep.subr.bf16.mxu0 0
        %426 = vmatpush1.bf16.msra.mxu0 0
        %427 = vmatprep.subr.bf16.mxu0 0
        %428 = vmatpush1.bf16.msra.mxu0 0
        %429 = vmatprep.subr.bf16.mxu0 0
        %430 = vmatpush1.bf16.msra.mxu0 0
        %431 = vmatprep.mubr.bf16.mxu0 0
        %432 = vmatmul.mubr.bf16.gmra.mrb[0].mxu0 %v249
        %v433 = vpop.f32.mrb[0].mxu0
        %v434 = vadd.f32 0.0, %v433
        %v435 = vpop.f32.mrb[0].mxu0
        %v436 = vadd.f32 0.0, %v435
        %v437 = vpop.f32.mrb[0].mxu0
        %v438 = vpop.f32.mrb[0].mxu0
        %439 = vdwg.mxu0
        %v440 = vmul.f32 %v311, %v311
        %v441 = vmul.f32 %v313, %v313
        %v442 = vmul.f32 %v352, %v352
        %v443 = vmul.f32 %v354, %v354
        %v444 = vmul.f32 %v393, %v393
        %v445 = vmul.f32 %v395, %v395
        %v446 = vmul.f32 %v434, %v434
        %v447 = vmul.f32 %v436, %v436
        %v448 = vadd.f32 %v311, %v313
        %v449 = vadd.f32 %v448, %v352
        %v450 = vadd.f32 %v449, %v354
        %v451 = vadd.f32 %v450, %v393
        %v452 = vadd.f32 %v451, %v395
        %v453 = vadd.f32 %v452, %v434
        %v454 = vadd.f32 %v453, %v436
        %455 = vadd.xlane.f32.xlu0 %v454
        %v456 = vpop.xlane.xlu0 %455
        %v457 = vadd.f32 %v440, %v441
        %v458 = vadd.f32 %v457, %v442
        %v459 = vadd.f32 %v458, %v443
        %v460 = vadd.f32 %v459, %v444
        %v461 = vadd.f32 %v460, %v445
        %v462 = vadd.f32 %v461, %v446
        %v463 = vadd.f32 %v462, %v447
        %464 = vadd.xlane.f32.xlu0 %v463
        %v465 = vpop.xlane.xlu0 %464
        %v466 = vmul.f32 %v456, 0.0009765625
        %v467 = vmul.f32 %v465, 0.0009765625
        %v468 = vmul.f32 %v466, %v466
        %v469 = vsub.f32 %v467, %v468
        %v470 = vsub.f32 %v311, %v466
        %v471 = vsub.f32 %v313, %v466
        %v472 = vsub.f32 %v352, %v466
        %v473 = vsub.f32 %v354, %v466
        %v474 = vsub.f32 %v393, %v466
        %v475 = vsub.f32 %v395, %v466
        %v476 = vsub.f32 %v434, %v466
        %v477 = vsub.f32 %v436, %v466
        %v478 = vadd.f32 %v469, 1e-05
        %v479 = vrsqrt.pop %v478
        %v480 = vmul.f32 %v470, %v479
        %v481 = vmul.f32 %v471, %v479
        %v482 = vmul.f32 %v472, %v479
        %v483 = vmul.f32 %v473, %v479
        %v484 = vmul.f32 %v474, %v479
        %v485 = vmul.f32 %v475, %v479
        %v486 = vmul.f32 %v476, %v479
        %v487 = vmul.f32 %v477, %v479
        %v488 = vcombine.low %v480, %v482
        %v489 = vcombine.high %v480, %v482
        %v491 = vunpack.c.l.s4 1983009808
        %v492 = vunpack.c.0.s8 %v491
        %v493 = vlaneseq
        %v494 = vshrl.u32 %v493, 7
        %v495 = vsub.s32 %v492, %v494
        %v496 = vrot.slane %v488, %v495
        %v498 = vunpack.c.l.s4 1983009808
        %v499 = vunpack.c.0.s8 %v498
        %v500 = vlaneseq
        %v501 = vshrl.u32 %v500, 7
        %v502 = vsub.s32 %v499, %v501
        %v503 = vrot.slane %v489, %v502
        %v504 = vcombine.low %v481, %v483
        %v505 = vcombine.high %v481, %v483
        %v507 = vunpack.c.l.s4 1983009808
        %v508 = vunpack.c.0.s8 %v507
        %v509 = vlaneseq
        %v510 = vshrl.u32 %v509, 7
        %v511 = vsub.s32 %v508, %v510
        %v512 = vrot.slane %v504, %v511
        %v514 = vunpack.c.l.s4 1983009808
        %v515 = vunpack.c.0.s8 %v514
        %v516 = vlaneseq
        %v517 = vshrl.u32 %v516, 7
        %v518 = vsub.s32 %v515, %v517
        %v519 = vrot.slane %v505, %v518
        %v520 = vcombine.low %v484, %v486
        %v521 = vcombine.high %v484, %v486
        %v523 = vunpack.c.l.s4 1983009808
        %v524 = vunpack.c.0.s8 %v523
        %v525 = vlaneseq
        %v526 = vshrl.u32 %v525, 7
        %v527 = vsub.s32 %v524, %v526
        %v528 = vrot.slane %v520, %v527
        %v530 = vunpack.c.l.s4 1983009808
        %v531 = vunpack.c.0.s8 %v530
        %v532 = vlaneseq
        %v533 = vshrl.u32 %v532, 7
        %v534 = vsub.s32 %v531, %v533
        %v535 = vrot.slane %v521, %v534
        %v536 = vcombine.low %v485, %v487
        %v537 = vcombine.high %v485, %v487
        %v539 = vunpack.c.l.s4 1983009808
        %v540 = vunpack.c.0.s8 %v539
        %v541 = vlaneseq
        %v542 = vshrl.u32 %v541, 7
        %v543 = vsub.s32 %v540, %v542
        %v544 = vrot.slane %v536, %v543
        %v546 = vunpack.c.l.s4 1983009808
        %v547 = vunpack.c.0.s8 %v546
        %v548 = vlaneseq
        %v549 = vshrl.u32 %v548, 7
        %v550 = vsub.s32 %v547, %v549
        %v551 = vrot.slane %v537, %v550
        %v552 = vcombine.low %v496, %v512
        %v553 = vcombine.high %v496, %v512
        %v555 = vunpack.c.l.s4 1934713408
        %v556 = vunpack.c.0.s8 %v555
        %v557 = vlaneseq
        %v558 = vshrl.u32 %v557, 7
        %v559 = vsub.s32 %v556, %v558
        %v560 = vrot.slane %v552, %v559
        %v562 = vunpack.c.l.s4 1934713408
        %v563 = vunpack.c.0.s8 %v562
        %v564 = vlaneseq
        %v565 = vshrl.u32 %v564, 7
        %v566 = vsub.s32 %v563, %v565
        %v567 = vrot.slane %v553, %v566
        %v568 = vcombine.low %v503, %v519
        %v569 = vcombine.high %v503, %v519
        %v571 = vunpack.c.l.s4 1934713408
        %v572 = vunpack.c.0.s8 %v571
        %v573 = vlaneseq
        %v574 = vshrl.u32 %v573, 7
        %v575 = vsub.s32 %v572, %v574
        %v576 = vrot.slane %v568, %v575
        %v578 = vunpack.c.l.s4 1934713408
        %v579 = vunpack.c.0.s8 %v578
        %v580 = vlaneseq
        %v581 = vshrl.u32 %v580, 7
        %v582 = vsub.s32 %v579, %v581
        %v583 = vrot.slane %v569, %v582
        %v584 = vcombine.low %v528, %v544
        %v585 = vcombine.high %v528, %v544
        %v587 = vunpack.c.l.s4 1934713408
        %v588 = vunpack.c.0.s8 %v587
        %v589 = vlaneseq
        %v590 = vshrl.u32 %v589, 7
        %v591 = vsub.s32 %v588, %v590
        %v592 = vrot.slane %v584, %v591
        %v594 = vunpack.c.l.s4 1934713408
        %v595 = vunpack.c.0.s8 %v594
        %v596 = vlaneseq
        %v597 = vshrl.u32 %v596, 7
        %v598 = vsub.s32 %v595, %v597
        %v599 = vrot.slane %v585, %v598
        %v600 = vcombine.low %v535, %v551
        %v601 = vcombine.high %v535, %v551
        %v603 = vunpack.c.l.s4 1934713408
        %v604 = vunpack.c.0.s8 %v603
        %v605 = vlaneseq
        %v606 = vshrl.u32 %v605, 7
        %v607 = vsub.s32 %v604, %v606
        %v608 = vrot.slane %v600, %v607
        %v610 = vunpack.c.l.s4 1934713408
        %v611 = vunpack.c.0.s8 %v610
        %v612 = vlaneseq
        %v613 = vshrl.u32 %v612, 7
        %v614 = vsub.s32 %v611, %v613
        %v615 = vrot.slane %v601, %v614
        %v616 = vcombine.low %v560, %v592
        %v617 = vcombine.high %v560, %v592
        %v618 = vcombine.low %v567, %v599
        %v619 = vcombine.high %v567, %v599
        %v620 = vcombine.low %v576, %v608
        %v621 = vcombine.high %v576, %v608
        %v622 = vcombine.low %v583, %v615
        %v623 = vcombine.high %v583, %v615
        %v624 = vld [vmem:[%s2] sm:$0xff]
        %v625 = vld [vmem:[%s2 + $0x8] sm:$0xff]
        %v626 = vld [vmem:[%s2 + $0x10] sm:$0xff]
        %v627 = vld [vmem:[%s2 + $0x18] sm:$0xff]
        %v628 = vld [vmem:[%s2 + $0x20] sm:$0xff]
        %v629 = vld [vmem:[%s2 + $0x28] sm:$0xff]
        %v630 = vld [vmem:[%s2 + $0x30] sm:$0xff]
        %v631 = vld [vmem:[%s2 + $0x38] sm:$0xff]
        %v632 = vld [vmem:[%s2 + $0x40] sm:$0xff]
        %v633 = vld [vmem:[%s2 + $0x48] sm:$0xff]
        %v634 = vld [vmem:[%s2 + $0x50] sm:$0xff]
        %v635 = vld [vmem:[%s2 + $0x58] sm:$0xff]
        %v636 = vld [vmem:[%s2 + $0x60] sm:$0xff]
        %v637 = vld [vmem:[%s2 + $0x68] sm:$0xff]
        %v638 = vld [vmem:[%s2 + $0x70] sm:$0xff]
        %v639 = vld [vmem:[%s2 + $0x78] sm:$0xff]
        %v640 = vld [vmem:[%s3] sm:$0xff]
        %v641 = vld [vmem:[%s3 + $0x8] sm:$0xff]
        %v642 = vld [vmem:[%s3 + $0x10] sm:$0xff]
        %v643 = vld [vmem:[%s3 + $0x18] sm:$0xff]
        %v644 = vld [vmem:[%s3 + $0x20] sm:$0xff]
        %v645 = vld [vmem:[%s3 + $0x28] sm:$0xff]
        %v646 = vld [vmem:[%s3 + $0x30] sm:$0xff]
        %v647 = vld [vmem:[%s3 + $0x38] sm:$0xff]
        %v648 = vld [vmem:[%s3 + $0x40] sm:$0xff]
        %v649 = vld [vmem:[%s3 + $0x48] sm:$0xff]
        %v650 = vld [vmem:[%s3 + $0x50] sm:$0xff]
        %v651 = vld [vmem:[%s3 + $0x58] sm:$0xff]
        %v652 = vld [vmem:[%s3 + $0x60] sm:$0xff]
        %v653 = vld [vmem:[%s3 + $0x68] sm:$0xff]
        %v654 = vld [vmem:[%s3 + $0x70] sm:$0xff]
        %v655 = vld [vmem:[%s3 + $0x78] sm:$0xff]
        %v656 = vld [vmem:[%s4] sm:$0xff]
        %v657 = vld [vmem:[%s4 + $0x8] sm:$0xff]
        %v658 = vld [vmem:[%s4 + $0x10] sm:$0xff]
        %v659 = vld [vmem:[%s4 + $0x18] sm:$0xff]
        %v660 = vld [vmem:[%s4 + $0x20] sm:$0xff]
        %v661 = vld [vmem:[%s4 + $0x28] sm:$0xff]
        %v662 = vld [vmem:[%s4 + $0x30] sm:$0xff]
        %v663 = vld [vmem:[%s4 + $0x38] sm:$0xff]
        %v664 = vld [vmem:[%s4 + $0x40] sm:$0xff]
        %v665 = vld [vmem:[%s4 + $0x48] sm:$0xff]
        %v666 = vld [vmem:[%s4 + $0x50] sm:$0xff]
        %v667 = vld [vmem:[%s4 + $0x58] sm:$0xff]
        %v668 = vld [vmem:[%s4 + $0x60] sm:$0xff]
        %v669 = vld [vmem:[%s4 + $0x68] sm:$0xff]
        %v670 = vld [vmem:[%s4 + $0x70] sm:$0xff]
        %v671 = vld [vmem:[%s4 + $0x78] sm:$0xff]
        %v672 = vld [vmem:[%s4 + $0x80] sm:$0xff]
        %v673 = vld [vmem:[%s4 + $0x88] sm:$0xff]
        %v674 = vld [vmem:[%s4 + $0x90] sm:$0xff]
        %v675 = vld [vmem:[%s4 + $0x98] sm:$0xff]
        %v676 = vld [vmem:[%s4 + $0xa0] sm:$0xff]
        %v677 = vld [vmem:[%s4 + $0xa8] sm:$0xff]
        %v678 = vld [vmem:[%s4 + $0xb0] sm:$0xff]
        %v679 = vld [vmem:[%s4 + $0xb8] sm:$0xff]
        %v680 = vld [vmem:[%s4 + $0xc0] sm:$0xff]
        %v681 = vld [vmem:[%s4 + $0xc8] sm:$0xff]
        %v682 = vld [vmem:[%s4 + $0xd0] sm:$0xff]
        %v683 = vld [vmem:[%s4 + $0xd8] sm:$0xff]
        %v684 = vld [vmem:[%s4 + $0xe0] sm:$0xff]
        %v685 = vld [vmem:[%s4 + $0xe8] sm:$0xff]
        %v686 = vld [vmem:[%s4 + $0xf0] sm:$0xff]
        %v687 = vld [vmem:[%s4 + $0xf8] sm:$0xff]
        %v690 = vcombine.high %v616, %v616
        %v692 = vunpack.c.l.s4 1966171168
        %v693 = vunpack.c.0.s8 %v692
        %v694 = vlaneseq
        %v695 = vshrl.u32 %v694, 7
        %v696 = vsub.s32 %v693, %v695
        %v697 = vrot.slane %v616, %v696
        %v699 = vunpack.c.l.s4 1966171168
        %v700 = vunpack.c.0.s8 %v699
        %v701 = vlaneseq
        %v702 = vshrl.u32 %v701, 7
        %v703 = vsub.s32 %v700, %v702
        %v704 = vrot.slane %v690, %v703
        %v705 = vcombine.high %v697, %v697
        %v706 = vcombine.high %v704, %v704
        %v708 = vunpack.c.l.s4 1966171168
        %v709 = vunpack.c.0.s8 %v708
        %v710 = vlaneseq
        %v711 = vshrl.u32 %v710, 7
        %v712 = vsub.s32 %v709, %v711
        %v713 = vrot.slane %v697, %v712
        %v715 = vunpack.c.l.s4 1966171168
        %v716 = vunpack.c.0.s8 %v715
        %v717 = vlaneseq
        %v718 = vshrl.u32 %v717, 7
        %v719 = vsub.s32 %v716, %v718
        %v720 = vrot.slane %v704, %v719
        %v722 = vunpack.c.l.s4 1966171168
        %v723 = vunpack.c.0.s8 %v722
        %v724 = vlaneseq
        %v725 = vshrl.u32 %v724, 7
        %v726 = vsub.s32 %v723, %v725
        %v727 = vrot.slane %v705, %v726
        %v729 = vunpack.c.l.s4 1966171168
        %v730 = vunpack.c.0.s8 %v729
        %v731 = vlaneseq
        %v732 = vshrl.u32 %v731, 7
        %v733 = vsub.s32 %v730, %v732
        %v734 = vrot.slane %v706, %v733
        %v735 = vcombine.high %v713, %v713
        %v736 = vcombine.high %v720, %v720
        %v737 = vcombine.high %v727, %v727
        %v738 = vcombine.high %v734, %v734
        %v739 = vcombine.high %v617, %v617
        %v741 = vunpack.c.l.s4 1966171168
        %v742 = vunpack.c.0.s8 %v741
        %v743 = vlaneseq
        %v744 = vshrl.u32 %v743, 7
        %v745 = vsub.s32 %v742, %v744
        %v746 = vrot.slane %v617, %v745
        %v748 = vunpack.c.l.s4 1966171168
        %v749 = vunpack.c.0.s8 %v748
        %v750 = vlaneseq
        %v751 = vshrl.u32 %v750, 7
        %v752 = vsub.s32 %v749, %v751
        %v753 = vrot.slane %v739, %v752
        %v754 = vcombine.high %v746, %v746
        %v755 = vcombine.high %v753, %v753
        %v757 = vunpack.c.l.s4 1966171168
        %v758 = vunpack.c.0.s8 %v757
        %v759 = vlaneseq
        %v760 = vshrl.u32 %v759, 7
        %v761 = vsub.s32 %v758, %v760
        %v762 = vrot.slane %v746, %v761
        %v764 = vunpack.c.l.s4 1966171168
        %v765 = vunpack.c.0.s8 %v764
        %v766 = vlaneseq
        %v767 = vshrl.u32 %v766, 7
        %v768 = vsub.s32 %v765, %v767
        %v769 = vrot.slane %v753, %v768
        %v771 = vunpack.c.l.s4 1966171168
        %v772 = vunpack.c.0.s8 %v771
        %v773 = vlaneseq
        %v774 = vshrl.u32 %v773, 7
        %v775 = vsub.s32 %v772, %v774
        %v776 = vrot.slane %v754, %v775
        %v778 = vunpack.c.l.s4 1966171168
        %v779 = vunpack.c.0.s8 %v778
        %v780 = vlaneseq
        %v781 = vshrl.u32 %v780, 7
        %v782 = vsub.s32 %v779, %v781
        %v783 = vrot.slane %v755, %v782
        %v784 = vcombine.high %v762, %v762
        %v785 = vcombine.high %v769, %v769
        %v786 = vcombine.high %v776, %v776
        %v787 = vcombine.high %v783, %v783
        %v788 = vlaneseq
        %v789 = vshrl.u32 %v788, 7
        %v790 = vsub.s32 0, %v789
        %v791 = vrot.slane %v713, %v790
        %v792 = vlaneseq
        %v793 = vshrl.u32 %v792, 7
        %v794 = vsub.s32 0, %v793
        %v795 = vrot.slane %v727, %v794
        %v796 = vlaneseq
        %v797 = vshrl.u32 %v796, 7
        %v798 = vsub.s32 0, %v797
        %v799 = vrot.slane %v735, %v798
        %v800 = vlaneseq
        %v801 = vshrl.u32 %v800, 7
        %v802 = vsub.s32 0, %v801
        %v803 = vrot.slane %v737, %v802
        %v804 = vlaneseq
        %v805 = vshrl.u32 %v804, 7
        %v806 = vsub.s32 0, %v805
        %v807 = vrot.slane %v720, %v806
        %v808 = vlaneseq
        %v809 = vshrl.u32 %v808, 7
        %v810 = vsub.s32 0, %v809
        %v811 = vrot.slane %v734, %v810
        %v812 = vlaneseq
        %v813 = vshrl.u32 %v812, 7
        %v814 = vsub.s32 0, %v813
        %v815 = vrot.slane %v736, %v814
        %v816 = vlaneseq
        %v817 = vshrl.u32 %v816, 7
        %v818 = vsub.s32 0, %v817
        %v819 = vrot.slane %v738, %v818
        %v820 = vlaneseq
        %v821 = vshrl.u32 %v820, 7
        %v822 = vsub.s32 0, %v821
        %v823 = vrot.slane %v762, %v822
        %v824 = vlaneseq
        %v825 = vshrl.u32 %v824, 7
        %v826 = vsub.s32 0, %v825
        %v827 = vrot.slane %v776, %v826
        %v828 = vlaneseq
        %v829 = vshrl.u32 %v828, 7
        %v830 = vsub.s32 0, %v829
        %v831 = vrot.slane %v784, %v830
        %v832 = vlaneseq
        %v833 = vshrl.u32 %v832, 7
        %v834 = vsub.s32 0, %v833
        %v835 = vrot.slane %v786, %v834
        %v836 = vlaneseq
        %v837 = vshrl.u32 %v836, 7
        %v838 = vsub.s32 0, %v837
        %v839 = vrot.slane %v769, %v838
        %v840 = vlaneseq
        %v841 = vshrl.u32 %v840, 7
        %v842 = vsub.s32 0, %v841
        %v843 = vrot.slane %v783, %v842
        %v844 = vlaneseq
        %v845 = vshrl.u32 %v844, 7
        %v846 = vsub.s32 0, %v845
        %v847 = vrot.slane %v785, %v846
        %v848 = vlaneseq
        %v849 = vshrl.u32 %v848, 7
        %v850 = vsub.s32 0, %v849
        %v851 = vrot.slane %v787, %v850
        %v868 = vmul.f32 %v791, %v618
        %v869 = vmul.f32 %v795, %v618
        %v870 = vmul.f32 %v799, %v618
        %v871 = vmul.f32 %v803, %v618
        %v872 = vmul.f32 %v807, %v618
        %v873 = vmul.f32 %v811, %v618
        %v874 = vmul.f32 %v815, %v618
        %v875 = vmul.f32 %v819, %v618
        %v876 = vmul.f32 %v823, %v619
        %v877 = vmul.f32 %v827, %v619
        %v878 = vmul.f32 %v831, %v619
        %v879 = vmul.f32 %v835, %v619
        %v880 = vmul.f32 %v839, %v619
        %v881 = vmul.f32 %v843, %v619
        %v882 = vmul.f32 %v847, %v619
        %v883 = vmul.f32 %v851, %v619
        %v884 = vadd.f32 %v868, %v876
        %v885 = vadd.f32 %v869, %v877
        %v886 = vadd.f32 %v870, %v878
        %v887 = vadd.f32 %v871, %v879
        %v888 = vadd.f32 %v872, %v880
        %v889 = vadd.f32 %v873, %v881
        %v890 = vadd.f32 %v874, %v882
        %v891 = vadd.f32 %v875, %v883
        %893 = vset.pattern.permute.xlu0 0
        %894 = vperm.xlu0 %893, %v624
        %v895 = vpop.permute.xlu0 %894
        %898 = vset.pattern.permute.xlu0 0
        %899 = vperm.xlu0 %898, %v625
        %v900 = vpop.permute.xlu0 %899
        %903 = vset.pattern.permute.xlu0 0
        %904 = vperm.xlu0 %903, %v626
        %v905 = vpop.permute.xlu0 %904
        %908 = vset.pattern.permute.xlu0 0
        %909 = vperm.xlu0 %908, %v627
        %v910 = vpop.permute.xlu0 %909
        %913 = vset.pattern.permute.xlu0 0
        %914 = vperm.xlu0 %913, %v628
        %v915 = vpop.permute.xlu0 %914
        %918 = vset.pattern.permute.xlu0 0
        %919 = vperm.xlu0 %918, %v629
        %v920 = vpop.permute.xlu0 %919
        %923 = vset.pattern.permute.xlu0 0
        %924 = vperm.xlu0 %923, %v630
        %v925 = vpop.permute.xlu0 %924
        %928 = vset.pattern.permute.xlu0 0
        %929 = vperm.xlu0 %928, %v631
        %v930 = vpop.permute.xlu0 %929
        %933 = vset.pattern.permute.xlu0 0
        %934 = vperm.xlu0 %933, %v632
        %v935 = vpop.permute.xlu0 %934
        %938 = vset.pattern.permute.xlu0 0
        %939 = vperm.xlu0 %938, %v633
        %v940 = vpop.permute.xlu0 %939
        %943 = vset.pattern.permute.xlu0 0
        %944 = vperm.xlu0 %943, %v634
        %v945 = vpop.permute.xlu0 %944
        %948 = vset.pattern.permute.xlu0 0
        %949 = vperm.xlu0 %948, %v635
        %v950 = vpop.permute.xlu0 %949
        %953 = vset.pattern.permute.xlu0 0
        %954 = vperm.xlu0 %953, %v636
        %v955 = vpop.permute.xlu0 %954
        %958 = vset.pattern.permute.xlu0 0
        %959 = vperm.xlu0 %958, %v637
        %v960 = vpop.permute.xlu0 %959
        %963 = vset.pattern.permute.xlu0 0
        %964 = vperm.xlu0 %963, %v638
        %v965 = vpop.permute.xlu0 %964
        %968 = vset.pattern.permute.xlu0 0
        %969 = vperm.xlu0 %968, %v639
        %v970 = vpop.permute.xlu0 %969
        %v972 = vmul.f32 %v791, %v895
        %v973 = vmul.f32 %v795, %v900
        %v974 = vmul.f32 %v799, %v905
        %v975 = vmul.f32 %v803, %v910
        %v976 = vmul.f32 %v807, %v915
        %v977 = vmul.f32 %v811, %v920
        %v978 = vmul.f32 %v815, %v925
        %v979 = vmul.f32 %v819, %v930
        %v980 = vmul.f32 %v823, %v935
        %v981 = vmul.f32 %v827, %v940
        %v982 = vmul.f32 %v831, %v945
        %v983 = vmul.f32 %v835, %v950
        %v984 = vmul.f32 %v839, %v955
        %v985 = vmul.f32 %v843, %v960
        %v986 = vmul.f32 %v847, %v965
        %v987 = vmul.f32 %v851, %v970
        %v988 = vadd.f32 %v972, %v980
        %v989 = vadd.f32 %v973, %v981
        %v990 = vadd.f32 %v974, %v982
        %v991 = vadd.f32 %v975, %v983
        %v992 = vadd.f32 %v976, %v984
        %v993 = vadd.f32 %v977, %v985
        %v994 = vadd.f32 %v978, %v986
        %v995 = vadd.f32 %v979, %v987
        %997 = vset.pattern.permute.xlu0 0
        %998 = vperm.xlu0 %997, %v640
        %v999 = vpop.permute.xlu0 %998
        %1002 = vset.pattern.permute.xlu0 0
        %1003 = vperm.xlu0 %1002, %v641
        %v1004 = vpop.permute.xlu0 %1003
        %1007 = vset.pattern.permute.xlu0 0
        %1008 = vperm.xlu0 %1007, %v642
        %v1009 = vpop.permute.xlu0 %1008
        %1012 = vset.pattern.permute.xlu0 0
        %1013 = vperm.xlu0 %1012, %v643
        %v1014 = vpop.permute.xlu0 %1013
        %1017 = vset.pattern.permute.xlu0 0
        %1018 = vperm.xlu0 %1017, %v644
        %v1019 = vpop.permute.xlu0 %1018
        %1022 = vset.pattern.permute.xlu0 0
        %1023 = vperm.xlu0 %1022, %v645
        %v1024 = vpop.permute.xlu0 %1023
        %1027 = vset.pattern.permute.xlu0 0
        %1028 = vperm.xlu0 %1027, %v646
        %v1029 = vpop.permute.xlu0 %1028
        %1032 = vset.pattern.permute.xlu0 0
        %1033 = vperm.xlu0 %1032, %v647
        %v1034 = vpop.permute.xlu0 %1033
        %1037 = vset.pattern.permute.xlu0 0
        %1038 = vperm.xlu0 %1037, %v648
        %v1039 = vpop.permute.xlu0 %1038
        %1042 = vset.pattern.permute.xlu0 0
        %1043 = vperm.xlu0 %1042, %v649
        %v1044 = vpop.permute.xlu0 %1043
        %1047 = vset.pattern.permute.xlu0 0
        %1048 = vperm.xlu0 %1047, %v650
        %v1049 = vpop.permute.xlu0 %1048
        %1052 = vset.pattern.permute.xlu0 0
        %1053 = vperm.xlu0 %1052, %v651
        %v1054 = vpop.permute.xlu0 %1053
        %1057 = vset.pattern.permute.xlu0 0
        %1058 = vperm.xlu0 %1057, %v652
        %v1059 = vpop.permute.xlu0 %1058
        %1062 = vset.pattern.permute.xlu0 0
        %1063 = vperm.xlu0 %1062, %v653
        %v1064 = vpop.permute.xlu0 %1063
        %1067 = vset.pattern.permute.xlu0 0
        %1068 = vperm.xlu0 %1067, %v654
        %v1069 = vpop.permute.xlu0 %1068
        %1072 = vset.pattern.permute.xlu0 0
        %1073 = vperm.xlu0 %1072, %v655
        %v1074 = vpop.permute.xlu0 %1073
        %v1076 = vmul.f32 %v618, %v999
        %v1077 = vmul.f32 %v618, %v1004
        %v1078 = vmul.f32 %v618, %v1009
        %v1079 = vmul.f32 %v618, %v1014
        %v1080 = vmul.f32 %v618, %v1019
        %v1081 = vmul.f32 %v618, %v1024
        %v1082 = vmul.f32 %v618, %v1029
        %v1083 = vmul.f32 %v618, %v1034
        %v1084 = vmul.f32 %v619, %v1039
        %v1085 = vmul.f32 %v619, %v1044
        %v1086 = vmul.f32 %v619, %v1049
        %v1087 = vmul.f32 %v619, %v1054
        %v1088 = vmul.f32 %v619, %v1059
        %v1089 = vmul.f32 %v619, %v1064
        %v1090 = vmul.f32 %v619, %v1069
        %v1091 = vmul.f32 %v619, %v1074
        %v1092 = vadd.f32 %v1076, %v1084
        %v1093 = vadd.f32 %v1077, %v1085
        %v1094 = vadd.f32 %v1078, %v1086
        %v1095 = vadd.f32 %v1079, %v1087
        %v1096 = vadd.f32 %v1080, %v1088
        %v1097 = vadd.f32 %v1081, %v1089
        %v1098 = vadd.f32 %v1082, %v1090
        %v1099 = vadd.f32 %v1083, %v1091
        %v1100 = vmul.f32 %v884, %v884
        %v1101 = vmul.f32 %v885, %v885
        %v1102 = vmul.f32 %v886, %v886
        %v1103 = vmul.f32 %v887, %v887
        %v1104 = vmul.f32 %v888, %v888
        %v1105 = vmul.f32 %v889, %v889
        %v1106 = vmul.f32 %v890, %v890
        %v1107 = vmul.f32 %v891, %v891
        %v1108 = vmul.f32 %v988, %v988
        %v1109 = vmul.f32 %v989, %v989
        %v1110 = vmul.f32 %v990, %v990
        %v1111 = vmul.f32 %v991, %v991
        %v1112 = vmul.f32 %v992, %v992
        %v1113 = vmul.f32 %v993, %v993
        %v1114 = vmul.f32 %v994, %v994
        %v1115 = vmul.f32 %v995, %v995
        %v1116 = vmul.f32 %v1092, %v1092
        %v1117 = vmul.f32 %v1093, %v1093
        %v1118 = vmul.f32 %v1094, %v1094
        %v1119 = vmul.f32 %v1095, %v1095
        %v1120 = vmul.f32 %v1096, %v1096
        %v1121 = vmul.f32 %v1097, %v1097
        %v1122 = vmul.f32 %v1098, %v1098
        %v1123 = vmul.f32 %v1099, %v1099
        %1124 = vadd.xlane.f32.xlu0 %v884
        %v1125 = vpop.xlane.xlu0 %1124
        %1126 = vadd.xlane.f32.xlu0 %v885
        %v1127 = vpop.xlane.xlu0 %1126
        %1128 = vadd.xlane.f32.xlu0 %v886
        %v1129 = vpop.xlane.xlu0 %1128
        %1130 = vadd.xlane.f32.xlu0 %v887
        %v1131 = vpop.xlane.xlu0 %1130
        %1132 = vadd.xlane.f32.xlu0 %v888
        %v1133 = vpop.xlane.xlu0 %1132
        %1134 = vadd.xlane.f32.xlu0 %v889
        %v1135 = vpop.xlane.xlu0 %1134
        %1136 = vadd.xlane.f32.xlu0 %v890
        %v1137 = vpop.xlane.xlu0 %1136
        %1138 = vadd.xlane.f32.xlu0 %v891
        %v1139 = vpop.xlane.xlu0 %1138
        %1140 = vadd.xlane.f32.xlu0 %v988
        %v1141 = vpop.xlane.xlu0 %1140
        %1142 = vadd.xlane.f32.xlu0 %v989
        %v1143 = vpop.xlane.xlu0 %1142
        %1144 = vadd.xlane.f32.xlu0 %v990
        %v1145 = vpop.xlane.xlu0 %1144
        %1146 = vadd.xlane.f32.xlu0 %v991
        %v1147 = vpop.xlane.xlu0 %1146
        %1148 = vadd.xlane.f32.xlu0 %v992
        %v1149 = vpop.xlane.xlu0 %1148
        %1150 = vadd.xlane.f32.xlu0 %v993
        %v1151 = vpop.xlane.xlu0 %1150
        %1152 = vadd.xlane.f32.xlu0 %v994
        %v1153 = vpop.xlane.xlu0 %1152
        %1154 = vadd.xlane.f32.xlu0 %v995
        %v1155 = vpop.xlane.xlu0 %1154
        %1156 = vadd.xlane.f32.xlu0 %v1092
        %v1157 = vpop.xlane.xlu0 %1156
        %1158 = vadd.xlane.f32.xlu0 %v1093
        %v1159 = vpop.xlane.xlu0 %1158
        %1160 = vadd.xlane.f32.xlu0 %v1094
        %v1161 = vpop.xlane.xlu0 %1160
        %1162 = vadd.xlane.f32.xlu0 %v1095
        %v1163 = vpop.xlane.xlu0 %1162
        %1164 = vadd.xlane.f32.xlu0 %v1096
        %v1165 = vpop.xlane.xlu0 %1164
        %1166 = vadd.xlane.f32.xlu0 %v1097
        %v1167 = vpop.xlane.xlu0 %1166
        %1168 = vadd.xlane.f32.xlu0 %v1098
        %v1169 = vpop.xlane.xlu0 %1168
        %1170 = vadd.xlane.f32.xlu0 %v1099
        %v1171 = vpop.xlane.xlu0 %1170
        %1172 = vadd.xlane.f32.xlu0 %v1100
        %v1173 = vpop.xlane.xlu0 %1172
        %1174 = vadd.xlane.f32.xlu0 %v1101
        %v1175 = vpop.xlane.xlu0 %1174
        %1176 = vadd.xlane.f32.xlu0 %v1102
        %v1177 = vpop.xlane.xlu0 %1176
        %1178 = vadd.xlane.f32.xlu0 %v1103
        %v1179 = vpop.xlane.xlu0 %1178
        %1180 = vadd.xlane.f32.xlu0 %v1104
        %v1181 = vpop.xlane.xlu0 %1180
        %1182 = vadd.xlane.f32.xlu0 %v1105
        %v1183 = vpop.xlane.xlu0 %1182
        %1184 = vadd.xlane.f32.xlu0 %v1106
        %v1185 = vpop.xlane.xlu0 %1184
        %1186 = vadd.xlane.f32.xlu0 %v1107
        %v1187 = vpop.xlane.xlu0 %1186
        %1188 = vadd.xlane.f32.xlu0 %v1108
        %v1189 = vpop.xlane.xlu0 %1188
        %1190 = vadd.xlane.f32.xlu0 %v1109
        %v1191 = vpop.xlane.xlu0 %1190
        %1192 = vadd.xlane.f32.xlu0 %v1110
        %v1193 = vpop.xlane.xlu0 %1192
        %1194 = vadd.xlane.f32.xlu0 %v1111
        %v1195 = vpop.xlane.xlu0 %1194
        %1196 = vadd.xlane.f32.xlu0 %v1112
        %v1197 = vpop.xlane.xlu0 %1196
        %1198 = vadd.xlane.f32.xlu0 %v1113
        %v1199 = vpop.xlane.xlu0 %1198
        %1200 = vadd.xlane.f32.xlu0 %v1114
        %v1201 = vpop.xlane.xlu0 %1200
        %1202 = vadd.xlane.f32.xlu0 %v1115
        %v1203 = vpop.xlane.xlu0 %1202
        %1204 = vadd.xlane.f32.xlu0 %v1116
        %v1205 = vpop.xlane.xlu0 %1204
        %1206 = vadd.xlane.f32.xlu0 %v1117
        %v1207 = vpop.xlane.xlu0 %1206
        %1208 = vadd.xlane.f32.xlu0 %v1118
        %v1209 = vpop.xlane.xlu0 %1208
        %1210 = vadd.xlane.f32.xlu0 %v1119
        %v1211 = vpop.xlane.xlu0 %1210
        %1212 = vadd.xlane.f32.xlu0 %v1120
        %v1213 = vpop.xlane.xlu0 %1212
        %1214 = vadd.xlane.f32.xlu0 %v1121
        %v1215 = vpop.xlane.xlu0 %1214
        %1216 = vadd.xlane.f32.xlu0 %v1122
        %v1217 = vpop.xlane.xlu0 %1216
        %1218 = vadd.xlane.f32.xlu0 %v1123
        %v1219 = vpop.xlane.xlu0 %1218
        %v1220 = vrot.slane %v1125, 4
        %v1221 = vadd.f32 %v1125, %v1220
        %v1222 = vrot.slane %v1221, 2
        %v1223 = vadd.f32 %v1221, %v1222
        %v1224 = vrot.slane %v1223, 1
        %v1225 = vadd.f32 %v1223, %v1224
        %v1226 = vrot.slane %v1127, 4
        %v1227 = vadd.f32 %v1127, %v1226
        %v1228 = vrot.slane %v1227, 2
        %v1229 = vadd.f32 %v1227, %v1228
        %v1230 = vrot.slane %v1229, 1
        %v1231 = vadd.f32 %v1229, %v1230
        %v1232 = vrot.slane %v1129, 4
        %v1233 = vadd.f32 %v1129, %v1232
        %v1234 = vrot.slane %v1233, 2
        %v1235 = vadd.f32 %v1233, %v1234
        %v1236 = vrot.slane %v1235, 1
        %v1237 = vadd.f32 %v1235, %v1236
        %v1238 = vrot.slane %v1131, 4
        %v1239 = vadd.f32 %v1131, %v1238
        %v1240 = vrot.slane %v1239, 2
        %v1241 = vadd.f32 %v1239, %v1240
        %v1242 = vrot.slane %v1241, 1
        %v1243 = vadd.f32 %v1241, %v1242
        %v1244 = vrot.slane %v1133, 4
        %v1245 = vadd.f32 %v1133, %v1244
        %v1246 = vrot.slane %v1245, 2
        %v1247 = vadd.f32 %v1245, %v1246
        %v1248 = vrot.slane %v1247, 1
        %v1249 = vadd.f32 %v1247, %v1248
        %v1250 = vrot.slane %v1135, 4
        %v1251 = vadd.f32 %v1135, %v1250
        %v1252 = vrot.slane %v1251, 2
        %v1253 = vadd.f32 %v1251, %v1252
        %v1254 = vrot.slane %v1253, 1
        %v1255 = vadd.f32 %v1253, %v1254
        %v1256 = vrot.slane %v1137, 4
        %v1257 = vadd.f32 %v1137, %v1256
        %v1258 = vrot.slane %v1257, 2
        %v1259 = vadd.f32 %v1257, %v1258
        %v1260 = vrot.slane %v1259, 1
        %v1261 = vadd.f32 %v1259, %v1260
        %v1262 = vrot.slane %v1139, 4
        %v1263 = vadd.f32 %v1139, %v1262
        %v1264 = vrot.slane %v1263, 2
        %v1265 = vadd.f32 %v1263, %v1264
        %v1266 = vrot.slane %v1265, 1
        %v1267 = vadd.f32 %v1265, %v1266
        %v1268 = vrot.slane %v1141, 4
        %v1269 = vadd.f32 %v1141, %v1268
        %v1270 = vrot.slane %v1269, 2
        %v1271 = vadd.f32 %v1269, %v1270
        %v1272 = vrot.slane %v1271, 1
        %v1273 = vadd.f32 %v1271, %v1272
        %v1274 = vrot.slane %v1143, 4
        %v1275 = vadd.f32 %v1143, %v1274
        %v1276 = vrot.slane %v1275, 2
        %v1277 = vadd.f32 %v1275, %v1276
        %v1278 = vrot.slane %v1277, 1
        %v1279 = vadd.f32 %v1277, %v1278
        %v1280 = vrot.slane %v1145, 4
        %v1281 = vadd.f32 %v1145, %v1280
        %v1282 = vrot.slane %v1281, 2
        %v1283 = vadd.f32 %v1281, %v1282
        %v1284 = vrot.slane %v1283, 1
        %v1285 = vadd.f32 %v1283, %v1284
        %v1286 = vrot.slane %v1147, 4
        %v1287 = vadd.f32 %v1147, %v1286
        %v1288 = vrot.slane %v1287, 2
        %v1289 = vadd.f32 %v1287, %v1288
        %v1290 = vrot.slane %v1289, 1
        %v1291 = vadd.f32 %v1289, %v1290
        %v1292 = vrot.slane %v1149, 4
        %v1293 = vadd.f32 %v1149, %v1292
        %v1294 = vrot.slane %v1293, 2
        %v1295 = vadd.f32 %v1293, %v1294
        %v1296 = vrot.slane %v1295, 1
        %v1297 = vadd.f32 %v1295, %v1296
        %v1298 = vrot.slane %v1151, 4
        %v1299 = vadd.f32 %v1151, %v1298
        %v1300 = vrot.slane %v1299, 2
        %v1301 = vadd.f32 %v1299, %v1300
        %v1302 = vrot.slane %v1301, 1
        %v1303 = vadd.f32 %v1301, %v1302
        %v1304 = vrot.slane %v1153, 4
        %v1305 = vadd.f32 %v1153, %v1304
        %v1306 = vrot.slane %v1305, 2
        %v1307 = vadd.f32 %v1305, %v1306
        %v1308 = vrot.slane %v1307, 1
        %v1309 = vadd.f32 %v1307, %v1308
        %v1310 = vrot.slane %v1155, 4
        %v1311 = vadd.f32 %v1155, %v1310
        %v1312 = vrot.slane %v1311, 2
        %v1313 = vadd.f32 %v1311, %v1312
        %v1314 = vrot.slane %v1313, 1
        %v1315 = vadd.f32 %v1313, %v1314
        %v1316 = vrot.slane %v1157, 4
        %v1317 = vadd.f32 %v1157, %v1316
        %v1318 = vrot.slane %v1317, 2
        %v1319 = vadd.f32 %v1317, %v1318
        %v1320 = vrot.slane %v1319, 1
        %v1321 = vadd.f32 %v1319, %v1320
        %v1322 = vrot.slane %v1159, 4
        %v1323 = vadd.f32 %v1159, %v1322
        %v1324 = vrot.slane %v1323, 2
        %v1325 = vadd.f32 %v1323, %v1324
        %v1326 = vrot.slane %v1325, 1
        %v1327 = vadd.f32 %v1325, %v1326
        %v1328 = vrot.slane %v1161, 4
        %v1329 = vadd.f32 %v1161, %v1328
        %v1330 = vrot.slane %v1329, 2
        %v1331 = vadd.f32 %v1329, %v1330
        %v1332 = vrot.slane %v1331, 1
        %v1333 = vadd.f32 %v1331, %v1332
        %v1334 = vrot.slane %v1163, 4
        %v1335 = vadd.f32 %v1163, %v1334
        %v1336 = vrot.slane %v1335, 2
        %v1337 = vadd.f32 %v1335, %v1336
        %v1338 = vrot.slane %v1337, 1
        %v1339 = vadd.f32 %v1337, %v1338
        %v1340 = vrot.slane %v1165, 4
        %v1341 = vadd.f32 %v1165, %v1340
        %v1342 = vrot.slane %v1341, 2
        %v1343 = vadd.f32 %v1341, %v1342
        %v1344 = vrot.slane %v1343, 1
        %v1345 = vadd.f32 %v1343, %v1344
        %v1346 = vrot.slane %v1167, 4
        %v1347 = vadd.f32 %v1167, %v1346
        %v1348 = vrot.slane %v1347, 2
        %v1349 = vadd.f32 %v1347, %v1348
        %v1350 = vrot.slane %v1349, 1
        %v1351 = vadd.f32 %v1349, %v1350
        %v1352 = vrot.slane %v1169, 4
        %v1353 = vadd.f32 %v1169, %v1352
        %v1354 = vrot.slane %v1353, 2
        %v1355 = vadd.f32 %v1353, %v1354
        %v1356 = vrot.slane %v1355, 1
        %v1357 = vadd.f32 %v1355, %v1356
        %v1358 = vrot.slane %v1171, 4
        %v1359 = vadd.f32 %v1171, %v1358
        %v1360 = vrot.slane %v1359, 2
        %v1361 = vadd.f32 %v1359, %v1360
        %v1362 = vrot.slane %v1361, 1
        %v1363 = vadd.f32 %v1361, %v1362
        %v1364 = vrot.slane %v1173, 4
        %v1365 = vadd.f32 %v1173, %v1364
        %v1366 = vrot.slane %v1365, 2
        %v1367 = vadd.f32 %v1365, %v1366
        %v1368 = vrot.slane %v1367, 1
        %v1369 = vadd.f32 %v1367, %v1368
        %v1370 = vrot.slane %v1175, 4
        %v1371 = vadd.f32 %v1175, %v1370
        %v1372 = vrot.slane %v1371, 2
        %v1373 = vadd.f32 %v1371, %v1372
        %v1374 = vrot.slane %v1373, 1
        %v1375 = vadd.f32 %v1373, %v1374
        %v1376 = vrot.slane %v1177, 4
        %v1377 = vadd.f32 %v1177, %v1376
        %v1378 = vrot.slane %v1377, 2
        %v1379 = vadd.f32 %v1377, %v1378
        %v1380 = vrot.slane %v1379, 1
        %v1381 = vadd.f32 %v1379, %v1380
        %v1382 = vrot.slane %v1179, 4
        %v1383 = vadd.f32 %v1179, %v1382
        %v1384 = vrot.slane %v1383, 2
        %v1385 = vadd.f32 %v1383, %v1384
        %v1386 = vrot.slane %v1385, 1
        %v1387 = vadd.f32 %v1385, %v1386
        %v1388 = vrot.slane %v1181, 4
        %v1389 = vadd.f32 %v1181, %v1388
        %v1390 = vrot.slane %v1389, 2
        %v1391 = vadd.f32 %v1389, %v1390
        %v1392 = vrot.slane %v1391, 1
        %v1393 = vadd.f32 %v1391, %v1392
        %v1394 = vrot.slane %v1183, 4
        %v1395 = vadd.f32 %v1183, %v1394
        %v1396 = vrot.slane %v1395, 2
        %v1397 = vadd.f32 %v1395, %v1396
        %v1398 = vrot.slane %v1397, 1
        %v1399 = vadd.f32 %v1397, %v1398
        %v1400 = vrot.slane %v1185, 4
        %v1401 = vadd.f32 %v1185, %v1400
        %v1402 = vrot.slane %v1401, 2
        %v1403 = vadd.f32 %v1401, %v1402
        %v1404 = vrot.slane %v1403, 1
        %v1405 = vadd.f32 %v1403, %v1404
        %v1406 = vrot.slane %v1187, 4
        %v1407 = vadd.f32 %v1187, %v1406
        %v1408 = vrot.slane %v1407, 2
        %v1409 = vadd.f32 %v1407, %v1408
        %v1410 = vrot.slane %v1409, 1
        %v1411 = vadd.f32 %v1409, %v1410
        %v1412 = vrot.slane %v1189, 4
        %v1413 = vadd.f32 %v1189, %v1412
        %v1414 = vrot.slane %v1413, 2
        %v1415 = vadd.f32 %v1413, %v1414
        %v1416 = vrot.slane %v1415, 1
        %v1417 = vadd.f32 %v1415, %v1416
        %v1418 = vrot.slane %v1191, 4
        %v1419 = vadd.f32 %v1191, %v1418
        %v1420 = vrot.slane %v1419, 2
        %v1421 = vadd.f32 %v1419, %v1420
        %v1422 = vrot.slane %v1421, 1
        %v1423 = vadd.f32 %v1421, %v1422
        %v1424 = vrot.slane %v1193, 4
        %v1425 = vadd.f32 %v1193, %v1424
        %v1426 = vrot.slane %v1425, 2
        %v1427 = vadd.f32 %v1425, %v1426
        %v1428 = vrot.slane %v1427, 1
        %v1429 = vadd.f32 %v1427, %v1428
        %v1430 = vrot.slane %v1195, 4
        %v1431 = vadd.f32 %v1195, %v1430
        %v1432 = vrot.slane %v1431, 2
        %v1433 = vadd.f32 %v1431, %v1432
        %v1434 = vrot.slane %v1433, 1
        %v1435 = vadd.f32 %v1433, %v1434
        %v1436 = vrot.slane %v1197, 4
        %v1437 = vadd.f32 %v1197, %v1436
        %v1438 = vrot.slane %v1437, 2
        %v1439 = vadd.f32 %v1437, %v1438
        %v1440 = vrot.slane %v1439, 1
        %v1441 = vadd.f32 %v1439, %v1440
        %v1442 = vrot.slane %v1199, 4
        %v1443 = vadd.f32 %v1199, %v1442
        %v1444 = vrot.slane %v1443, 2
        %v1445 = vadd.f32 %v1443, %v1444
        %v1446 = vrot.slane %v1445, 1
        %v1447 = vadd.f32 %v1445, %v1446
        %v1448 = vrot.slane %v1201, 4
        %v1449 = vadd.f32 %v1201, %v1448
        %v1450 = vrot.slane %v1449, 2
        %v1451 = vadd.f32 %v1449, %v1450
        %v1452 = vrot.slane %v1451, 1
        %v1453 = vadd.f32 %v1451, %v1452
        %v1454 = vrot.slane %v1203, 4
        %v1455 = vadd.f32 %v1203, %v1454
        %v1456 = vrot.slane %v1455, 2
        %v1457 = vadd.f32 %v1455, %v1456
        %v1458 = vrot.slane %v1457, 1
        %v1459 = vadd.f32 %v1457, %v1458
        %v1460 = vrot.slane %v1205, 4
        %v1461 = vadd.f32 %v1205, %v1460
        %v1462 = vrot.slane %v1461, 2
        %v1463 = vadd.f32 %v1461, %v1462
        %v1464 = vrot.slane %v1463, 1
        %v1465 = vadd.f32 %v1463, %v1464
        %v1466 = vrot.slane %v1207, 4
        %v1467 = vadd.f32 %v1207, %v1466
        %v1468 = vrot.slane %v1467, 2
        %v1469 = vadd.f32 %v1467, %v1468
        %v1470 = vrot.slane %v1469, 1
        %v1471 = vadd.f32 %v1469, %v1470
        %v1472 = vrot.slane %v1209, 4
        %v1473 = vadd.f32 %v1209, %v1472
        %v1474 = vrot.slane %v1473, 2
        %v1475 = vadd.f32 %v1473, %v1474
        %v1476 = vrot.slane %v1475, 1
        %v1477 = vadd.f32 %v1475, %v1476
        %v1478 = vrot.slane %v1211, 4
        %v1479 = vadd.f32 %v1211, %v1478
        %v1480 = vrot.slane %v1479, 2
        %v1481 = vadd.f32 %v1479, %v1480
        %v1482 = vrot.slane %v1481, 1
        %v1483 = vadd.f32 %v1481, %v1482
        %v1484 = vrot.slane %v1213, 4
        %v1485 = vadd.f32 %v1213, %v1484
        %v1486 = vrot.slane %v1485, 2
        %v1487 = vadd.f32 %v1485, %v1486
        %v1488 = vrot.slane %v1487, 1
        %v1489 = vadd.f32 %v1487, %v1488
        %v1490 = vrot.slane %v1215, 4
        %v1491 = vadd.f32 %v1215, %v1490
        %v1492 = vrot.slane %v1491, 2
        %v1493 = vadd.f32 %v1491, %v1492
        %v1494 = vrot.slane %v1493, 1
        %v1495 = vadd.f32 %v1493, %v1494
        %v1496 = vrot.slane %v1217, 4
        %v1497 = vadd.f32 %v1217, %v1496
        %v1498 = vrot.slane %v1497, 2
        %v1499 = vadd.f32 %v1497, %v1498
        %v1500 = vrot.slane %v1499, 1
        %v1501 = vadd.f32 %v1499, %v1500
        %v1502 = vrot.slane %v1219, 4
        %v1503 = vadd.f32 %v1219, %v1502
        %v1504 = vrot.slane %v1503, 2
        %v1505 = vadd.f32 %v1503, %v1504
        %v1506 = vrot.slane %v1505, 1
        %v1507 = vadd.f32 %v1505, %v1506
        %v1508 = vadd.f32 %v1225, %v1231
        %v1509 = vadd.f32 %v1508, %v1237
        %v1510 = vadd.f32 %v1509, %v1243
        %v1511 = vadd.f32 %v1510, %v1249
        %v1512 = vadd.f32 %v1511, %v1255
        %v1513 = vadd.f32 %v1512, %v1261
        %v1514 = vadd.f32 %v1513, %v1267
        %v1515 = vadd.f32 %v1273, %v1279
        %v1516 = vadd.f32 %v1515, %v1285
        %v1517 = vadd.f32 %v1516, %v1291
        %v1518 = vadd.f32 %v1517, %v1297
        %v1519 = vadd.f32 %v1518, %v1303
        %v1520 = vadd.f32 %v1519, %v1309
        %v1521 = vadd.f32 %v1520, %v1315
        %v1522 = vadd.f32 %v1321, %v1327
        %v1523 = vadd.f32 %v1522, %v1333
        %v1524 = vadd.f32 %v1523, %v1339
        %v1525 = vadd.f32 %v1524, %v1345
        %v1526 = vadd.f32 %v1525, %v1351
        %v1527 = vadd.f32 %v1526, %v1357
        %v1528 = vadd.f32 %v1527, %v1363
        %v1529 = vadd.f32 %v1369, %v1375
        %v1530 = vadd.f32 %v1529, %v1381
        %v1531 = vadd.f32 %v1530, %v1387
        %v1532 = vadd.f32 %v1531, %v1393
        %v1533 = vadd.f32 %v1532, %v1399
        %v1534 = vadd.f32 %v1533, %v1405
        %v1535 = vadd.f32 %v1534, %v1411
        %v1536 = vadd.f32 %v1417, %v1423
        %v1537 = vadd.f32 %v1536, %v1429
        %v1538 = vadd.f32 %v1537, %v1435
        %v1539 = vadd.f32 %v1538, %v1441
        %v1540 = vadd.f32 %v1539, %v1447
        %v1541 = vadd.f32 %v1540, %v1453
        %v1542 = vadd.f32 %v1541, %v1459
        %v1543 = vadd.f32 %v1465, %v1471
        %v1544 = vadd.f32 %v1543, %v1477
        %v1545 = vadd.f32 %v1544, %v1483
        %v1546 = vadd.f32 %v1545, %v1489
        %v1547 = vadd.f32 %v1546, %v1495
        %v1548 = vadd.f32 %v1547, %v1501
        %v1549 = vadd.f32 %v1548, %v1507
        %v1550 = vmul.f32 %v1514, 0.00012207031
        %v1551 = vmul.f32 %v1521, 0.00012207031
        %v1552 = vmul.f32 %v1528, 0.00012207031
        %v1553 = vmul.f32 %v1535, 0.00012207031
        %v1554 = vmul.f32 %v1542, 0.00012207031
        %v1555 = vmul.f32 %v1549, 0.00012207031
        %v1556 = vmul.f32 %v1550, %v1550
        %v1557 = vmul.f32 %v1551, %v1551
        %v1558 = vmul.f32 %v1552, %v1552
        %v1559 = vsub.f32 %v1553, %v1556
        %v1560 = vsub.f32 %v1554, %v1557
        %v1561 = vsub.f32 %v1555, %v1558
        %v1562 = vsub.f32 %v884, %v1550
        %v1563 = vsub.f32 %v885, %v1550
        %v1564 = vsub.f32 %v886, %v1550
        %v1565 = vsub.f32 %v887, %v1550
        %v1566 = vsub.f32 %v888, %v1550
        %v1567 = vsub.f32 %v889, %v1550
        %v1568 = vsub.f32 %v890, %v1550
        %v1569 = vsub.f32 %v891, %v1550
        %v1570 = vsub.f32 %v988, %v1551
        %v1571 = vsub.f32 %v989, %v1551
        %v1572 = vsub.f32 %v990, %v1551
        %v1573 = vsub.f32 %v991, %v1551
        %v1574 = vsub.f32 %v992, %v1551
        %v1575 = vsub.f32 %v993, %v1551
        %v1576 = vsub.f32 %v994, %v1551
        %v1577 = vsub.f32 %v995, %v1551
        %v1578 = vsub.f32 %v1092, %v1552
        %v1579 = vsub.f32 %v1093, %v1552
        %v1580 = vsub.f32 %v1094, %v1552
        %v1581 = vsub.f32 %v1095, %v1552
        %v1582 = vsub.f32 %v1096, %v1552
        %v1583 = vsub.f32 %v1097, %v1552
        %v1584 = vsub.f32 %v1098, %v1552
        %v1585 = vsub.f32 %v1099, %v1552
        %v1586 = vadd.f32 %v1559, 1e-05
        %v1587 = vadd.f32 %v1560, 1e-05
        %v1588 = vadd.f32 %v1561, 1e-05
        %v1589 = vrsqrt.pop %v1586
        %v1590 = vrsqrt.pop %v1587
        %v1591 = vrsqrt.pop %v1588
        %v1592 = vmul.f32 %v1562, %v1589
        %v1593 = vmul.f32 %v1563, %v1589
        %v1594 = vmul.f32 %v1564, %v1589
        %v1595 = vmul.f32 %v1565, %v1589
        %v1596 = vmul.f32 %v1566, %v1589
        %v1597 = vmul.f32 %v1567, %v1589
        %v1598 = vmul.f32 %v1568, %v1589
        %v1599 = vmul.f32 %v1569, %v1589
        %v1600 = vmul.f32 %v1570, %v1590
        %v1601 = vmul.f32 %v1571, %v1590
        %v1602 = vmul.f32 %v1572, %v1590
        %v1603 = vmul.f32 %v1573, %v1590
        %v1604 = vmul.f32 %v1574, %v1590
        %v1605 = vmul.f32 %v1575, %v1590
        %v1606 = vmul.f32 %v1576, %v1590
        %v1607 = vmul.f32 %v1577, %v1590
        %v1608 = vmul.f32 %v1578, %v1591
        %v1609 = vmul.f32 %v1579, %v1591
        %v1610 = vmul.f32 %v1580, %v1591
        %v1611 = vmul.f32 %v1581, %v1591
        %v1612 = vmul.f32 %v1582, %v1591
        %v1613 = vmul.f32 %v1583, %v1591
        %v1614 = vmul.f32 %v1584, %v1591
        %v1615 = vmul.f32 %v1585, %v1591
        %v1616 = vadd.f32 %v1592, %v1600
        %v1617 = vadd.f32 %v1593, %v1601
        %v1618 = vadd.f32 %v1594, %v1602
        %v1619 = vadd.f32 %v1595, %v1603
        %v1620 = vadd.f32 %v1596, %v1604
        %v1621 = vadd.f32 %v1597, %v1605
        %v1622 = vadd.f32 %v1598, %v1606
        %v1623 = vadd.f32 %v1599, %v1607
        %v1624 = vadd.f32 %v1616, %v1608
        %v1625 = vadd.f32 %v1617, %v1609
        %v1626 = vadd.f32 %v1618, %v1610
        %v1627 = vadd.f32 %v1619, %v1611
        %v1628 = vadd.f32 %v1620, %v1612
        %v1629 = vadd.f32 %v1621, %v1613
        %v1630 = vadd.f32 %v1622, %v1614
        %v1631 = vadd.f32 %v1623, %v1615
        %v1632 = vrot.slane %v1624, 4
        %v1633 = vmax.f32 %v1624, %v1632
        %v1634 = vrot.slane %v1633, 2
        %v1635 = vmax.f32 %v1633, %v1634
        %v1636 = vrot.slane %v1635, 1
        %v1637 = vmax.f32 %v1635, %v1636
        %v1638 = vrot.slane %v1625, 4
        %v1639 = vmax.f32 %v1625, %v1638
        %v1640 = vrot.slane %v1639, 2
        %v1641 = vmax.f32 %v1639, %v1640
        %v1642 = vrot.slane %v1641, 1
        %v1643 = vmax.f32 %v1641, %v1642
        %v1644 = vrot.slane %v1626, 4
        %v1645 = vmax.f32 %v1626, %v1644
        %v1646 = vrot.slane %v1645, 2
        %v1647 = vmax.f32 %v1645, %v1646
        %v1648 = vrot.slane %v1647, 1
        %v1649 = vmax.f32 %v1647, %v1648
        %v1650 = vrot.slane %v1627, 4
        %v1651 = vmax.f32 %v1627, %v1650
        %v1652 = vrot.slane %v1651, 2
        %v1653 = vmax.f32 %v1651, %v1652
        %v1654 = vrot.slane %v1653, 1
        %v1655 = vmax.f32 %v1653, %v1654
        %v1656 = vrot.slane %v1628, 4
        %v1657 = vmax.f32 %v1628, %v1656
        %v1658 = vrot.slane %v1657, 2
        %v1659 = vmax.f32 %v1657, %v1658
        %v1660 = vrot.slane %v1659, 1
        %v1661 = vmax.f32 %v1659, %v1660
        %v1662 = vrot.slane %v1629, 4
        %v1663 = vmax.f32 %v1629, %v1662
        %v1664 = vrot.slane %v1663, 2
        %v1665 = vmax.f32 %v1663, %v1664
        %v1666 = vrot.slane %v1665, 1
        %v1667 = vmax.f32 %v1665, %v1666
        %v1668 = vrot.slane %v1630, 4
        %v1669 = vmax.f32 %v1630, %v1668
        %v1670 = vrot.slane %v1669, 2
        %v1671 = vmax.f32 %v1669, %v1670
        %v1672 = vrot.slane %v1671, 1
        %v1673 = vmax.f32 %v1671, %v1672
        %v1674 = vrot.slane %v1631, 4
        %v1675 = vmax.f32 %v1631, %v1674
        %v1676 = vrot.slane %v1675, 2
        %v1677 = vmax.f32 %v1675, %v1676
        %v1678 = vrot.slane %v1677, 1
        %v1679 = vmax.f32 %v1677, %v1678
        %v1680 = vsub.f32 %v1624, %v1637
        %v1681 = vsub.f32 %v1625, %v1643
        %v1682 = vsub.f32 %v1626, %v1649
        %v1683 = vsub.f32 %v1627, %v1655
        %v1684 = vsub.f32 %v1628, %v1661
        %v1685 = vsub.f32 %v1629, %v1667
        %v1686 = vsub.f32 %v1630, %v1673
        %v1687 = vsub.f32 %v1631, %v1679
        %v1688 = vmul.f32 %v1680, 1.442695
        %v1689 = vpow.pop %v1688
        %v1690 = vmul.f32 %v1681, 1.442695
        %v1691 = vpow.pop %v1690
        %v1692 = vmul.f32 %v1682, 1.442695
        %v1693 = vpow.pop %v1692
        %v1694 = vmul.f32 %v1683, 1.442695
        %v1695 = vpow.pop %v1694
        %v1696 = vmul.f32 %v1684, 1.442695
        %v1697 = vpow.pop %v1696
        %v1698 = vmul.f32 %v1685, 1.442695
        %v1699 = vpow.pop %v1698
        %v1700 = vmul.f32 %v1686, 1.442695
        %v1701 = vpow.pop %v1700
        %v1702 = vmul.f32 %v1687, 1.442695
        %v1703 = vpow.pop %v1702
        %v1704 = vrot.slane %v1689, 4
        %v1705 = vadd.f32 %v1689, %v1704
        %v1706 = vrot.slane %v1705, 2
        %v1707 = vadd.f32 %v1705, %v1706
        %v1708 = vrot.slane %v1707, 1
        %v1709 = vadd.f32 %v1707, %v1708
        %v1710 = vrot.slane %v1691, 4
        %v1711 = vadd.f32 %v1691, %v1710
        %v1712 = vrot.slane %v1711, 2
        %v1713 = vadd.f32 %v1711, %v1712
        %v1714 = vrot.slane %v1713, 1
        %v1715 = vadd.f32 %v1713, %v1714
        %v1716 = vrot.slane %v1693, 4
        %v1717 = vadd.f32 %v1693, %v1716
        %v1718 = vrot.slane %v1717, 2
        %v1719 = vadd.f32 %v1717, %v1718
        %v1720 = vrot.slane %v1719, 1
        %v1721 = vadd.f32 %v1719, %v1720
        %v1722 = vrot.slane %v1695, 4
        %v1723 = vadd.f32 %v1695, %v1722
        %v1724 = vrot.slane %v1723, 2
        %v1725 = vadd.f32 %v1723, %v1724
        %v1726 = vrot.slane %v1725, 1
        %v1727 = vadd.f32 %v1725, %v1726
        %v1728 = vrot.slane %v1697, 4
        %v1729 = vadd.f32 %v1697, %v1728
        %v1730 = vrot.slane %v1729, 2
        %v1731 = vadd.f32 %v1729, %v1730
        %v1732 = vrot.slane %v1731, 1
        %v1733 = vadd.f32 %v1731, %v1732
        %v1734 = vrot.slane %v1699, 4
        %v1735 = vadd.f32 %v1699, %v1734
        %v1736 = vrot.slane %v1735, 2
        %v1737 = vadd.f32 %v1735, %v1736
        %v1738 = vrot.slane %v1737, 1
        %v1739 = vadd.f32 %v1737, %v1738
        %v1740 = vrot.slane %v1701, 4
        %v1741 = vadd.f32 %v1701, %v1740
        %v1742 = vrot.slane %v1741, 2
        %v1743 = vadd.f32 %v1741, %v1742
        %v1744 = vrot.slane %v1743, 1
        %v1745 = vadd.f32 %v1743, %v1744
        %v1746 = vrot.slane %v1703, 4
        %v1747 = vadd.f32 %v1703, %v1746
        %v1748 = vrot.slane %v1747, 2
        %v1749 = vadd.f32 %v1747, %v1748
        %v1750 = vrot.slane %v1749, 1
        %v1751 = vadd.f32 %v1749, %v1750
        %v1752 = vrcp.pop %v1709
        %v1753 = vrcp.pop %v1715
        %v1754 = vrcp.pop %v1721
        %v1755 = vrcp.pop %v1727
        %v1756 = vrcp.pop %v1733
        %v1757 = vrcp.pop %v1739
        %v1758 = vrcp.pop %v1745
        %v1759 = vrcp.pop %v1751
        %v1760 = vmul.f32 %v1709, %v1752
        %v1761 = vmul.f32 %v1715, %v1753
        %v1762 = vmul.f32 %v1721, %v1754
        %v1763 = vmul.f32 %v1727, %v1755
        %v1764 = vmul.f32 %v1733, %v1756
        %v1765 = vmul.f32 %v1739, %v1757
        %v1766 = vmul.f32 %v1745, %v1758
        %v1767 = vmul.f32 %v1751, %v1759
        %v1768 = vsub.f32 2.0, %v1760
        %v1769 = vsub.f32 2.0, %v1761
        %v1770 = vsub.f32 2.0, %v1762
        %v1771 = vsub.f32 2.0, %v1763
        %v1772 = vsub.f32 2.0, %v1764
        %v1773 = vsub.f32 2.0, %v1765
        %v1774 = vsub.f32 2.0, %v1766
        %v1775 = vsub.f32 2.0, %v1767
        %v1776 = vmul.f32 %v1752, %v1768
        %v1777 = vmul.f32 %v1753, %v1769
        %v1778 = vmul.f32 %v1754, %v1770
        %v1779 = vmul.f32 %v1755, %v1771
        %v1780 = vmul.f32 %v1756, %v1772
        %v1781 = vmul.f32 %v1757, %v1773
        %v1782 = vmul.f32 %v1758, %v1774
        %v1783 = vmul.f32 %v1759, %v1775
        %v1784 = vmul.f32 %v1689, %v1776
        %v1785 = vmul.f32 %v1691, %v1777
        %v1786 = vmul.f32 %v1693, %v1778
        %v1787 = vmul.f32 %v1695, %v1779
        %v1788 = vmul.f32 %v1697, %v1780
        %v1789 = vmul.f32 %v1699, %v1781
        %v1790 = vmul.f32 %v1701, %v1782
        %v1791 = vmul.f32 %v1703, %v1783
        %v1792 = vmul.f32 %v1784, %v620
        %v1793 = vmul.f32 %v1785, %v620
        %v1794 = vmul.f32 %v1786, %v620
        %v1795 = vmul.f32 %v1787, %v620
        %v1796 = vmul.f32 %v1788, %v620
        %v1797 = vmul.f32 %v1789, %v620
        %v1798 = vmul.f32 %v1790, %v620
        %v1799 = vmul.f32 %v1791, %v620
        %v1800 = vmul.f32 %v1784, %v621
        %v1801 = vmul.f32 %v1785, %v621
        %v1802 = vmul.f32 %v1786, %v621
        %v1803 = vmul.f32 %v1787, %v621
        %v1804 = vmul.f32 %v1788, %v621
        %v1805 = vmul.f32 %v1789, %v621
        %v1806 = vmul.f32 %v1790, %v621
        %v1807 = vmul.f32 %v1791, %v621
        %v1808 = vmul.f32 %v1784, %v622
        %v1809 = vmul.f32 %v1785, %v622
        %v1810 = vmul.f32 %v1786, %v622
        %v1811 = vmul.f32 %v1787, %v622
        %v1812 = vmul.f32 %v1788, %v622
        %v1813 = vmul.f32 %v1789, %v622
        %v1814 = vmul.f32 %v1790, %v622
        %v1815 = vmul.f32 %v1791, %v622
        %v1816 = vmul.f32 %v1784, %v623
        %v1817 = vmul.f32 %v1785, %v623
        %v1818 = vmul.f32 %v1786, %v623
        %v1819 = vmul.f32 %v1787, %v623
        %v1820 = vmul.f32 %v1788, %v623
        %v1821 = vmul.f32 %v1789, %v623
        %v1822 = vmul.f32 %v1790, %v623
        %v1823 = vmul.f32 %v1791, %v623
        %v1824 = vrot.slane %v1792, 4
        %v1825 = vadd.f32 %v1792, %v1824
        %v1826 = vrot.slane %v1825, 2
        %v1827 = vadd.f32 %v1825, %v1826
        %v1828 = vrot.slane %v1827, 1
        %v1829 = vadd.f32 %v1827, %v1828
        %v1830 = vrot.slane %v1793, 4
        %v1831 = vadd.f32 %v1793, %v1830
        %v1832 = vrot.slane %v1831, 2
        %v1833 = vadd.f32 %v1831, %v1832
        %v1834 = vrot.slane %v1833, 1
        %v1835 = vadd.f32 %v1833, %v1834
        %v1836 = vrot.slane %v1794, 4
        %v1837 = vadd.f32 %v1794, %v1836
        %v1838 = vrot.slane %v1837, 2
        %v1839 = vadd.f32 %v1837, %v1838
        %v1840 = vrot.slane %v1839, 1
        %v1841 = vadd.f32 %v1839, %v1840
        %v1842 = vrot.slane %v1795, 4
        %v1843 = vadd.f32 %v1795, %v1842
        %v1844 = vrot.slane %v1843, 2
        %v1845 = vadd.f32 %v1843, %v1844
        %v1846 = vrot.slane %v1845, 1
        %v1847 = vadd.f32 %v1845, %v1846
        %v1848 = vrot.slane %v1796, 4
        %v1849 = vadd.f32 %v1796, %v1848
        %v1850 = vrot.slane %v1849, 2
        %v1851 = vadd.f32 %v1849, %v1850
        %v1852 = vrot.slane %v1851, 1
        %v1853 = vadd.f32 %v1851, %v1852
        %v1854 = vrot.slane %v1797, 4
        %v1855 = vadd.f32 %v1797, %v1854
        %v1856 = vrot.slane %v1855, 2
        %v1857 = vadd.f32 %v1855, %v1856
        %v1858 = vrot.slane %v1857, 1
        %v1859 = vadd.f32 %v1857, %v1858
        %v1860 = vrot.slane %v1798, 4
        %v1861 = vadd.f32 %v1798, %v1860
        %v1862 = vrot.slane %v1861, 2
        %v1863 = vadd.f32 %v1861, %v1862
        %v1864 = vrot.slane %v1863, 1
        %v1865 = vadd.f32 %v1863, %v1864
        %v1866 = vrot.slane %v1799, 4
        %v1867 = vadd.f32 %v1799, %v1866
        %v1868 = vrot.slane %v1867, 2
        %v1869 = vadd.f32 %v1867, %v1868
        %v1870 = vrot.slane %v1869, 1
        %v1871 = vadd.f32 %v1869, %v1870
        %v1872 = vrot.slane %v1800, 4
        %v1873 = vadd.f32 %v1800, %v1872
        %v1874 = vrot.slane %v1873, 2
        %v1875 = vadd.f32 %v1873, %v1874
        %v1876 = vrot.slane %v1875, 1
        %v1877 = vadd.f32 %v1875, %v1876
        %v1878 = vrot.slane %v1801, 4
        %v1879 = vadd.f32 %v1801, %v1878
        %v1880 = vrot.slane %v1879, 2
        %v1881 = vadd.f32 %v1879, %v1880
        %v1882 = vrot.slane %v1881, 1
        %v1883 = vadd.f32 %v1881, %v1882
        %v1884 = vrot.slane %v1802, 4
        %v1885 = vadd.f32 %v1802, %v1884
        %v1886 = vrot.slane %v1885, 2
        %v1887 = vadd.f32 %v1885, %v1886
        %v1888 = vrot.slane %v1887, 1
        %v1889 = vadd.f32 %v1887, %v1888
        %v1890 = vrot.slane %v1803, 4
        %v1891 = vadd.f32 %v1803, %v1890
        %v1892 = vrot.slane %v1891, 2
        %v1893 = vadd.f32 %v1891, %v1892
        %v1894 = vrot.slane %v1893, 1
        %v1895 = vadd.f32 %v1893, %v1894
        %v1896 = vrot.slane %v1804, 4
        %v1897 = vadd.f32 %v1804, %v1896
        %v1898 = vrot.slane %v1897, 2
        %v1899 = vadd.f32 %v1897, %v1898
        %v1900 = vrot.slane %v1899, 1
        %v1901 = vadd.f32 %v1899, %v1900
        %v1902 = vrot.slane %v1805, 4
        %v1903 = vadd.f32 %v1805, %v1902
        %v1904 = vrot.slane %v1903, 2
        %v1905 = vadd.f32 %v1903, %v1904
        %v1906 = vrot.slane %v1905, 1
        %v1907 = vadd.f32 %v1905, %v1906
        %v1908 = vrot.slane %v1806, 4
        %v1909 = vadd.f32 %v1806, %v1908
        %v1910 = vrot.slane %v1909, 2
        %v1911 = vadd.f32 %v1909, %v1910
        %v1912 = vrot.slane %v1911, 1
        %v1913 = vadd.f32 %v1911, %v1912
        %v1914 = vrot.slane %v1807, 4
        %v1915 = vadd.f32 %v1807, %v1914
        %v1916 = vrot.slane %v1915, 2
        %v1917 = vadd.f32 %v1915, %v1916
        %v1918 = vrot.slane %v1917, 1
        %v1919 = vadd.f32 %v1917, %v1918
        %v1920 = vrot.slane %v1808, 4
        %v1921 = vadd.f32 %v1808, %v1920
        %v1922 = vrot.slane %v1921, 2
        %v1923 = vadd.f32 %v1921, %v1922
        %v1924 = vrot.slane %v1923, 1
        %v1925 = vadd.f32 %v1923, %v1924
        %v1926 = vrot.slane %v1809, 4
        %v1927 = vadd.f32 %v1809, %v1926
        %v1928 = vrot.slane %v1927, 2
        %v1929 = vadd.f32 %v1927, %v1928
        %v1930 = vrot.slane %v1929, 1
        %v1931 = vadd.f32 %v1929, %v1930
        %v1932 = vrot.slane %v1810, 4
        %v1933 = vadd.f32 %v1810, %v1932
        %v1934 = vrot.slane %v1933, 2
        %v1935 = vadd.f32 %v1933, %v1934
        %v1936 = vrot.slane %v1935, 1
        %v1937 = vadd.f32 %v1935, %v1936
        %v1938 = vrot.slane %v1811, 4
        %v1939 = vadd.f32 %v1811, %v1938
        %v1940 = vrot.slane %v1939, 2
        %v1941 = vadd.f32 %v1939, %v1940
        %v1942 = vrot.slane %v1941, 1
        %v1943 = vadd.f32 %v1941, %v1942
        %v1944 = vrot.slane %v1812, 4
        %v1945 = vadd.f32 %v1812, %v1944
        %v1946 = vrot.slane %v1945, 2
        %v1947 = vadd.f32 %v1945, %v1946
        %v1948 = vrot.slane %v1947, 1
        %v1949 = vadd.f32 %v1947, %v1948
        %v1950 = vrot.slane %v1813, 4
        %v1951 = vadd.f32 %v1813, %v1950
        %v1952 = vrot.slane %v1951, 2
        %v1953 = vadd.f32 %v1951, %v1952
        %v1954 = vrot.slane %v1953, 1
        %v1955 = vadd.f32 %v1953, %v1954
        %v1956 = vrot.slane %v1814, 4
        %v1957 = vadd.f32 %v1814, %v1956
        %v1958 = vrot.slane %v1957, 2
        %v1959 = vadd.f32 %v1957, %v1958
        %v1960 = vrot.slane %v1959, 1
        %v1961 = vadd.f32 %v1959, %v1960
        %v1962 = vrot.slane %v1815, 4
        %v1963 = vadd.f32 %v1815, %v1962
        %v1964 = vrot.slane %v1963, 2
        %v1965 = vadd.f32 %v1963, %v1964
        %v1966 = vrot.slane %v1965, 1
        %v1967 = vadd.f32 %v1965, %v1966
        %v1968 = vrot.slane %v1816, 4
        %v1969 = vadd.f32 %v1816, %v1968
        %v1970 = vrot.slane %v1969, 2
        %v1971 = vadd.f32 %v1969, %v1970
        %v1972 = vrot.slane %v1971, 1
        %v1973 = vadd.f32 %v1971, %v1972
        %v1974 = vrot.slane %v1817, 4
        %v1975 = vadd.f32 %v1817, %v1974
        %v1976 = vrot.slane %v1975, 2
        %v1977 = vadd.f32 %v1975, %v1976
        %v1978 = vrot.slane %v1977, 1
        %v1979 = vadd.f32 %v1977, %v1978
        %v1980 = vrot.slane %v1818, 4
        %v1981 = vadd.f32 %v1818, %v1980
        %v1982 = vrot.slane %v1981, 2
        %v1983 = vadd.f32 %v1981, %v1982
        %v1984 = vrot.slane %v1983, 1
        %v1985 = vadd.f32 %v1983, %v1984
        %v1986 = vrot.slane %v1819, 4
        %v1987 = vadd.f32 %v1819, %v1986
        %v1988 = vrot.slane %v1987, 2
        %v1989 = vadd.f32 %v1987, %v1988
        %v1990 = vrot.slane %v1989, 1
        %v1991 = vadd.f32 %v1989, %v1990
        %v1992 = vrot.slane %v1820, 4
        %v1993 = vadd.f32 %v1820, %v1992
        %v1994 = vrot.slane %v1993, 2
        %v1995 = vadd.f32 %v1993, %v1994
        %v1996 = vrot.slane %v1995, 1
        %v1997 = vadd.f32 %v1995, %v1996
        %v1998 = vrot.slane %v1821, 4
        %v1999 = vadd.f32 %v1821, %v1998
        %v2000 = vrot.slane %v1999, 2
        %v2001 = vadd.f32 %v1999, %v2000
        %v2002 = vrot.slane %v2001, 1
        %v2003 = vadd.f32 %v2001, %v2002
        %v2004 = vrot.slane %v1822, 4
        %v2005 = vadd.f32 %v1822, %v2004
        %v2006 = vrot.slane %v2005, 2
        %v2007 = vadd.f32 %v2005, %v2006
        %v2008 = vrot.slane %v2007, 1
        %v2009 = vadd.f32 %v2007, %v2008
        %v2010 = vrot.slane %v1823, 4
        %v2011 = vadd.f32 %v1823, %v2010
        %v2012 = vrot.slane %v2011, 2
        %v2013 = vadd.f32 %v2011, %v2012
        %v2014 = vrot.slane %v2013, 1
        %v2015 = vadd.f32 %v2013, %v2014
        %2017 = vset.pattern.permute.xlu0 0
        %2018 = vperm.xlu0 %2017, %v656
        %v2019 = vpop.permute.xlu0 %2018
        %2022 = vset.pattern.permute.xlu0 0
        %2023 = vperm.xlu0 %2022, %v657
        %v2024 = vpop.permute.xlu0 %2023
        %2027 = vset.pattern.permute.xlu0 0
        %2028 = vperm.xlu0 %2027, %v658
        %v2029 = vpop.permute.xlu0 %2028
        %2032 = vset.pattern.permute.xlu0 0
        %2033 = vperm.xlu0 %2032, %v659
        %v2034 = vpop.permute.xlu0 %2033
        %2037 = vset.pattern.permute.xlu0 0
        %2038 = vperm.xlu0 %2037, %v660
        %v2039 = vpop.permute.xlu0 %2038
        %2042 = vset.pattern.permute.xlu0 0
        %2043 = vperm.xlu0 %2042, %v661
        %v2044 = vpop.permute.xlu0 %2043
        %2047 = vset.pattern.permute.xlu0 0
        %2048 = vperm.xlu0 %2047, %v662
        %v2049 = vpop.permute.xlu0 %2048
        %2052 = vset.pattern.permute.xlu0 0
        %2053 = vperm.xlu0 %2052, %v663
        %v2054 = vpop.permute.xlu0 %2053
        %2057 = vset.pattern.permute.xlu0 0
        %2058 = vperm.xlu0 %2057, %v664
        %v2059 = vpop.permute.xlu0 %2058
        %2062 = vset.pattern.permute.xlu0 0
        %2063 = vperm.xlu0 %2062, %v665
        %v2064 = vpop.permute.xlu0 %2063
        %2067 = vset.pattern.permute.xlu0 0
        %2068 = vperm.xlu0 %2067, %v666
        %v2069 = vpop.permute.xlu0 %2068
        %2072 = vset.pattern.permute.xlu0 0
        %2073 = vperm.xlu0 %2072, %v667
        %v2074 = vpop.permute.xlu0 %2073
        %2077 = vset.pattern.permute.xlu0 0
        %2078 = vperm.xlu0 %2077, %v668
        %v2079 = vpop.permute.xlu0 %2078
        %2082 = vset.pattern.permute.xlu0 0
        %2083 = vperm.xlu0 %2082, %v669
        %v2084 = vpop.permute.xlu0 %2083
        %2087 = vset.pattern.permute.xlu0 0
        %2088 = vperm.xlu0 %2087, %v670
        %v2089 = vpop.permute.xlu0 %2088
        %2092 = vset.pattern.permute.xlu0 0
        %2093 = vperm.xlu0 %2092, %v671
        %v2094 = vpop.permute.xlu0 %2093
        %2097 = vset.pattern.permute.xlu0 0
        %2098 = vperm.xlu0 %2097, %v672
        %v2099 = vpop.permute.xlu0 %2098
        %2102 = vset.pattern.permute.xlu0 0
        %2103 = vperm.xlu0 %2102, %v673
        %v2104 = vpop.permute.xlu0 %2103
        %2107 = vset.pattern.permute.xlu0 0
        %2108 = vperm.xlu0 %2107, %v674
        %v2109 = vpop.permute.xlu0 %2108
        %2112 = vset.pattern.permute.xlu0 0
        %2113 = vperm.xlu0 %2112, %v675
        %v2114 = vpop.permute.xlu0 %2113
        %2117 = vset.pattern.permute.xlu0 0
        %2118 = vperm.xlu0 %2117, %v676
        %v2119 = vpop.permute.xlu0 %2118
        %2122 = vset.pattern.permute.xlu0 0
        %2123 = vperm.xlu0 %2122, %v677
        %v2124 = vpop.permute.xlu0 %2123
        %2127 = vset.pattern.permute.xlu0 0
        %2128 = vperm.xlu0 %2127, %v678
        %v2129 = vpop.permute.xlu0 %2128
        %2132 = vset.pattern.permute.xlu0 0
        %2133 = vperm.xlu0 %2132, %v679
        %v2134 = vpop.permute.xlu0 %2133
        %2137 = vset.pattern.permute.xlu0 0
        %2138 = vperm.xlu0 %2137, %v680
        %v2139 = vpop.permute.xlu0 %2138
        %2142 = vset.pattern.permute.xlu0 0
        %2143 = vperm.xlu0 %2142, %v681
        %v2144 = vpop.permute.xlu0 %2143
        %2147 = vset.pattern.permute.xlu0 0
        %2148 = vperm.xlu0 %2147, %v682
        %v2149 = vpop.permute.xlu0 %2148
        %2152 = vset.pattern.permute.xlu0 0
        %2153 = vperm.xlu0 %2152, %v683
        %v2154 = vpop.permute.xlu0 %2153
        %2157 = vset.pattern.permute.xlu0 0
        %2158 = vperm.xlu0 %2157, %v684
        %v2159 = vpop.permute.xlu0 %2158
        %2162 = vset.pattern.permute.xlu0 0
        %2163 = vperm.xlu0 %2162, %v685
        %v2164 = vpop.permute.xlu0 %2163
        %2167 = vset.pattern.permute.xlu0 0
        %2168 = vperm.xlu0 %2167, %v686
        %v2169 = vpop.permute.xlu0 %2168
        %2172 = vset.pattern.permute.xlu0 0
        %2173 = vperm.xlu0 %2172, %v687
        %v2174 = vpop.permute.xlu0 %2173
        %v2176 = vmul.f32 %v1784, %v2019
        %v2177 = vmul.f32 %v1785, %v2024
        %v2178 = vmul.f32 %v1786, %v2029
        %v2179 = vmul.f32 %v1787, %v2034
        %v2180 = vmul.f32 %v1788, %v2039
        %v2181 = vmul.f32 %v1789, %v2044
        %v2182 = vmul.f32 %v1790, %v2049
        %v2183 = vmul.f32 %v1791, %v2054
        %v2184 = vmul.f32 %v1784, %v2059
        %v2185 = vmul.f32 %v1785, %v2064
        %v2186 = vmul.f32 %v1786, %v2069
        %v2187 = vmul.f32 %v1787, %v2074
        %v2188 = vmul.f32 %v1788, %v2079
        %v2189 = vmul.f32 %v1789, %v2084
        %v2190 = vmul.f32 %v1790, %v2089
        %v2191 = vmul.f32 %v1791, %v2094
        %v2192 = vmul.f32 %v1784, %v2099
        %v2193 = vmul.f32 %v1785, %v2104
        %v2194 = vmul.f32 %v1786, %v2109
        %v2195 = vmul.f32 %v1787, %v2114
        %v2196 = vmul.f32 %v1788, %v2119
        %v2197 = vmul.f32 %v1789, %v2124
        %v2198 = vmul.f32 %v1790, %v2129
        %v2199 = vmul.f32 %v1791, %v2134
        %v2200 = vmul.f32 %v1784, %v2139
        %v2201 = vmul.f32 %v1785, %v2144
        %v2202 = vmul.f32 %v1786, %v2149
        %v2203 = vmul.f32 %v1787, %v2154
        %v2204 = vmul.f32 %v1788, %v2159
        %v2205 = vmul.f32 %v1789, %v2164
        %v2206 = vmul.f32 %v1790, %v2169
        %v2207 = vmul.f32 %v1791, %v2174
        %v2208 = vrot.slane %v2176, 4
        %v2209 = vadd.f32 %v2176, %v2208
        %v2210 = vrot.slane %v2209, 2
        %v2211 = vadd.f32 %v2209, %v2210
        %v2212 = vrot.slane %v2211, 1
        %v2213 = vadd.f32 %v2211, %v2212
        %v2214 = vrot.slane %v2177, 4
        %v2215 = vadd.f32 %v2177, %v2214
        %v2216 = vrot.slane %v2215, 2
        %v2217 = vadd.f32 %v2215, %v2216
        %v2218 = vrot.slane %v2217, 1
        %v2219 = vadd.f32 %v2217, %v2218
        %v2220 = vrot.slane %v2178, 4
        %v2221 = vadd.f32 %v2178, %v2220
        %v2222 = vrot.slane %v2221, 2
        %v2223 = vadd.f32 %v2221, %v2222
        %v2224 = vrot.slane %v2223, 1
        %v2225 = vadd.f32 %v2223, %v2224
        %v2226 = vrot.slane %v2179, 4
        %v2227 = vadd.f32 %v2179, %v2226
        %v2228 = vrot.slane %v2227, 2
        %v2229 = vadd.f32 %v2227, %v2228
        %v2230 = vrot.slane %v2229, 1
        %v2231 = vadd.f32 %v2229, %v2230
        %v2232 = vrot.slane %v2180, 4
        %v2233 = vadd.f32 %v2180, %v2232
        %v2234 = vrot.slane %v2233, 2
        %v2235 = vadd.f32 %v2233, %v2234
        %v2236 = vrot.slane %v2235, 1
        %v2237 = vadd.f32 %v2235, %v2236
        %v2238 = vrot.slane %v2181, 4
        %v2239 = vadd.f32 %v2181, %v2238
        %v2240 = vrot.slane %v2239, 2
        %v2241 = vadd.f32 %v2239, %v2240
        %v2242 = vrot.slane %v2241, 1
        %v2243 = vadd.f32 %v2241, %v2242
        %v2244 = vrot.slane %v2182, 4
        %v2245 = vadd.f32 %v2182, %v2244
        %v2246 = vrot.slane %v2245, 2
        %v2247 = vadd.f32 %v2245, %v2246
        %v2248 = vrot.slane %v2247, 1
        %v2249 = vadd.f32 %v2247, %v2248
        %v2250 = vrot.slane %v2183, 4
        %v2251 = vadd.f32 %v2183, %v2250
        %v2252 = vrot.slane %v2251, 2
        %v2253 = vadd.f32 %v2251, %v2252
        %v2254 = vrot.slane %v2253, 1
        %v2255 = vadd.f32 %v2253, %v2254
        %v2256 = vrot.slane %v2184, 4
        %v2257 = vadd.f32 %v2184, %v2256
        %v2258 = vrot.slane %v2257, 2
        %v2259 = vadd.f32 %v2257, %v2258
        %v2260 = vrot.slane %v2259, 1
        %v2261 = vadd.f32 %v2259, %v2260
        %v2262 = vrot.slane %v2185, 4
        %v2263 = vadd.f32 %v2185, %v2262
        %v2264 = vrot.slane %v2263, 2
        %v2265 = vadd.f32 %v2263, %v2264
        %v2266 = vrot.slane %v2265, 1
        %v2267 = vadd.f32 %v2265, %v2266
        %v2268 = vrot.slane %v2186, 4
        %v2269 = vadd.f32 %v2186, %v2268
        %v2270 = vrot.slane %v2269, 2
        %v2271 = vadd.f32 %v2269, %v2270
        %v2272 = vrot.slane %v2271, 1
        %v2273 = vadd.f32 %v2271, %v2272
        %v2274 = vrot.slane %v2187, 4
        %v2275 = vadd.f32 %v2187, %v2274
        %v2276 = vrot.slane %v2275, 2
        %v2277 = vadd.f32 %v2275, %v2276
        %v2278 = vrot.slane %v2277, 1
        %v2279 = vadd.f32 %v2277, %v2278
        %v2280 = vrot.slane %v2188, 4
        %v2281 = vadd.f32 %v2188, %v2280
        %v2282 = vrot.slane %v2281, 2
        %v2283 = vadd.f32 %v2281, %v2282
        %v2284 = vrot.slane %v2283, 1
        %v2285 = vadd.f32 %v2283, %v2284
        %v2286 = vrot.slane %v2189, 4
        %v2287 = vadd.f32 %v2189, %v2286
        %v2288 = vrot.slane %v2287, 2
        %v2289 = vadd.f32 %v2287, %v2288
        %v2290 = vrot.slane %v2289, 1
        %v2291 = vadd.f32 %v2289, %v2290
        %v2292 = vrot.slane %v2190, 4
        %v2293 = vadd.f32 %v2190, %v2292
        %v2294 = vrot.slane %v2293, 2
        %v2295 = vadd.f32 %v2293, %v2294
        %v2296 = vrot.slane %v2295, 1
        %v2297 = vadd.f32 %v2295, %v2296
        %v2298 = vrot.slane %v2191, 4
        %v2299 = vadd.f32 %v2191, %v2298
        %v2300 = vrot.slane %v2299, 2
        %v2301 = vadd.f32 %v2299, %v2300
        %v2302 = vrot.slane %v2301, 1
        %v2303 = vadd.f32 %v2301, %v2302
        %v2304 = vrot.slane %v2192, 4
        %v2305 = vadd.f32 %v2192, %v2304
        %v2306 = vrot.slane %v2305, 2
        %v2307 = vadd.f32 %v2305, %v2306
        %v2308 = vrot.slane %v2307, 1
        %v2309 = vadd.f32 %v2307, %v2308
        %v2310 = vrot.slane %v2193, 4
        %v2311 = vadd.f32 %v2193, %v2310
        %v2312 = vrot.slane %v2311, 2
        %v2313 = vadd.f32 %v2311, %v2312
        %v2314 = vrot.slane %v2313, 1
        %v2315 = vadd.f32 %v2313, %v2314
        %v2316 = vrot.slane %v2194, 4
        %v2317 = vadd.f32 %v2194, %v2316
        %v2318 = vrot.slane %v2317, 2
        %v2319 = vadd.f32 %v2317, %v2318
        %v2320 = vrot.slane %v2319, 1
        %v2321 = vadd.f32 %v2319, %v2320
        %v2322 = vrot.slane %v2195, 4
        %v2323 = vadd.f32 %v2195, %v2322
        %v2324 = vrot.slane %v2323, 2
        %v2325 = vadd.f32 %v2323, %v2324
        %v2326 = vrot.slane %v2325, 1
        %v2327 = vadd.f32 %v2325, %v2326
        %v2328 = vrot.slane %v2196, 4
        %v2329 = vadd.f32 %v2196, %v2328
        %v2330 = vrot.slane %v2329, 2
        %v2331 = vadd.f32 %v2329, %v2330
        %v2332 = vrot.slane %v2331, 1
        %v2333 = vadd.f32 %v2331, %v2332
        %v2334 = vrot.slane %v2197, 4
        %v2335 = vadd.f32 %v2197, %v2334
        %v2336 = vrot.slane %v2335, 2
        %v2337 = vadd.f32 %v2335, %v2336
        %v2338 = vrot.slane %v2337, 1
        %v2339 = vadd.f32 %v2337, %v2338
        %v2340 = vrot.slane %v2198, 4
        %v2341 = vadd.f32 %v2198, %v2340
        %v2342 = vrot.slane %v2341, 2
        %v2343 = vadd.f32 %v2341, %v2342
        %v2344 = vrot.slane %v2343, 1
        %v2345 = vadd.f32 %v2343, %v2344
        %v2346 = vrot.slane %v2199, 4
        %v2347 = vadd.f32 %v2199, %v2346
        %v2348 = vrot.slane %v2347, 2
        %v2349 = vadd.f32 %v2347, %v2348
        %v2350 = vrot.slane %v2349, 1
        %v2351 = vadd.f32 %v2349, %v2350
        %v2352 = vrot.slane %v2200, 4
        %v2353 = vadd.f32 %v2200, %v2352
        %v2354 = vrot.slane %v2353, 2
        %v2355 = vadd.f32 %v2353, %v2354
        %v2356 = vrot.slane %v2355, 1
        %v2357 = vadd.f32 %v2355, %v2356
        %v2358 = vrot.slane %v2201, 4
        %v2359 = vadd.f32 %v2201, %v2358
        %v2360 = vrot.slane %v2359, 2
        %v2361 = vadd.f32 %v2359, %v2360
        %v2362 = vrot.slane %v2361, 1
        %v2363 = vadd.f32 %v2361, %v2362
        %v2364 = vrot.slane %v2202, 4
        %v2365 = vadd.f32 %v2202, %v2364
        %v2366 = vrot.slane %v2365, 2
        %v2367 = vadd.f32 %v2365, %v2366
        %v2368 = vrot.slane %v2367, 1
        %v2369 = vadd.f32 %v2367, %v2368
        %v2370 = vrot.slane %v2203, 4
        %v2371 = vadd.f32 %v2203, %v2370
        %v2372 = vrot.slane %v2371, 2
        %v2373 = vadd.f32 %v2371, %v2372
        %v2374 = vrot.slane %v2373, 1
        %v2375 = vadd.f32 %v2373, %v2374
        %v2376 = vrot.slane %v2204, 4
        %v2377 = vadd.f32 %v2204, %v2376
        %v2378 = vrot.slane %v2377, 2
        %v2379 = vadd.f32 %v2377, %v2378
        %v2380 = vrot.slane %v2379, 1
        %v2381 = vadd.f32 %v2379, %v2380
        %v2382 = vrot.slane %v2205, 4
        %v2383 = vadd.f32 %v2205, %v2382
        %v2384 = vrot.slane %v2383, 2
        %v2385 = vadd.f32 %v2383, %v2384
        %v2386 = vrot.slane %v2385, 1
        %v2387 = vadd.f32 %v2385, %v2386
        %v2388 = vrot.slane %v2206, 4
        %v2389 = vadd.f32 %v2206, %v2388
        %v2390 = vrot.slane %v2389, 2
        %v2391 = vadd.f32 %v2389, %v2390
        %v2392 = vrot.slane %v2391, 1
        %v2393 = vadd.f32 %v2391, %v2392
        %v2394 = vrot.slane %v2207, 4
        %v2395 = vadd.f32 %v2207, %v2394
        %v2396 = vrot.slane %v2395, 2
        %v2397 = vadd.f32 %v2395, %v2396
        %v2398 = vrot.slane %v2397, 1
        %v2399 = vadd.f32 %v2397, %v2398
        %v2400 = vmul.f32 %v1829, %v1829
        %v2401 = vmul.f32 %v1835, %v1835
        %v2402 = vmul.f32 %v1841, %v1841
        %v2403 = vmul.f32 %v1847, %v1847
        %v2404 = vmul.f32 %v1853, %v1853
        %v2405 = vmul.f32 %v1859, %v1859
        %v2406 = vmul.f32 %v1865, %v1865
        %v2407 = vmul.f32 %v1871, %v1871
        %v2408 = vmul.f32 %v1877, %v1877
        %v2409 = vmul.f32 %v1883, %v1883
        %v2410 = vmul.f32 %v1889, %v1889
        %v2411 = vmul.f32 %v1895, %v1895
        %v2412 = vmul.f32 %v1901, %v1901
        %v2413 = vmul.f32 %v1907, %v1907
        %v2414 = vmul.f32 %v1913, %v1913
        %v2415 = vmul.f32 %v1919, %v1919
        %v2416 = vmul.f32 %v1925, %v1925
        %v2417 = vmul.f32 %v1931, %v1931
        %v2418 = vmul.f32 %v1937, %v1937
        %v2419 = vmul.f32 %v1943, %v1943
        %v2420 = vmul.f32 %v1949, %v1949
        %v2421 = vmul.f32 %v1955, %v1955
        %v2422 = vmul.f32 %v1961, %v1961
        %v2423 = vmul.f32 %v1967, %v1967
        %v2424 = vmul.f32 %v1973, %v1973
        %v2425 = vmul.f32 %v1979, %v1979
        %v2426 = vmul.f32 %v1985, %v1985
        %v2427 = vmul.f32 %v1991, %v1991
        %v2428 = vmul.f32 %v1997, %v1997
        %v2429 = vmul.f32 %v2003, %v2003
        %v2430 = vmul.f32 %v2009, %v2009
        %v2431 = vmul.f32 %v2015, %v2015
        %v2432 = vmul.f32 %v2213, %v2213
        %v2433 = vmul.f32 %v2219, %v2219
        %v2434 = vmul.f32 %v2225, %v2225
        %v2435 = vmul.f32 %v2231, %v2231
        %v2436 = vmul.f32 %v2237, %v2237
        %v2437 = vmul.f32 %v2243, %v2243
        %v2438 = vmul.f32 %v2249, %v2249
        %v2439 = vmul.f32 %v2255, %v2255
        %v2440 = vmul.f32 %v2261, %v2261
        %v2441 = vmul.f32 %v2267, %v2267
        %v2442 = vmul.f32 %v2273, %v2273
        %v2443 = vmul.f32 %v2279, %v2279
        %v2444 = vmul.f32 %v2285, %v2285
        %v2445 = vmul.f32 %v2291, %v2291
        %v2446 = vmul.f32 %v2297, %v2297
        %v2447 = vmul.f32 %v2303, %v2303
        %v2448 = vmul.f32 %v2309, %v2309
        %v2449 = vmul.f32 %v2315, %v2315
        %v2450 = vmul.f32 %v2321, %v2321
        %v2451 = vmul.f32 %v2327, %v2327
        %v2452 = vmul.f32 %v2333, %v2333
        %v2453 = vmul.f32 %v2339, %v2339
        %v2454 = vmul.f32 %v2345, %v2345
        %v2455 = vmul.f32 %v2351, %v2351
        %v2456 = vmul.f32 %v2357, %v2357
        %v2457 = vmul.f32 %v2363, %v2363
        %v2458 = vmul.f32 %v2369, %v2369
        %v2459 = vmul.f32 %v2375, %v2375
        %v2460 = vmul.f32 %v2381, %v2381
        %v2461 = vmul.f32 %v2387, %v2387
        %v2462 = vmul.f32 %v2393, %v2393
        %v2463 = vmul.f32 %v2399, %v2399
        %v2528 = vrot.slane %v1835, 7
        %vm2529 = vcmask 1041409
        %v2530 = vsel %vm2529, %v2528, %v1829
        %v2531 = vrot.slane %v1841, 6
        %vm2532 = vcmask 1042434
        %v2533 = vsel %vm2532, %v2531, %v2530
        %v2534 = vrot.slane %v1847, 5
        %vm2535 = vcmask 1043459
        %v2536 = vsel %vm2535, %v2534, %v2533
        %v2537 = vrot.slane %v1853, 4
        %vm2538 = vcmask 1044484
        %v2539 = vsel %vm2538, %v2537, %v2536
        %v2540 = vrot.slane %v1859, 3
        %vm2541 = vcmask 1045509
        %v2542 = vsel %vm2541, %v2540, %v2539
        %v2543 = vrot.slane %v1865, 2
        %vm2544 = vcmask 1046534
        %v2545 = vsel %vm2544, %v2543, %v2542
        %v2546 = vrot.slane %v1871, 1
        %vm2547 = vcmask 1047559
        %v2548 = vsel %vm2547, %v2546, %v2545
        %v2549 = vrot.slane %v1883, 7
        %v2550 = vsel %vm2529, %v2549, %v1877
        %v2551 = vrot.slane %v1889, 6
        %v2552 = vsel %vm2532, %v2551, %v2550
        %v2553 = vrot.slane %v1895, 5
        %v2554 = vsel %vm2535, %v2553, %v2552
        %v2555 = vrot.slane %v1901, 4
        %v2556 = vsel %vm2538, %v2555, %v2554
        %v2557 = vrot.slane %v1907, 3
        %v2558 = vsel %vm2541, %v2557, %v2556
        %v2559 = vrot.slane %v1913, 2
        %v2560 = vsel %vm2544, %v2559, %v2558
        %v2561 = vrot.slane %v1919, 1
        %v2562 = vsel %vm2547, %v2561, %v2560
        %v2563 = vrot.slane %v1931, 7
        %v2564 = vsel %vm2529, %v2563, %v1925
        %v2565 = vrot.slane %v1937, 6
        %v2566 = vsel %vm2532, %v2565, %v2564
        %v2567 = vrot.slane %v1943, 5
        %v2568 = vsel %vm2535, %v2567, %v2566
        %v2569 = vrot.slane %v1949, 4
        %v2570 = vsel %vm2538, %v2569, %v2568
        %v2571 = vrot.slane %v1955, 3
        %v2572 = vsel %vm2541, %v2571, %v2570
        %v2573 = vrot.slane %v1961, 2
        %v2574 = vsel %vm2544, %v2573, %v2572
        %v2575 = vrot.slane %v1967, 1
        %v2576 = vsel %vm2547, %v2575, %v2574
        %v2577 = vrot.slane %v1979, 7
        %v2578 = vsel %vm2529, %v2577, %v1973
        %v2579 = vrot.slane %v1985, 6
        %v2580 = vsel %vm2532, %v2579, %v2578
        %v2581 = vrot.slane %v1991, 5
        %v2582 = vsel %vm2535, %v2581, %v2580
        %v2583 = vrot.slane %v1997, 4
        %v2584 = vsel %vm2538, %v2583, %v2582
        %v2585 = vrot.slane %v2003, 3
        %v2586 = vsel %vm2541, %v2585, %v2584
        %v2587 = vrot.slane %v2009, 2
        %v2588 = vsel %vm2544, %v2587, %v2586
        %v2589 = vrot.slane %v2015, 1
        %v2590 = vsel %vm2547, %v2589, %v2588
        %v2591 = vrot.slane %v2219, 7
        %v2592 = vsel %vm2529, %v2591, %v2213
        %v2593 = vrot.slane %v2225, 6
        %v2594 = vsel %vm2532, %v2593, %v2592
        %v2595 = vrot.slane %v2231, 5
        %v2596 = vsel %vm2535, %v2595, %v2594
        %v2597 = vrot.slane %v2237, 4
        %v2598 = vsel %vm2538, %v2597, %v2596
        %v2599 = vrot.slane %v2243, 3
        %v2600 = vsel %vm2541, %v2599, %v2598
        %v2601 = vrot.slane %v2249, 2
        %v2602 = vsel %vm2544, %v2601, %v2600
        %v2603 = vrot.slane %v2255, 1
        %v2604 = vsel %vm2547, %v2603, %v2602
        %v2605 = vrot.slane %v2267, 7
        %v2606 = vsel %vm2529, %v2605, %v2261
        %v2607 = vrot.slane %v2273, 6
        %v2608 = vsel %vm2532, %v2607, %v2606
        %v2609 = vrot.slane %v2279, 5
        %v2610 = vsel %vm2535, %v2609, %v2608
        %v2611 = vrot.slane %v2285, 4
        %v2612 = vsel %vm2538, %v2611, %v2610
        %v2613 = vrot.slane %v2291, 3
        %v2614 = vsel %vm2541, %v2613, %v2612
        %v2615 = vrot.slane %v2297, 2
        %v2616 = vsel %vm2544, %v2615, %v2614
        %v2617 = vrot.slane %v2303, 1
        %v2618 = vsel %vm2547, %v2617, %v2616
        %v2619 = vrot.slane %v2315, 7
        %v2620 = vsel %vm2529, %v2619, %v2309
        %v2621 = vrot.slane %v2321, 6
        %v2622 = vsel %vm2532, %v2621, %v2620
        %v2623 = vrot.slane %v2327, 5
        %v2624 = vsel %vm2535, %v2623, %v2622
        %v2625 = vrot.slane %v2333, 4
        %v2626 = vsel %vm2538, %v2625, %v2624
        %v2627 = vrot.slane %v2339, 3
        %v2628 = vsel %vm2541, %v2627, %v2626
        %v2629 = vrot.slane %v2345, 2
        %v2630 = vsel %vm2544, %v2629, %v2628
        %v2631 = vrot.slane %v2351, 1
        %v2632 = vsel %vm2547, %v2631, %v2630
        %v2633 = vrot.slane %v2363, 7
        %v2634 = vsel %vm2529, %v2633, %v2357
        %v2635 = vrot.slane %v2369, 6
        %v2636 = vsel %vm2532, %v2635, %v2634
        %v2637 = vrot.slane %v2375, 5
        %v2638 = vsel %vm2535, %v2637, %v2636
        %v2639 = vrot.slane %v2381, 4
        %v2640 = vsel %vm2538, %v2639, %v2638
        %v2641 = vrot.slane %v2387, 3
        %v2642 = vsel %vm2541, %v2641, %v2640
        %v2643 = vrot.slane %v2393, 2
        %v2644 = vsel %vm2544, %v2643, %v2642
        %v2645 = vrot.slane %v2399, 1
        %v2646 = vsel %vm2547, %v2645, %v2644
        %2655 = vadd.xlane.f32.xlu0 %v2548
        %v2656 = vpop.xlane.xlu0 %2655
        %2657 = vadd.xlane.f32.xlu0 %v2562
        %v2658 = vpop.xlane.xlu0 %2657
        %2659 = vadd.xlane.f32.xlu0 %v2576
        %v2660 = vpop.xlane.xlu0 %2659
        %2661 = vadd.xlane.f32.xlu0 %v2590
        %v2662 = vpop.xlane.xlu0 %2661
        %2663 = vadd.xlane.f32.xlu0 %v2604
        %v2664 = vpop.xlane.xlu0 %2663
        %2665 = vadd.xlane.f32.xlu0 %v2618
        %v2666 = vpop.xlane.xlu0 %2665
        %2667 = vadd.xlane.f32.xlu0 %v2632
        %v2668 = vpop.xlane.xlu0 %2667
        %2669 = vadd.xlane.f32.xlu0 %v2646
        %v2670 = vpop.xlane.xlu0 %2669
        %v2735 = vrot.slane %v2401, 7
        %v2736 = vsel %vm2529, %v2735, %v2400
        %v2737 = vrot.slane %v2402, 6
        %v2738 = vsel %vm2532, %v2737, %v2736
        %v2739 = vrot.slane %v2403, 5
        %v2740 = vsel %vm2535, %v2739, %v2738
        %v2741 = vrot.slane %v2404, 4
        %v2742 = vsel %vm2538, %v2741, %v2740
        %v2743 = vrot.slane %v2405, 3
        %v2744 = vsel %vm2541, %v2743, %v2742
        %v2745 = vrot.slane %v2406, 2
        %v2746 = vsel %vm2544, %v2745, %v2744
        %v2747 = vrot.slane %v2407, 1
        %v2748 = vsel %vm2547, %v2747, %v2746
        %v2749 = vrot.slane %v2409, 7
        %v2750 = vsel %vm2529, %v2749, %v2408
        %v2751 = vrot.slane %v2410, 6
        %v2752 = vsel %vm2532, %v2751, %v2750
        %v2753 = vrot.slane %v2411, 5
        %v2754 = vsel %vm2535, %v2753, %v2752
        %v2755 = vrot.slane %v2412, 4
        %v2756 = vsel %vm2538, %v2755, %v2754
        %v2757 = vrot.slane %v2413, 3
        %v2758 = vsel %vm2541, %v2757, %v2756
        %v2759 = vrot.slane %v2414, 2
        %v2760 = vsel %vm2544, %v2759, %v2758
        %v2761 = vrot.slane %v2415, 1
        %v2762 = vsel %vm2547, %v2761, %v2760
        %v2763 = vrot.slane %v2417, 7
        %v2764 = vsel %vm2529, %v2763, %v2416
        %v2765 = vrot.slane %v2418, 6
        %v2766 = vsel %vm2532, %v2765, %v2764
        %v2767 = vrot.slane %v2419, 5
        %v2768 = vsel %vm2535, %v2767, %v2766
        %v2769 = vrot.slane %v2420, 4
        %v2770 = vsel %vm2538, %v2769, %v2768
        %v2771 = vrot.slane %v2421, 3
        %v2772 = vsel %vm2541, %v2771, %v2770
        %v2773 = vrot.slane %v2422, 2
        %v2774 = vsel %vm2544, %v2773, %v2772
        %v2775 = vrot.slane %v2423, 1
        %v2776 = vsel %vm2547, %v2775, %v2774
        %v2777 = vrot.slane %v2425, 7
        %v2778 = vsel %vm2529, %v2777, %v2424
        %v2779 = vrot.slane %v2426, 6
        %v2780 = vsel %vm2532, %v2779, %v2778
        %v2781 = vrot.slane %v2427, 5
        %v2782 = vsel %vm2535, %v2781, %v2780
        %v2783 = vrot.slane %v2428, 4
        %v2784 = vsel %vm2538, %v2783, %v2782
        %v2785 = vrot.slane %v2429, 3
        %v2786 = vsel %vm2541, %v2785, %v2784
        %v2787 = vrot.slane %v2430, 2
        %v2788 = vsel %vm2544, %v2787, %v2786
        %v2789 = vrot.slane %v2431, 1
        %v2790 = vsel %vm2547, %v2789, %v2788
        %v2791 = vrot.slane %v2433, 7
        %v2792 = vsel %vm2529, %v2791, %v2432
        %v2793 = vrot.slane %v2434, 6
        %v2794 = vsel %vm2532, %v2793, %v2792
        %v2795 = vrot.slane %v2435, 5
        %v2796 = vsel %vm2535, %v2795, %v2794
        %v2797 = vrot.slane %v2436, 4
        %v2798 = vsel %vm2538, %v2797, %v2796
        %v2799 = vrot.slane %v2437, 3
        %v2800 = vsel %vm2541, %v2799, %v2798
        %v2801 = vrot.slane %v2438, 2
        %v2802 = vsel %vm2544, %v2801, %v2800
        %v2803 = vrot.slane %v2439, 1
        %v2804 = vsel %vm2547, %v2803, %v2802
        %v2805 = vrot.slane %v2441, 7
        %v2806 = vsel %vm2529, %v2805, %v2440
        %v2807 = vrot.slane %v2442, 6
        %v2808 = vsel %vm2532, %v2807, %v2806
        %v2809 = vrot.slane %v2443, 5
        %v2810 = vsel %vm2535, %v2809, %v2808
        %v2811 = vrot.slane %v2444, 4
        %v2812 = vsel %vm2538, %v2811, %v2810
        %v2813 = vrot.slane %v2445, 3
        %v2814 = vsel %vm2541, %v2813, %v2812
        %v2815 = vrot.slane %v2446, 2
        %v2816 = vsel %vm2544, %v2815, %v2814
        %v2817 = vrot.slane %v2447, 1
        %v2818 = vsel %vm2547, %v2817, %v2816
        %v2819 = vrot.slane %v2449, 7
        %v2820 = vsel %vm2529, %v2819, %v2448
        %v2821 = vrot.slane %v2450, 6
        %v2822 = vsel %vm2532, %v2821, %v2820
        %v2823 = vrot.slane %v2451, 5
        %v2824 = vsel %vm2535, %v2823, %v2822
        %v2825 = vrot.slane %v2452, 4
        %v2826 = vsel %vm2538, %v2825, %v2824
        %v2827 = vrot.slane %v2453, 3
        %v2828 = vsel %vm2541, %v2827, %v2826
        %v2829 = vrot.slane %v2454, 2
        %v2830 = vsel %vm2544, %v2829, %v2828
        %v2831 = vrot.slane %v2455, 1
        %v2832 = vsel %vm2547, %v2831, %v2830
        %v2833 = vrot.slane %v2457, 7
        %v2834 = vsel %vm2529, %v2833, %v2456
        %v2835 = vrot.slane %v2458, 6
        %v2836 = vsel %vm2532, %v2835, %v2834
        %v2837 = vrot.slane %v2459, 5
        %v2838 = vsel %vm2535, %v2837, %v2836
        %v2839 = vrot.slane %v2460, 4
        %v2840 = vsel %vm2538, %v2839, %v2838
        %v2841 = vrot.slane %v2461, 3
        %v2842 = vsel %vm2541, %v2841, %v2840
        %v2843 = vrot.slane %v2462, 2
        %v2844 = vsel %vm2544, %v2843, %v2842
        %v2845 = vrot.slane %v2463, 1
        %v2846 = vsel %vm2547, %v2845, %v2844
        %2855 = vadd.xlane.f32.xlu0 %v2748
        %v2856 = vpop.xlane.xlu0 %2855
        %2857 = vadd.xlane.f32.xlu0 %v2762
        %v2858 = vpop.xlane.xlu0 %2857
        %2859 = vadd.xlane.f32.xlu0 %v2776
        %v2860 = vpop.xlane.xlu0 %2859
        %2861 = vadd.xlane.f32.xlu0 %v2790
        %v2862 = vpop.xlane.xlu0 %2861
        %2863 = vadd.xlane.f32.xlu0 %v2804
        %v2864 = vpop.xlane.xlu0 %2863
        %2865 = vadd.xlane.f32.xlu0 %v2818
        %v2866 = vpop.xlane.xlu0 %2865
        %2867 = vadd.xlane.f32.xlu0 %v2832
        %v2868 = vpop.xlane.xlu0 %2867
        %2869 = vadd.xlane.f32.xlu0 %v2846
        %v2870 = vpop.xlane.xlu0 %2869
        %v2871 = vrot.slane %v2656, 4
        %v2872 = vadd.f32 %v2656, %v2871
        %v2873 = vrot.slane %v2872, 2
        %v2874 = vadd.f32 %v2872, %v2873
        %v2875 = vrot.slane %v2874, 1
        %v2876 = vadd.f32 %v2874, %v2875
        %v2877 = vrot.slane %v2658, 4
        %v2878 = vadd.f32 %v2658, %v2877
        %v2879 = vrot.slane %v2878, 2
        %v2880 = vadd.f32 %v2878, %v2879
        %v2881 = vrot.slane %v2880, 1
        %v2882 = vadd.f32 %v2880, %v2881
        %v2883 = vrot.slane %v2660, 4
        %v2884 = vadd.f32 %v2660, %v2883
        %v2885 = vrot.slane %v2884, 2
        %v2886 = vadd.f32 %v2884, %v2885
        %v2887 = vrot.slane %v2886, 1
        %v2888 = vadd.f32 %v2886, %v2887
        %v2889 = vrot.slane %v2662, 4
        %v2890 = vadd.f32 %v2662, %v2889
        %v2891 = vrot.slane %v2890, 2
        %v2892 = vadd.f32 %v2890, %v2891
        %v2893 = vrot.slane %v2892, 1
        %v2894 = vadd.f32 %v2892, %v2893
        %v2895 = vrot.slane %v2664, 4
        %v2896 = vadd.f32 %v2664, %v2895
        %v2897 = vrot.slane %v2896, 2
        %v2898 = vadd.f32 %v2896, %v2897
        %v2899 = vrot.slane %v2898, 1
        %v2900 = vadd.f32 %v2898, %v2899
        %v2901 = vrot.slane %v2666, 4
        %v2902 = vadd.f32 %v2666, %v2901
        %v2903 = vrot.slane %v2902, 2
        %v2904 = vadd.f32 %v2902, %v2903
        %v2905 = vrot.slane %v2904, 1
        %v2906 = vadd.f32 %v2904, %v2905
        %v2907 = vrot.slane %v2668, 4
        %v2908 = vadd.f32 %v2668, %v2907
        %v2909 = vrot.slane %v2908, 2
        %v2910 = vadd.f32 %v2908, %v2909
        %v2911 = vrot.slane %v2910, 1
        %v2912 = vadd.f32 %v2910, %v2911
        %v2913 = vrot.slane %v2670, 4
        %v2914 = vadd.f32 %v2670, %v2913
        %v2915 = vrot.slane %v2914, 2
        %v2916 = vadd.f32 %v2914, %v2915
        %v2917 = vrot.slane %v2916, 1
        %v2918 = vadd.f32 %v2916, %v2917
        %v2919 = vrot.slane %v2856, 4
        %v2920 = vadd.f32 %v2856, %v2919
        %v2921 = vrot.slane %v2920, 2
        %v2922 = vadd.f32 %v2920, %v2921
        %v2923 = vrot.slane %v2922, 1
        %v2924 = vadd.f32 %v2922, %v2923
        %v2925 = vrot.slane %v2858, 4
        %v2926 = vadd.f32 %v2858, %v2925
        %v2927 = vrot.slane %v2926, 2
        %v2928 = vadd.f32 %v2926, %v2927
        %v2929 = vrot.slane %v2928, 1
        %v2930 = vadd.f32 %v2928, %v2929
        %v2931 = vrot.slane %v2860, 4
        %v2932 = vadd.f32 %v2860, %v2931
        %v2933 = vrot.slane %v2932, 2
        %v2934 = vadd.f32 %v2932, %v2933
        %v2935 = vrot.slane %v2934, 1
        %v2936 = vadd.f32 %v2934, %v2935
        %v2937 = vrot.slane %v2862, 4
        %v2938 = vadd.f32 %v2862, %v2937
        %v2939 = vrot.slane %v2938, 2
        %v2940 = vadd.f32 %v2938, %v2939
        %v2941 = vrot.slane %v2940, 1
        %v2942 = vadd.f32 %v2940, %v2941
        %v2943 = vrot.slane %v2864, 4
        %v2944 = vadd.f32 %v2864, %v2943
        %v2945 = vrot.slane %v2944, 2
        %v2946 = vadd.f32 %v2944, %v2945
        %v2947 = vrot.slane %v2946, 1
        %v2948 = vadd.f32 %v2946, %v2947
        %v2949 = vrot.slane %v2866, 4
        %v2950 = vadd.f32 %v2866, %v2949
        %v2951 = vrot.slane %v2950, 2
        %v2952 = vadd.f32 %v2950, %v2951
        %v2953 = vrot.slane %v2952, 1
        %v2954 = vadd.f32 %v2952, %v2953
        %v2955 = vrot.slane %v2868, 4
        %v2956 = vadd.f32 %v2868, %v2955
        %v2957 = vrot.slane %v2956, 2
        %v2958 = vadd.f32 %v2956, %v2957
        %v2959 = vrot.slane %v2958, 1
        %v2960 = vadd.f32 %v2958, %v2959
        %v2961 = vrot.slane %v2870, 4
        %v2962 = vadd.f32 %v2870, %v2961
        %v2963 = vrot.slane %v2962, 2
        %v2964 = vadd.f32 %v2962, %v2963
        %v2965 = vrot.slane %v2964, 1
        %v2966 = vadd.f32 %v2964, %v2965
        %v2967 = vmul.f32 %v2876, 0.0009765625
        %v2968 = vmul.f32 %v2882, 0.0009765625
        %v2969 = vmul.f32 %v2888, 0.0009765625
        %v2970 = vmul.f32 %v2894, 0.0009765625
        %v2971 = vmul.f32 %v2900, 0.0009765625
        %v2972 = vmul.f32 %v2906, 0.0009765625
        %v2973 = vmul.f32 %v2912, 0.0009765625
        %v2974 = vmul.f32 %v2918, 0.0009765625
        %v2975 = vmul.f32 %v2924, 0.0009765625
        %v2976 = vmul.f32 %v2930, 0.0009765625
        %v2977 = vmul.f32 %v2936, 0.0009765625
        %v2978 = vmul.f32 %v2942, 0.0009765625
        %v2979 = vmul.f32 %v2948, 0.0009765625
        %v2980 = vmul.f32 %v2954, 0.0009765625
        %v2981 = vmul.f32 %v2960, 0.0009765625
        %v2982 = vmul.f32 %v2966, 0.0009765625
        %v2983 = vmul.f32 %v2967, %v2967
        %v2984 = vmul.f32 %v2968, %v2968
        %v2985 = vmul.f32 %v2969, %v2969
        %v2986 = vmul.f32 %v2970, %v2970
        %v2987 = vmul.f32 %v2971, %v2971
        %v2988 = vmul.f32 %v2972, %v2972
        %v2989 = vmul.f32 %v2973, %v2973
        %v2990 = vmul.f32 %v2974, %v2974
        %v2991 = vsub.f32 %v2975, %v2983
        %v2992 = vsub.f32 %v2976, %v2984
        %v2993 = vsub.f32 %v2977, %v2985
        %v2994 = vsub.f32 %v2978, %v2986
        %v2995 = vsub.f32 %v2979, %v2987
        %v2996 = vsub.f32 %v2980, %v2988
        %v2997 = vsub.f32 %v2981, %v2989
        %v2998 = vsub.f32 %v2982, %v2990
        %v2999 = vsub.f32 %v1829, %v2967
        %v3000 = vsub.f32 %v1835, %v2967
        %v3001 = vsub.f32 %v1841, %v2967
        %v3002 = vsub.f32 %v1847, %v2967
        %v3003 = vsub.f32 %v1853, %v2967
        %v3004 = vsub.f32 %v1859, %v2967
        %v3005 = vsub.f32 %v1865, %v2967
        %v3006 = vsub.f32 %v1871, %v2967
        %v3007 = vsub.f32 %v1877, %v2968
        %v3008 = vsub.f32 %v1883, %v2968
        %v3009 = vsub.f32 %v1889, %v2968
        %v3010 = vsub.f32 %v1895, %v2968
        %v3011 = vsub.f32 %v1901, %v2968
        %v3012 = vsub.f32 %v1907, %v2968
        %v3013 = vsub.f32 %v1913, %v2968
        %v3014 = vsub.f32 %v1919, %v2968
        %v3015 = vsub.f32 %v1925, %v2969
        %v3016 = vsub.f32 %v1931, %v2969
        %v3017 = vsub.f32 %v1937, %v2969
        %v3018 = vsub.f32 %v1943, %v2969
        %v3019 = vsub.f32 %v1949, %v2969
        %v3020 = vsub.f32 %v1955, %v2969
        %v3021 = vsub.f32 %v1961, %v2969
        %v3022 = vsub.f32 %v1967, %v2969
        %v3023 = vsub.f32 %v1973, %v2970
        %v3024 = vsub.f32 %v1979, %v2970
        %v3025 = vsub.f32 %v1985, %v2970
        %v3026 = vsub.f32 %v1991, %v2970
        %v3027 = vsub.f32 %v1997, %v2970
        %v3028 = vsub.f32 %v2003, %v2970
        %v3029 = vsub.f32 %v2009, %v2970
        %v3030 = vsub.f32 %v2015, %v2970
        %v3031 = vsub.f32 %v2213, %v2971
        %v3032 = vsub.f32 %v2219, %v2971
        %v3033 = vsub.f32 %v2225, %v2971
        %v3034 = vsub.f32 %v2231, %v2971
        %v3035 = vsub.f32 %v2237, %v2971
        %v3036 = vsub.f32 %v2243, %v2971
        %v3037 = vsub.f32 %v2249, %v2971
        %v3038 = vsub.f32 %v2255, %v2971
        %v3039 = vsub.f32 %v2261, %v2972
        %v3040 = vsub.f32 %v2267, %v2972
        %v3041 = vsub.f32 %v2273, %v2972
        %v3042 = vsub.f32 %v2279, %v2972
        %v3043 = vsub.f32 %v2285, %v2972
        %v3044 = vsub.f32 %v2291, %v2972
        %v3045 = vsub.f32 %v2297, %v2972
        %v3046 = vsub.f32 %v2303, %v2972
        %v3047 = vsub.f32 %v2309, %v2973
        %v3048 = vsub.f32 %v2315, %v2973
        %v3049 = vsub.f32 %v2321, %v2973
        %v3050 = vsub.f32 %v2327, %v2973
        %v3051 = vsub.f32 %v2333, %v2973
        %v3052 = vsub.f32 %v2339, %v2973
        %v3053 = vsub.f32 %v2345, %v2973
        %v3054 = vsub.f32 %v2351, %v2973
        %v3055 = vsub.f32 %v2357, %v2974
        %v3056 = vsub.f32 %v2363, %v2974
        %v3057 = vsub.f32 %v2369, %v2974
        %v3058 = vsub.f32 %v2375, %v2974
        %v3059 = vsub.f32 %v2381, %v2974
        %v3060 = vsub.f32 %v2387, %v2974
        %v3061 = vsub.f32 %v2393, %v2974
        %v3062 = vsub.f32 %v2399, %v2974
        %v3063 = vadd.f32 %v2991, 1e-05
        %v3064 = vadd.f32 %v2992, 1e-05
        %v3065 = vadd.f32 %v2993, 1e-05
        %v3066 = vadd.f32 %v2994, 1e-05
        %v3067 = vadd.f32 %v2995, 1e-05
        %v3068 = vadd.f32 %v2996, 1e-05
        %v3069 = vadd.f32 %v2997, 1e-05
        %v3070 = vadd.f32 %v2998, 1e-05
        %v3071 = vrsqrt.pop %v3063
        %v3072 = vrsqrt.pop %v3064
        %v3073 = vrsqrt.pop %v3065
        %v3074 = vrsqrt.pop %v3066
        %v3075 = vrsqrt.pop %v3067
        %v3076 = vrsqrt.pop %v3068
        %v3077 = vrsqrt.pop %v3069
        %v3078 = vrsqrt.pop %v3070
        %v3079 = vmul.f32 %v2999, %v3071
        %v3080 = vmul.f32 %v3000, %v3071
        %v3081 = vmul.f32 %v3001, %v3071
        %v3082 = vmul.f32 %v3002, %v3071
        %v3083 = vmul.f32 %v3003, %v3071
        %v3084 = vmul.f32 %v3004, %v3071
        %v3085 = vmul.f32 %v3005, %v3071
        %v3086 = vmul.f32 %v3006, %v3071
        %v3087 = vmul.f32 %v3007, %v3072
        %v3088 = vmul.f32 %v3008, %v3072
        %v3089 = vmul.f32 %v3009, %v3072
        %v3090 = vmul.f32 %v3010, %v3072
        %v3091 = vmul.f32 %v3011, %v3072
        %v3092 = vmul.f32 %v3012, %v3072
        %v3093 = vmul.f32 %v3013, %v3072
        %v3094 = vmul.f32 %v3014, %v3072
        %v3095 = vmul.f32 %v3015, %v3073
        %v3096 = vmul.f32 %v3016, %v3073
        %v3097 = vmul.f32 %v3017, %v3073
        %v3098 = vmul.f32 %v3018, %v3073
        %v3099 = vmul.f32 %v3019, %v3073
        %v3100 = vmul.f32 %v3020, %v3073
        %v3101 = vmul.f32 %v3021, %v3073
        %v3102 = vmul.f32 %v3022, %v3073
        %v3103 = vmul.f32 %v3023, %v3074
        %v3104 = vmul.f32 %v3024, %v3074
        %v3105 = vmul.f32 %v3025, %v3074
        %v3106 = vmul.f32 %v3026, %v3074
        %v3107 = vmul.f32 %v3027, %v3074
        %v3108 = vmul.f32 %v3028, %v3074
        %v3109 = vmul.f32 %v3029, %v3074
        %v3110 = vmul.f32 %v3030, %v3074
        %v3111 = vmul.f32 %v3031, %v3075
        %v3112 = vmul.f32 %v3032, %v3075
        %v3113 = vmul.f32 %v3033, %v3075
        %v3114 = vmul.f32 %v3034, %v3075
        %v3115 = vmul.f32 %v3035, %v3075
        %v3116 = vmul.f32 %v3036, %v3075
        %v3117 = vmul.f32 %v3037, %v3075
        %v3118 = vmul.f32 %v3038, %v3075
        %v3119 = vmul.f32 %v3039, %v3076
        %v3120 = vmul.f32 %v3040, %v3076
        %v3121 = vmul.f32 %v3041, %v3076
        %v3122 = vmul.f32 %v3042, %v3076
        %v3123 = vmul.f32 %v3043, %v3076
        %v3124 = vmul.f32 %v3044, %v3076
        %v3125 = vmul.f32 %v3045, %v3076
        %v3126 = vmul.f32 %v3046, %v3076
        %v3127 = vmul.f32 %v3047, %v3077
        %v3128 = vmul.f32 %v3048, %v3077
        %v3129 = vmul.f32 %v3049, %v3077
        %v3130 = vmul.f32 %v3050, %v3077
        %v3131 = vmul.f32 %v3051, %v3077
        %v3132 = vmul.f32 %v3052, %v3077
        %v3133 = vmul.f32 %v3053, %v3077
        %v3134 = vmul.f32 %v3054, %v3077
        %v3135 = vmul.f32 %v3055, %v3078
        %v3136 = vmul.f32 %v3056, %v3078
        %v3137 = vmul.f32 %v3057, %v3078
        %v3138 = vmul.f32 %v3058, %v3078
        %v3139 = vmul.f32 %v3059, %v3078
        %v3140 = vmul.f32 %v3060, %v3078
        %v3141 = vmul.f32 %v3061, %v3078
        %v3142 = vmul.f32 %v3062, %v3078
        %v3143 = vadd.f32 %v3079, %v3111
        %v3144 = vadd.f32 %v3080, %v3112
        %v3145 = vadd.f32 %v3081, %v3113
        %v3146 = vadd.f32 %v3082, %v3114
        %v3147 = vadd.f32 %v3083, %v3115
        %v3148 = vadd.f32 %v3084, %v3116
        %v3149 = vadd.f32 %v3085, %v3117
        %v3150 = vadd.f32 %v3086, %v3118
        %v3151 = vadd.f32 %v3087, %v3119
        %v3152 = vadd.f32 %v3088, %v3120
        %v3153 = vadd.f32 %v3089, %v3121
        %v3154 = vadd.f32 %v3090, %v3122
        %v3155 = vadd.f32 %v3091, %v3123
        %v3156 = vadd.f32 %v3092, %v3124
        %v3157 = vadd.f32 %v3093, %v3125
        %v3158 = vadd.f32 %v3094, %v3126
        %v3159 = vadd.f32 %v3095, %v3127
        %v3160 = vadd.f32 %v3096, %v3128
        %v3161 = vadd.f32 %v3097, %v3129
        %v3162 = vadd.f32 %v3098, %v3130
        %v3163 = vadd.f32 %v3099, %v3131
        %v3164 = vadd.f32 %v3100, %v3132
        %v3165 = vadd.f32 %v3101, %v3133
        %v3166 = vadd.f32 %v3102, %v3134
        %v3167 = vadd.f32 %v3103, %v3135
        %v3168 = vadd.f32 %v3104, %v3136
        %v3169 = vadd.f32 %v3105, %v3137
        %v3170 = vadd.f32 %v3106, %v3138
        %v3171 = vadd.f32 %v3107, %v3139
        %v3172 = vadd.f32 %v3108, %v3140
        %v3173 = vadd.f32 %v3109, %v3141
        %v3174 = vadd.f32 %v3110, %v3142
        %v3207 = vrot.slane %v3144, 7
        %v3208 = vsel %vm2529, %v3207, %v3143
        %v3209 = vrot.slane %v3145, 6
        %v3210 = vsel %vm2532, %v3209, %v3208
        %v3211 = vrot.slane %v3146, 5
        %v3212 = vsel %vm2535, %v3211, %v3210
        %v3213 = vrot.slane %v3147, 4
        %v3214 = vsel %vm2538, %v3213, %v3212
        %v3215 = vrot.slane %v3148, 3
        %v3216 = vsel %vm2541, %v3215, %v3214
        %v3217 = vrot.slane %v3149, 2
        %v3218 = vsel %vm2544, %v3217, %v3216
        %v3219 = vrot.slane %v3150, 1
        %v3220 = vsel %vm2547, %v3219, %v3218
        %v3221 = vrot.slane %v3152, 7
        %v3222 = vsel %vm2529, %v3221, %v3151
        %v3223 = vrot.slane %v3153, 6
        %v3224 = vsel %vm2532, %v3223, %v3222
        %v3225 = vrot.slane %v3154, 5
        %v3226 = vsel %vm2535, %v3225, %v3224
        %v3227 = vrot.slane %v3155, 4
        %v3228 = vsel %vm2538, %v3227, %v3226
        %v3229 = vrot.slane %v3156, 3
        %v3230 = vsel %vm2541, %v3229, %v3228
        %v3231 = vrot.slane %v3157, 2
        %v3232 = vsel %vm2544, %v3231, %v3230
        %v3233 = vrot.slane %v3158, 1
        %v3234 = vsel %vm2547, %v3233, %v3232
        %v3235 = vrot.slane %v3160, 7
        %v3236 = vsel %vm2529, %v3235, %v3159
        %v3237 = vrot.slane %v3161, 6
        %v3238 = vsel %vm2532, %v3237, %v3236
        %v3239 = vrot.slane %v3162, 5
        %v3240 = vsel %vm2535, %v3239, %v3238
        %v3241 = vrot.slane %v3163, 4
        %v3242 = vsel %vm2538, %v3241, %v3240
        %v3243 = vrot.slane %v3164, 3
        %v3244 = vsel %vm2541, %v3243, %v3242
        %v3245 = vrot.slane %v3165, 2
        %v3246 = vsel %vm2544, %v3245, %v3244
        %v3247 = vrot.slane %v3166, 1
        %v3248 = vsel %vm2547, %v3247, %v3246
        %v3249 = vrot.slane %v3168, 7
        %v3250 = vsel %vm2529, %v3249, %v3167
        %v3251 = vrot.slane %v3169, 6
        %v3252 = vsel %vm2532, %v3251, %v3250
        %v3253 = vrot.slane %v3170, 5
        %v3254 = vsel %vm2535, %v3253, %v3252
        %v3255 = vrot.slane %v3171, 4
        %v3256 = vsel %vm2538, %v3255, %v3254
        %v3257 = vrot.slane %v3172, 3
        %v3258 = vsel %vm2541, %v3257, %v3256
        %v3259 = vrot.slane %v3173, 2
        %v3260 = vsel %vm2544, %v3259, %v3258
        %v3261 = vrot.slane %v3174, 1
        %v3262 = vsel %vm2547, %v3261, %v3260
        %3267 = vst [vmem:[%s215] sm:$0xff] %v3220
        %3268 = vst [vmem:[%s215 + $0x8] sm:$0xff] %v3234
        %3269 = vst [vmem:[%s215 + $0x10] sm:$0xff] %v3248
        %3270 = vst [vmem:[%s215 + $0x18] sm:$0xff] %v3262
        %s3271 = sand.u32 %s137, 1
        %s3272 = scalar_lea.sflag [#allocation3], %s3271
        %s3273 = sand.u32 %s137, 1
        %s3274 = smul.addr %s3273, 32
        %s3275 = scalar_lea.vmem [#allocation2], %s3274
        // Predicated region
        $region41: #{tpu_custom_call.1} parent=39 // pred_check
          %p3276 = pneg %p147
        $region42: #{tpu_custom_call.1} parent=39 // pred_check_branch
          %3278 = sbr.rel (%p3276) target = $region44
        $region43: #{tpu_custom_call.1} parent=39 // pred_region
          %s3280 = ssub.s32 512, 512
          %3281 = vsyncadd %s3272, %s3280
          %s3282 = smul.addr %s19, 4
          %s3283 = smul.addr %s3282, 128
          %s3284 = scalar_lea.hbm %s5, %s3283
          %s3285 = sshll.u32 %s3275, 4
          %s3286 = int_to_ptr.vmem [resolvable:$true] %s3285
          %3291 = dma.vmem_to_hbm [thread:$0]  %s3286, 512, %s3284, %s3272, 128, 128, 8
        $region44: #{tpu_custom_call.1} parent=39 // pred_fallthru
          _
      $region40: #{tpu_custom_call.1} parent=5 // pred_fallthru
        _
      %p3292 = scmp.le.s32.totalorder 2, %s14
      // Predicated region
      $region45: #{tpu_custom_call.1} parent=5 // pred_check
        %p3293 = pneg %p3292
      $region46: #{tpu_custom_call.1} parent=5 // pred_check_branch
        %3295 = sbr.rel (%p3293) target = $region48
      $region47: #{tpu_custom_call.1} parent=5 // pred_region
        %s3296 = ssub.s32 %s14, 2
        // Predicated region
        $region49: #{tpu_custom_call.1} parent=47 // pred_check
          %p3297 = pneg %p153
        $region50: #{tpu_custom_call.1} parent=47 // pred_check_branch
          %3299 = sbr.rel (%p3297) target = $region52
        $region51: #{tpu_custom_call.1} parent=47 // pred_region
          %s3300 = sand.u32 %s138, 1
          %s3301 = scalar_lea.sflag [#allocation3], %s3300
          %s3302 = sand.u32 %s138, 1
          %s3303 = smul.addr %s3302, 32
          %s3304 = scalar_lea.vmem [#allocation2], %s3303
          %3305 = dma.done %s3301, 512
        $region52: #{tpu_custom_call.1} parent=47 // pred_fallthru
          _
      $region48: #{tpu_custom_call.1} parent=5 // pred_fallthru
        _
    $region6: #{tpu_custom_call.1} parent=1 // loop_footer
      %s18 = sadd.s32 1, %s14
    $region7: #{tpu_custom_call.1} parent=1 // loop_footer_branch
      %13 = sbr.rel target = $region3
    $region8: #{tpu_custom_call.1} parent=1 // loop_exit
      _
    %3306 = vsyncpa [#allocation3], 1
    %s3307 = scalar_lea.sflag [#allocation3], 1
    %3308 = vsyncpa %s3307, 1

</llo_original>
